<compile_context>
chip_gen: v7x
topology: tpu7x:2x2x1
jax: 0.10.0
libtpu: 0.0.40
codegen_flags: <defaults>
</compile_context>

<pallas_src>
import math
import functools

import jax
import jax.numpy as jnp
from jax.experimental import pallas as pl
from jax.experimental.pallas import tpu as pltpu


def _cross_attn_kernel(q_ref, k_ref, v_ref,
                       wq_ref, bq_ref, wk_ref, bk_ref, wv_ref, bv_ref,
                       o_ref,
                       k_sc, v_sc, out_sc,
                       *, num_heads, head_dim):
    """grid = (B, Sq/tq). qi axis is "arbitrary": K/V projections run once per
    batch element (qi == 0) and are cached in bf16 VMEM scratch."""
    qi = pl.program_id(1)

    @pl.when(qi == 0)
    def _project_kv():
        # K/V projections hoisted out of the query-tile loop (O(nq)x fewer
        # projection FLOPs). bf16 x bf16 MXU matmuls, f32 accumulation.
        k = jnp.dot(k_ref[0], wk_ref[...],
                    preferred_element_type=jnp.float32) + bk_ref[0]
        v = jnp.dot(v_ref[0], wv_ref[...],
                    preferred_element_type=jnp.float32) + bv_ref[0]
        k_sc[...] = k.astype(jnp.bfloat16)
        v_sc[...] = v.astype(jnp.bfloat16)

    # Q projection per query tile; fold the 1/sqrt(D) score scale into q
    # (tq*E muls instead of H*tq*Sk). Softmax math stays in f32.
    q = jnp.dot(q_ref[0], wq_ref[...],
                preferred_element_type=jnp.float32) + bq_ref[0]
    q = (q * (1.0 / math.sqrt(head_dim))).astype(jnp.bfloat16)

    # Fully unrolled per-head loop with static lane slices; Sk stays on the
    # lane axis, no (S, H, D) reshapes / cross-lane relayouts.
    # TODO(synk): for head_dim < 128 the MXU contraction is under-filled on
    #             v6e/v7x; a (tq, H, D) batched dot_general may win there.
    for h in range(num_heads):
        lo = h * head_dim
        hi = lo + head_dim
        q_h = q[:, lo:hi]                        # (tq, D) bf16
        k_h = k_sc[:, lo:hi]                     # (Sk, D) bf16
        v_h = v_sc[:, lo:hi]                     # (Sk, D) bf16

        # scores (tq, Sk): contract over D without materializing k.T.
        s = jax.lax.dot_general(q_h, k_h, (((1,), (1,)), ((), ())),
                                preferred_element_type=jnp.float32)
        # TODO(synk): additive attention_mask (mask * -1e9) not wired in; the
        #             module's default path uses mask=None.

        # Numerically stable softmax with deferred normalization: one tiny
        # (tq, 1) EUP reciprocal instead of dividing the (tq, Sk) tensor.
        m = jnp.max(s, axis=-1, keepdims=True)
        p = jnp.exp(s - m)
        l = jnp.sum(p, axis=-1, keepdims=True)
        o_h = jnp.dot(p.astype(jnp.bfloat16), v_h,
                      preferred_element_type=jnp.float32)         # (tq, D)
        # Write each head into the (tq, E) scratch immediately so we never
        # keep H live f32 head outputs across the unrolled loop.
        out_sc[:, lo:hi] = o_h * pl.reciprocal(l, approx=True)

    # Single lane-dense (tq, E) store.
    o_ref[0] = out_sc[...].astype(o_ref.dtype)


def _vmem_capacity_bytes():
    try:
        return int(pltpu.get_tpu_info().vmem_capacity_bytes)
    except Exception:
        return 64 * 1024 * 1024   # conservative per-TensorCore floor (v7x)


def _pick_tq(sq, q_block):
    if sq <= q_block:
        return sq
    # Prefer MXU-friendly tiles: 256-multiples (v6e/v7x), then 128 (v5e),
    # then any multiple of 8 that divides Sq.
    for align in (256, 128, 8):
        t = (q_block // align) * align
        while t >= align:
            if sq % t == 0 and t % 8 == 0:
                return t
            t -= align
    # TODO(synk): pad Sq + masked tail rows instead of one giant tile for
    #             long, non-divisible query lengths.
    return sq


def _build_call(B, Sq, Sk, E, num_heads, head_dim, tq, nq, out_dtype,
                single_buffer_weights):
    kernel = functools.partial(_cross_attn_kernel,
                               num_heads=num_heads, head_dim=head_dim)

    def inv_spec(shape):
        # Weights / biases are grid-invariant: single-buffer them to halve
        # their VMEM residency (double-buffering buys nothing here).
        if single_buffer_weights:
            return pl.BlockSpec(shape, lambda b, qi: (0, 0),
                                pipeline_mode=pl.Buffered(1))
        return pl.BlockSpec(shape, lambda b, qi: (0, 0))

    weight_spec = inv_spec((E, E))
    bias_spec = inv_spec((1, E))

    out_bytes = jnp.dtype(out_dtype).itemsize
    w_bufs = 1 if single_buffer_weights else 2
    est = (
        w_bufs * (3 * E * E * 2 + 3 * E * 4)       # bf16 weights + f32 biases
        + 2 * (tq * E + 2 * Sk * E) * 2            # double-buffered bf16 q/k/v tiles
        + 2 * tq * E * out_bytes                   # double-buffered output tile
        + 2 * Sk * E * 2                           # projected K/V scratch (bf16)
        + tq * E * 4                               # output accumulation scratch (f32)
        + 2 * Sk * E * 4                           # f32 K/V projection temporaries
        + tq * E * 6                               # projected Q (f32 + bf16 copy)
        + 2 * tq * Sk * 4                          # per-head score / exp temporaries
        + 4 * 1024 * 1024                          # headroom
    )
    cap = int(0.85 * _vmem_capacity_bytes())
    vmem_limit = min(cap, max(int(est), 32 * 1024 * 1024))

    flops = 2 * B * Sq * E * E                     # Q projection
    flops += 4 * B * Sk * E * E                    # K/V projections (once per batch)
    flops += 4 * B * Sq * Sk * E                   # QK^T + PV
    cost = pl.CostEstimate(
        flops=int(flops),
        transcendentals=int(B * num_heads * Sq * Sk),
        bytes_accessed=int(2 * (B * Sq * E + 2 * B * Sk * E)     # bf16 activations
                           + 2 * 3 * E * E + 4 * 3 * E           # weights + biases
                           + out_bytes * B * Sq * E))             # output

    return pl.pallas_call(
        kernel,
        out_shape=jax.ShapeDtypeStruct((B, Sq, E), out_dtype),
        grid_spec=pltpu.PrefetchScalarGridSpec(
            num_scalar_prefetch=0,
            grid=(B, nq),
            in_specs=[
                pl.BlockSpec((1, tq, E), lambda b, qi: (b, qi, 0)),   # query
                pl.BlockSpec((1, Sk, E), lambda b, qi: (b, 0, 0)),    # key
                pl.BlockSpec((1, Sk, E), lambda b, qi: (b, 0, 0)),    # value
                weight_spec, bias_spec,                               # q proj
                weight_spec, bias_spec,                               # k proj
                weight_spec, bias_spec,                               # v proj
            ],
            out_specs=pl.BlockSpec((1, tq, E), lambda b, qi: (b, qi, 0)),
            scratch_shapes=[
                pltpu.VMEM((Sk, E), jnp.bfloat16),    # projected K (persists over qi)
                pltpu.VMEM((Sk, E), jnp.bfloat16),    # projected V (persists over qi)
                pltpu.VMEM((tq, E), jnp.float32),     # per-tile output accumulator
            ],
        ),
        compiler_params=pltpu.CompilerParams(
            # qi carries the cached K/V projection -> "arbitrary"; B is the
            # megacore-parallel axis (keep B a multiple of 2 on v7x).
            dimension_semantics=("parallel", "arbitrary"),
            vmem_limit_bytes=vmem_limit),
        cost_estimate=cost,
    )


def progen_cross_attention(query, key, value, params, *, num_heads, q_block=256):
    """query: (B, Sq, E), key/value: (B, Sk, E). Returns (B, Sq, E) in query.dtype."""
    B, Sq, E = query.shape
    _, Sk, _ = key.shape
    head_dim = E // num_heads
    tq = _pick_tq(Sq, q_block)
    nq = Sq // tq

    # bf16 activations / weights at the pallas_call boundary (halves HBM DMA
    # and VMEM residency); matmuls accumulate in f32, softmax stays f32.
    args = (
        query.astype(jnp.bfloat16),
        key.astype(jnp.bfloat16),
        value.astype(jnp.bfloat16),
        params['wq'].astype(jnp.bfloat16), params['bq'].astype(jnp.float32),
        params['wk'].astype(jnp.bfloat16), params['bk'].astype(jnp.float32),
        params['wv'].astype(jnp.bfloat16), params['bv'].astype(jnp.float32),
    )

    try:
        fn = _build_call(B, Sq, Sk, E, num_heads, head_dim, tq, nq,
                         query.dtype, single_buffer_weights=True)
        return fn(*args)
    except Exception:
        # pl.Buffered(1) not supported on this jax/libtpu: fall back to the
        # default double-buffered weight specs (numerically identical).
        fn = _build_call(B, Sq, Sk, E, num_heads, head_dim, tq, nq,
                         query.dtype, single_buffer_weights=False)
        return fn(*args)


def _reference(query, key, value, params, *, num_heads):
    """Plain-JAX f32 reference matching the PyTorch module semantics."""
    B, Sq, E = query.shape
    Sk = key.shape[1]
    D = E // num_heads
    q = query @ params['wq'] + params['bq'][0]
    k = key @ params['wk'] + params['bk'][0]
    v = value @ params['wv'] + params['bv'][0]
    q = q.reshape(B, Sq, num_heads, D).transpose(0, 2, 1, 3)
    k = k.reshape(B, Sk, num_heads, D).transpose(0, 2, 1, 3)
    v = v.reshape(B, Sk, num_heads, D).transpose(0, 2, 1, 3)
    scores = jnp.einsum('bhqd,bhkd->bhqk', q, k) / math.sqrt(D)
    attn = jax.nn.softmax(scores, axis=-1)
    out = jnp.einsum('bhqk,bhkd->bhqd', attn, v)
    return out.transpose(0, 2, 1, 3).reshape(B, Sq, E)


if __name__ == "__main__":
    # Small config: embed_dim=32, n_head=4 -> head_dim=8
    B, Sq, Sk, E, H = 2, 8, 16, 32, 4

    key_rng = jax.random.PRNGKey(0)
    ks = jax.random.split(key_rng, 9)

    query = jax.random.normal(ks[0], (B, Sq, E), dtype=jnp.float32)
    key_in = jax.random.normal(ks[1], (B, Sk, E), dtype=jnp.float32)
    value_in = jax.random.normal(ks[2], (B, Sk, E), dtype=jnp.float32)

    scale = 1.0 / math.sqrt(E)
    params = {
        'wq': jax.random.normal(ks[3], (E, E), dtype=jnp.float32) * scale,
        'bq': jax.random.normal(ks[4], (1, E), dtype=jnp.float32) * scale,
        'wk': jax.random.normal(ks[5], (E, E), dtype=jnp.float32) * scale,
        'bk': jax.random.normal(ks[6], (1, E), dtype=jnp.float32) * scale,
        'wv': jax.random.normal(ks[7], (E, E), dtype=jnp.float32) * scale,
        'bv': jax.random.normal(ks[8], (1, E), dtype=jnp.float32) * scale,
    }

    out = progen_cross_attention(query, key_in, value_in, params, num_heads=H)
    out = jax.block_until_ready(out)

    ref = _reference(query, key_in, value_in, params, num_heads=H)
    assert out.shape == (B, Sq, E)
    # Tolerance accounts for bf16 inputs/weights in the projections, bf16
    # QK^T / PV operands, and the approximate EUP reciprocal, vs. the pure
    # f32 reference.
    assert jnp.allclose(out, ref, atol=1e-1, rtol=1e-1), "mismatch vs reference"

    print("KERNEL_OK")
</pallas_src>

<mosaic_0001>
module attributes {stable_mosaic.version = 11 : i64} {
  func.func @_cross_attn_kernel(%arg0: i32, %arg1: i32, %arg2: memref<1x8x32xbf16, #tpu.memory_space<vmem>>, %arg3: memref<1x16x32xbf16, #tpu.memory_space<vmem>>, %arg4: memref<1x16x32xbf16, #tpu.memory_space<vmem>>, %arg5: memref<32x32xbf16, #tpu.memory_space<vmem>>, %arg6: memref<1x32xf32, #tpu.memory_space<vmem>>, %arg7: memref<32x32xbf16, #tpu.memory_space<vmem>>, %arg8: memref<1x32xf32, #tpu.memory_space<vmem>>, %arg9: memref<32x32xbf16, #tpu.memory_space<vmem>>, %arg10: memref<1x32xf32, #tpu.memory_space<vmem>>, %arg11: memref<1x8x32xf32, #tpu.memory_space<vmem>>, %arg12: memref<16x32xbf16, #tpu.memory_space<vmem>>, %arg13: memref<16x32xbf16, #tpu.memory_space<vmem>>, %arg14: memref<8x32xf32, #tpu.memory_space<vmem>>) attributes {dimension_semantics = [#tpu.dimension_semantics<parallel>, #tpu.dimension_semantics<arbitrary>], iteration_bounds = array<i64: 2, 1>, scalar_prefetch = 0 : i64, scratch_operands = 3 : i64, tpu.core_type = #tpu.core_type<tc>, window_params = [{transform_indices = @transform_0, window_bounds = array<i64: 1, 8, 32>}, {transform_indices = @transform_1, window_bounds = array<i64: 1, 16, 32>}, {transform_indices = @transform_2, window_bounds = array<i64: 1, 16, 32>}, {pipeline_mode = #tpu.pipeline_mode<synchronous>, transform_indices = @transform_3, window_bounds = array<i64: 32, 32>}, {pipeline_mode = #tpu.pipeline_mode<synchronous>, transform_indices = @transform_4, window_bounds = array<i64: 1, 32>}, {pipeline_mode = #tpu.pipeline_mode<synchronous>, transform_indices = @transform_5, window_bounds = array<i64: 32, 32>}, {pipeline_mode = #tpu.pipeline_mode<synchronous>, transform_indices = @transform_6, window_bounds = array<i64: 1, 32>}, {pipeline_mode = #tpu.pipeline_mode<synchronous>, transform_indices = @transform_7, window_bounds = array<i64: 32, 32>}, {pipeline_mode = #tpu.pipeline_mode<synchronous>, transform_indices = @transform_8, window_bounds = array<i64: 1, 32>}, {transform_indices = @transform_9, window_bounds = array<i64: 1, 8, 32>}]} {
    %c0_i32 = arith.constant 0 : i32
    %0 = arith.cmpi eq, %arg1, %c0_i32 : i32
    %1 = arith.extui %0 : i1 to i32
    %c0_i32_0 = arith.constant 0 : i32
    %2 = arith.cmpi ne, %1, %c0_i32_0 : i32
    scf.if %2 {
      %c0_50 = arith.constant 0 : index
      %c0_51 = arith.constant 0 : index
      %c0_52 = arith.constant 0 : index
      %87 = vector.load %arg3[%c0_50, %c0_51, %c0_52] : memref<1x16x32xbf16, #tpu.memory_space<vmem>>, vector<1x16x32xbf16>
      %88 = vector.shape_cast %87 : vector<1x16x32xbf16> to vector<16x32xbf16>
      %c0_53 = arith.constant 0 : index
      %c0_54 = arith.constant 0 : index
      %89 = vector.load %arg7[%c0_53, %c0_54] : memref<32x32xbf16, #tpu.memory_space<vmem>>, vector<32x32xbf16>
      %cst_55 = arith.constant dense<0.000000e+00> : vector<16x32xf32>
      %90 = tpu.matmul %88, %89, %cst_55 {dimension_numbers = #tpu.dot_dimension_numbers<[1], [0], [0], [1], [0, 0, 1, 1], [], []>} : vector<16x32xbf16>, vector<32x32xbf16>, vector<16x32xf32> -> vector<16x32xf32>
      %c0_56 = arith.constant 0 : index
      %c0_57 = arith.constant 0 : index
      %91 = vector.load %arg8[%c0_56, %c0_57] : memref<1x32xf32, #tpu.memory_space<vmem>>, vector<1x32xf32>
      %92 = vector.shape_cast %91 : vector<1x32xf32> to vector<32xf32>
      %93 = vector.shape_cast %92 : vector<32xf32> to vector<1x32xf32>
      %94 = vector.broadcast %93 : vector<1x32xf32> to vector<16x32xf32>
      %95 = arith.addf %90, %94 : vector<16x32xf32>
      %c0_58 = arith.constant 0 : index
      %c0_59 = arith.constant 0 : index
      %c0_60 = arith.constant 0 : index
      %96 = vector.load %arg4[%c0_58, %c0_59, %c0_60] : memref<1x16x32xbf16, #tpu.memory_space<vmem>>, vector<1x16x32xbf16>
      %97 = vector.shape_cast %96 : vector<1x16x32xbf16> to vector<16x32xbf16>
      %c0_61 = arith.constant 0 : index
      %c0_62 = arith.constant 0 : index
      %98 = vector.load %arg9[%c0_61, %c0_62] : memref<32x32xbf16, #tpu.memory_space<vmem>>, vector<32x32xbf16>
      %cst_63 = arith.constant dense<0.000000e+00> : vector<16x32xf32>
      %99 = tpu.matmul %97, %98, %cst_63 {dimension_numbers = #tpu.dot_dimension_numbers<[1], [0], [0], [1], [0, 0, 1, 1], [], []>} : vector<16x32xbf16>, vector<32x32xbf16>, vector<16x32xf32> -> vector<16x32xf32>
      %c0_64 = arith.constant 0 : index
      %c0_65 = arith.constant 0 : index
      %100 = vector.load %arg10[%c0_64, %c0_65] : memref<1x32xf32, #tpu.memory_space<vmem>>, vector<1x32xf32>
      %101 = vector.shape_cast %100 : vector<1x32xf32> to vector<32xf32>
      %102 = vector.shape_cast %101 : vector<32xf32> to vector<1x32xf32>
      %103 = vector.broadcast %102 : vector<1x32xf32> to vector<16x32xf32>
      %104 = arith.addf %99, %103 : vector<16x32xf32>
      %105 = arith.truncf %95 : vector<16x32xf32> to vector<16x32xbf16>
      %c0_66 = arith.constant 0 : index
      %c0_67 = arith.constant 0 : index
      %106 = vector.load %arg12[%c0_66, %c0_67] : memref<16x32xbf16, #tpu.memory_space<vmem>>, vector<16x32xbf16>
      tpu.vector_store %arg12[%c0_66, %c0_67], %105 {strides = array<i32>} : memref<16x32xbf16, #tpu.memory_space<vmem>>, vector<16x32xbf16>,
      %107 = arith.truncf %104 : vector<16x32xf32> to vector<16x32xbf16>
      %c0_68 = arith.constant 0 : index
      %c0_69 = arith.constant 0 : index
      %108 = vector.load %arg13[%c0_68, %c0_69] : memref<16x32xbf16, #tpu.memory_space<vmem>>, vector<16x32xbf16>
      tpu.vector_store %arg13[%c0_68, %c0_69], %107 {strides = array<i32>} : memref<16x32xbf16, #tpu.memory_space<vmem>>, vector<16x32xbf16>,
    } else {
    }
    %c0 = arith.constant 0 : index
    %c0_1 = arith.constant 0 : index
    %c0_2 = arith.constant 0 : index
    %3 = vector.load %arg2[%c0, %c0_1, %c0_2] : memref<1x8x32xbf16, #tpu.memory_space<vmem>>, vector<1x8x32xbf16>
    %4 = vector.shape_cast %3 : vector<1x8x32xbf16> to vector<8x32xbf16>
    %c0_3 = arith.constant 0 : index
    %c0_4 = arith.constant 0 : index
    %5 = vector.load %arg5[%c0_3, %c0_4] : memref<32x32xbf16, #tpu.memory_space<vmem>>, vector<32x32xbf16>
    %cst = arith.constant dense<0.000000e+00> : vector<8x32xf32>
    %6 = tpu.matmul %4, %5, %cst {dimension_numbers = #tpu.dot_dimension_numbers<[1], [0], [0], [1], [0, 0, 1, 1], [], []>} : vector<8x32xbf16>, vector<32x32xbf16>, vector<8x32xf32> -> vector<8x32xf32>
    %c0_5 = arith.constant 0 : index
    %c0_6 = arith.constant 0 : index
    %7 = vector.load %arg6[%c0_5, %c0_6] : memref<1x32xf32, #tpu.memory_space<vmem>>, vector<1x32xf32>
    %8 = vector.shape_cast %7 : vector<1x32xf32> to vector<32xf32>
    %9 = vector.shape_cast %8 : vector<32xf32> to vector<1x32xf32>
    %10 = vector.broadcast %9 : vector<1x32xf32> to vector<8x32xf32>
    %11 = arith.addf %6, %10 : vector<8x32xf32>
    %cst_7 = arith.constant 0.353553385 : f32
    %12 = vector.broadcast %cst_7 : f32 to vector<8x32xf32>
    %13 = arith.mulf %11, %12 : vector<8x32xf32>
    %14 = arith.truncf %13 : vector<8x32xf32> to vector<8x32xbf16>
    %15 = vector.extract_strided_slice %14 {offsets = [0, 0], sizes = [8, 8], strides = [1, 1]} : vector<8x32xbf16> to vector<8x8xbf16>
    %c0_8 = arith.constant 0 : index
    %c0_9 = arith.constant 0 : index
    %16 = vector.load %arg12[%c0_8, %c0_9] : memref<16x32xbf16, #tpu.memory_space<vmem>>, vector<16x8xbf16>
    %c0_10 = arith.constant 0 : index
    %c0_11 = arith.constant 0 : index
    %17 = vector.load %arg13[%c0_10, %c0_11] : memref<16x32xbf16, #tpu.memory_space<vmem>>, vector<16x8xbf16>
    %cst_12 = arith.constant dense<0.000000e+00> : vector<8x16xf32>
    %18 = tpu.matmul %15, %16, %cst_12 {dimension_numbers = #tpu.dot_dimension_numbers<[1], [1], [0], [0], [0, 0, 1, 0], [], []>} : vector<8x8xbf16>, vector<16x8xbf16>, vector<8x16xf32> -> vector<8x16xf32>
    %cst_13 = arith.constant dense<0xFF800000> : vector<8xf32>
    %19 = vector.multi_reduction <maximumf>, %18, %cst_13 [1] : vector<8x16xf32> to vector<8xf32>
    %20 = vector.shape_cast %19 : vector<8xf32> to vector<8x1xf32>
    %21 = vector.broadcast %20 : vector<8x1xf32> to vector<8x16xf32>
    %22 = arith.subf %18, %21 : vector<8x16xf32>
    %23 = math.exp %22 : vector<8x16xf32>
    %cst_14 = arith.constant dense<0.000000e+00> : vector<8xf32>
    %24 = vector.multi_reduction <add>, %23, %cst_14 [1] : vector<8x16xf32> to vector<8xf32>
    %25 = vector.shape_cast %24 : vector<8xf32> to vector<8x1xf32>
    %26 = arith.truncf %23 : vector<8x16xf32> to vector<8x16xbf16>
    %cst_15 = arith.constant dense<0.000000e+00> : vector<8x8xf32>
    %27 = tpu.matmul %26, %17, %cst_15 {dimension_numbers = #tpu.dot_dimension_numbers<[1], [0], [0], [1], [0, 0, 1, 1], [], []>} : vector<8x16xbf16>, vector<16x8xbf16>, vector<8x8xf32> -> vector<8x8xf32>
    %28 = tpu.reciprocal %25 {approx = true} : vector<8x1xf32> -> vector<8x1xf32>
    %29 = vector.broadcast %28 : vector<8x1xf32> to vector<8x8xf32>
    %30 = arith.mulf %27, %29 : vector<8x8xf32>
    %c0_16 = arith.constant 0 : index
    %c0_17 = arith.constant 0 : index
    %31 = vector.load %arg14[%c0_16, %c0_17] : memref<8x32xf32, #tpu.memory_space<vmem>>, vector<8x8xf32>
    tpu.vector_store %arg14[%c0_16, %c0_17], %30 {strides = array<i32>} : memref<8x32xf32, #tpu.memory_space<vmem>>, vector<8x8xf32>,
    %32 = vector.extract_strided_slice %14 {offsets = [0, 8], sizes = [8, 8], strides = [1, 1]} : vector<8x32xbf16> to vector<8x8xbf16>
    %c0_18 = arith.constant 0 : index
    %c8 = arith.constant 8 : index
    %33 = vector.load %arg12[%c0_18, %c8] : memref<16x32xbf16, #tpu.memory_space<vmem>>, vector<16x8xbf16>
    %c0_19 = arith.constant 0 : index
    %c8_20 = arith.constant 8 : index
    %34 = vector.load %arg13[%c0_19, %c8_20] : memref<16x32xbf16, #tpu.memory_space<vmem>>, vector<16x8xbf16>
    %cst_21 = arith.constant dense<0.000000e+00> : vector<8x16xf32>
    %35 = tpu.matmul %32, %33, %cst_21 {dimension_numbers = #tpu.dot_dimension_numbers<[1], [1], [0], [0], [0, 0, 1, 0], [], []>} : vector<8x8xbf16>, vector<16x8xbf16>, vector<8x16xf32> -> vector<8x16xf32>
    %cst_22 = arith.constant dense<0xFF800000> : vector<8xf32>
    %36 = vector.multi_reduction <maximumf>, %35, %cst_22 [1] : vector<8x16xf32> to vector<8xf32>
    %37 = vector.shape_cast %36 : vector<8xf32> to vector<8x1xf32>
    %38 = vector.broadcast %37 : vector<8x1xf32> to vector<8x16xf32>
    %39 = arith.subf %35, %38 : vector<8x16xf32>
    %40 = math.exp %39 : vector<8x16xf32>
    %cst_23 = arith.constant dense<0.000000e+00> : vector<8xf32>
    %41 = vector.multi_reduction <add>, %40, %cst_23 [1] : vector<8x16xf32> to vector<8xf32>
    %42 = vector.shape_cast %41 : vector<8xf32> to vector<8x1xf32>
    %43 = arith.truncf %40 : vector<8x16xf32> to vector<8x16xbf16>
    %cst_24 = arith.constant dense<0.000000e+00> : vector<8x8xf32>
    %44 = tpu.matmul %43, %34, %cst_24 {dimension_numbers = #tpu.dot_dimension_numbers<[1], [0], [0], [1], [0, 0, 1, 1], [], []>} : vector<8x16xbf16>, vector<16x8xbf16>, vector<8x8xf32> -> vector<8x8xf32>
    %45 = tpu.reciprocal %42 {approx = true} : vector<8x1xf32> -> vector<8x1xf32>
    %46 = vector.broadcast %45 : vector<8x1xf32> to vector<8x8xf32>
    %47 = arith.mulf %44, %46 : vector<8x8xf32>
    %c0_25 = arith.constant 0 : index
    %c8_26 = arith.constant 8 : index
    %48 = vector.load %arg14[%c0_25, %c8_26] : memref<8x32xf32, #tpu.memory_space<vmem>>, vector<8x8xf32>
    tpu.vector_store %arg14[%c0_25, %c8_26], %47 {strides = array<i32>} : memref<8x32xf32, #tpu.memory_space<vmem>>, vector<8x8xf32>,
    %49 = vector.extract_strided_slice %14 {offsets = [0, 16], sizes = [8, 8], strides = [1, 1]} : vector<8x32xbf16> to vector<8x8xbf16>
    %c0_27 = arith.constant 0 : index
    %c16 = arith.constant 16 : index
    %50 = vector.load %arg12[%c0_27, %c16] : memref<16x32xbf16, #tpu.memory_space<vmem>>, vector<16x8xbf16>
    %c0_28 = arith.constant 0 : index
    %c16_29 = arith.constant 16 : index
    %51 = vector.load %arg13[%c0_28, %c16_29] : memref<16x32xbf16, #tpu.memory_space<vmem>>, vector<16x8xbf16>
    %cst_30 = arith.constant dense<0.000000e+00> : vector<8x16xf32>
    %52 = tpu.matmul %49, %50, %cst_30 {dimension_numbers = #tpu.dot_dimension_numbers<[1], [1], [0], [0], [0, 0, 1, 0], [], []>} : vector<8x8xbf16>, vector<16x8xbf16>, vector<8x16xf32> -> vector<8x16xf32>
    %cst_31 = arith.constant dense<0xFF800000> : vector<8xf32>
    %53 = vector.multi_reduction <maximumf>, %52, %cst_31 [1] : vector<8x16xf32> to vector<8xf32>
    %54 = vector.shape_cast %53 : vector<8xf32> to vector<8x1xf32>
    %55 = vector.broadcast %54 : vector<8x1xf32> to vector<8x16xf32>
    %56 = arith.subf %52, %55 : vector<8x16xf32>
    %57 = math.exp %56 : vector<8x16xf32>
    %cst_32 = arith.constant dense<0.000000e+00> : vector<8xf32>
    %58 = vector.multi_reduction <add>, %57, %cst_32 [1] : vector<8x16xf32> to vector<8xf32>
    %59 = vector.shape_cast %58 : vector<8xf32> to vector<8x1xf32>
    %60 = arith.truncf %57 : vector<8x16xf32> to vector<8x16xbf16>
    %cst_33 = arith.constant dense<0.000000e+00> : vector<8x8xf32>
    %61 = tpu.matmul %60, %51, %cst_33 {dimension_numbers = #tpu.dot_dimension_numbers<[1], [0], [0], [1], [0, 0, 1, 1], [], []>} : vector<8x16xbf16>, vector<16x8xbf16>, vector<8x8xf32> -> vector<8x8xf32>
    %62 = tpu.reciprocal %59 {approx = true} : vector<8x1xf32> -> vector<8x1xf32>
    %63 = vector.broadcast %62 : vector<8x1xf32> to vector<8x8xf32>
    %64 = arith.mulf %61, %63 : vector<8x8xf32>
    %c0_34 = arith.constant 0 : index
    %c16_35 = arith.constant 16 : index
    %65 = vector.load %arg14[%c0_34, %c16_35] : memref<8x32xf32, #tpu.memory_space<vmem>>, vector<8x8xf32>
    tpu.vector_store %arg14[%c0_34, %c16_35], %64 {strides = array<i32>} : memref<8x32xf32, #tpu.memory_space<vmem>>, vector<8x8xf32>,
    %66 = vector.extract_strided_slice %14 {offsets = [0, 24], sizes = [8, 8], strides = [1, 1]} : vector<8x32xbf16> to vector<8x8xbf16>
    %c0_36 = arith.constant 0 : index
    %c24 = arith.constant 24 : index
    %67 = vector.load %arg12[%c0_36, %c24] : memref<16x32xbf16, #tpu.memory_space<vmem>>, vector<16x8xbf16>
    %c0_37 = arith.constant 0 : index
    %c24_38 = arith.constant 24 : index
    %68 = vector.load %arg13[%c0_37, %c24_38] : memref<16x32xbf16, #tpu.memory_space<vmem>>, vector<16x8xbf16>
    %cst_39 = arith.constant dense<0.000000e+00> : vector<8x16xf32>
    %69 = tpu.matmul %66, %67, %cst_39 {dimension_numbers = #tpu.dot_dimension_numbers<[1], [1], [0], [0], [0, 0, 1, 0], [], []>} : vector<8x8xbf16>, vector<16x8xbf16>, vector<8x16xf32> -> vector<8x16xf32>
    %cst_40 = arith.constant dense<0xFF800000> : vector<8xf32>
    %70 = vector.multi_reduction <maximumf>, %69, %cst_40 [1] : vector<8x16xf32> to vector<8xf32>
    %71 = vector.shape_cast %70 : vector<8xf32> to vector<8x1xf32>
    %72 = vector.broadcast %71 : vector<8x1xf32> to vector<8x16xf32>
    %73 = arith.subf %69, %72 : vector<8x16xf32>
    %74 = math.exp %73 : vector<8x16xf32>
    %cst_41 = arith.constant dense<0.000000e+00> : vector<8xf32>
    %75 = vector.multi_reduction <add>, %74, %cst_41 [1] : vector<8x16xf32> to vector<8xf32>
    %76 = vector.shape_cast %75 : vector<8xf32> to vector<8x1xf32>
    %77 = arith.truncf %74 : vector<8x16xf32> to vector<8x16xbf16>
    %cst_42 = arith.constant dense<0.000000e+00> : vector<8x8xf32>
    %78 = tpu.matmul %77, %68, %cst_42 {dimension_numbers = #tpu.dot_dimension_numbers<[1], [0], [0], [1], [0, 0, 1, 1], [], []>} : vector<8x16xbf16>, vector<16x8xbf16>, vector<8x8xf32> -> vector<8x8xf32>
    %79 = tpu.reciprocal %76 {approx = true} : vector<8x1xf32> -> vector<8x1xf32>
    %80 = vector.broadcast %79 : vector<8x1xf32> to vector<8x8xf32>
    %81 = arith.mulf %78, %80 : vector<8x8xf32>
    %c0_43 = arith.constant 0 : index
    %c24_44 = arith.constant 24 : index
    %82 = vector.load %arg14[%c0_43, %c24_44] : memref<8x32xf32, #tpu.memory_space<vmem>>, vector<8x8xf32>
    tpu.vector_store %arg14[%c0_43, %c24_44], %81 {strides = array<i32>} : memref<8x32xf32, #tpu.memory_space<vmem>>, vector<8x8xf32>,
    %c0_45 = arith.constant 0 : index
    %c0_46 = arith.constant 0 : index
    %83 = vector.load %arg14[%c0_45, %c0_46] : memref<8x32xf32, #tpu.memory_space<vmem>>, vector<8x32xf32>
    %c0_47 = arith.constant 0 : index
    %c0_48 = arith.constant 0 : index
    %c0_49 = arith.constant 0 : index
    %84 = vector.load %arg11[%c0_47, %c0_48, %c0_49] : memref<1x8x32xf32, #tpu.memory_space<vmem>>, vector<1x8x32xf32>
    %85 = vector.shape_cast %84 : vector<1x8x32xf32> to vector<8x32xf32>
    %86 = vector.shape_cast %83 : vector<8x32xf32> to vector<1x8x32xf32>
    tpu.vector_store %arg11[%c0_47, %c0_48, %c0_49], %86 {strides = array<i32>} : memref<1x8x32xf32, #tpu.memory_space<vmem>>, vector<1x8x32xf32>,
    return
  }
  func.func @transform_0(%arg0: i32, %arg1: i32) -> (i32, i32, i32) {
    %c0_i32 = arith.constant 0 : i32
    %c0_i32_0 = arith.constant 0 : i32
    return %arg0, %arg1, %c0_i32 : i32, i32, i32
  }
  func.func @transform_1(%arg0: i32, %arg1: i32) -> (i32, i32, i32) {
    %c0_i32 = arith.constant 0 : i32
    %c0_i32_0 = arith.constant 0 : i32
    %c0_i32_1 = arith.constant 0 : i32
    return %arg0, %c0_i32, %c0_i32_0 : i32, i32, i32
  }
  func.func @transform_2(%arg0: i32, %arg1: i32) -> (i32, i32, i32) {
    %c0_i32 = arith.constant 0 : i32
    %c0_i32_0 = arith.constant 0 : i32
    %c0_i32_1 = arith.constant 0 : i32
    return %arg0, %c0_i32, %c0_i32_0 : i32, i32, i32
  }
  func.func @transform_3(%arg0: i32, %arg1: i32) -> (i32, i32) {
    %c0_i32 = arith.constant 0 : i32
    %c0_i32_0 = arith.constant 0 : i32
    %c0_i32_1 = arith.constant 0 : i32
    return %c0_i32, %c0_i32_0 : i32, i32
  }
  func.func @transform_4(%arg0: i32, %arg1: i32) -> (i32, i32) {
    %c0_i32 = arith.constant 0 : i32
    %c0_i32_0 = arith.constant 0 : i32
    %c0_i32_1 = arith.constant 0 : i32
    return %c0_i32, %c0_i32_0 : i32, i32
  }
  func.func @transform_5(%arg0: i32, %arg1: i32) -> (i32, i32) {
    %c0_i32 = arith.constant 0 : i32
    %c0_i32_0 = arith.constant 0 : i32
    %c0_i32_1 = arith.constant 0 : i32
    return %c0_i32, %c0_i32_0 : i32, i32
  }
  func.func @transform_6(%arg0: i32, %arg1: i32) -> (i32, i32) {
    %c0_i32 = arith.constant 0 : i32
    %c0_i32_0 = arith.constant 0 : i32
    %c0_i32_1 = arith.constant 0 : i32
    return %c0_i32, %c0_i32_0 : i32, i32
  }
  func.func @transform_7(%arg0: i32, %arg1: i32) -> (i32, i32) {
    %c0_i32 = arith.constant 0 : i32
    %c0_i32_0 = arith.constant 0 : i32
    %c0_i32_1 = arith.constant 0 : i32
    return %c0_i32, %c0_i32_0 : i32, i32
  }
  func.func @transform_8(%arg0: i32, %arg1: i32) -> (i32, i32) {
    %c0_i32 = arith.constant 0 : i32
    %c0_i32_0 = arith.constant 0 : i32
    %c0_i32_1 = arith.constant 0 : i32
    return %c0_i32, %c0_i32_0 : i32, i32
  }
  func.func @transform_9(%arg0: i32, %arg1: i32) -> (i32, i32, i32) {
    %c0_i32 = arith.constant 0 : i32
    %c0_i32_0 = arith.constant 0 : i32
    return %arg0, %arg1, %c0_i32 : i32, i32, i32
  }
}

module attributes {stable_mosaic.version = 11 : i64} {
  func.func @_cross_attn_kernel(%arg0: i32, %arg1: i32, %arg2: memref<1x8x32xbf16, #tpu.memory_space<vmem>>, %arg3: memref<1x16x32xbf16, #tpu.memory_space<vmem>>, %arg4: memref<1x16x32xbf16, #tpu.memory_space<vmem>>, %arg5: memref<32x32xbf16, #tpu.memory_space<vmem>>, %arg6: memref<1x32xf32, #tpu.memory_space<vmem>>, %arg7: memref<32x32xbf16, #tpu.memory_space<vmem>>, %arg8: memref<1x32xf32, #tpu.memory_space<vmem>>, %arg9: memref<32x32xbf16, #tpu.memory_space<vmem>>, %arg10: memref<1x32xf32, #tpu.memory_space<vmem>>, %arg11: memref<1x8x32xf32, #tpu.memory_space<vmem>>, %arg12: memref<16x32xbf16, #tpu.memory_space<vmem>>, %arg13: memref<16x32xbf16, #tpu.memory_space<vmem>>, %arg14: memref<8x32xf32, #tpu.memory_space<vmem>>) attributes {dimension_semantics = [#tpu.dimension_semantics<parallel>, #tpu.dimension_semantics<arbitrary>], iteration_bounds = array<i64: 2, 1>, scalar_prefetch = 0 : i64, scratch_operands = 3 : i64, tpu.core_type = #tpu.core_type<tc>, window_params = [{transform_indices = @transform_0, window_bounds = array<i64: 1, 8, 32>}, {transform_indices = @transform_1, window_bounds = array<i64: 1, 16, 32>}, {transform_indices = @transform_2, window_bounds = array<i64: 1, 16, 32>}, {pipeline_mode = #tpu.pipeline_mode<synchronous>, transform_indices = @transform_3, window_bounds = array<i64: 32, 32>}, {pipeline_mode = #tpu.pipeline_mode<synchronous>, transform_indices = @transform_4, window_bounds = array<i64: 1, 32>}, {pipeline_mode = #tpu.pipeline_mode<synchronous>, transform_indices = @transform_5, window_bounds = array<i64: 32, 32>}, {pipeline_mode = #tpu.pipeline_mode<synchronous>, transform_indices = @transform_6, window_bounds = array<i64: 1, 32>}, {pipeline_mode = #tpu.pipeline_mode<synchronous>, transform_indices = @transform_7, window_bounds = array<i64: 32, 32>}, {pipeline_mode = #tpu.pipeline_mode<synchronous>, transform_indices = @transform_8, window_bounds = array<i64: 1, 32>}, {transform_indices = @transform_9, window_bounds = array<i64: 1, 8, 32>}]} {
    %c0_i32 = arith.constant 0 : i32
    %0 = arith.cmpi eq, %arg1, %c0_i32 : i32
    %1 = arith.extui %0 : i1 to i32
    %c0_i32_0 = arith.constant 0 : i32
    %2 = arith.cmpi ne, %1, %c0_i32_0 : i32
    scf.if %2 {
      %c0_50 = arith.constant 0 : index
      %c0_51 = arith.constant 0 : index
      %c0_52 = arith.constant 0 : index
      %87 = vector.load %arg3[%c0_50, %c0_51, %c0_52] : memref<1x16x32xbf16, #tpu.memory_space<vmem>>, vector<1x16x32xbf16>
      %88 = vector.shape_cast %87 : vector<1x16x32xbf16> to vector<16x32xbf16>
      %c0_53 = arith.constant 0 : index
      %c0_54 = arith.constant 0 : index
      %89 = vector.load %arg7[%c0_53, %c0_54] : memref<32x32xbf16, #tpu.memory_space<vmem>>, vector<32x32xbf16>
      %cst_55 = arith.constant dense<0.000000e+00> : vector<16x32xf32>
      %90 = tpu.matmul %88, %89, %cst_55 {dimension_numbers = #tpu.dot_dimension_numbers<[1], [0], [0], [1], [0, 0, 1, 1], [], []>} : vector<16x32xbf16>, vector<32x32xbf16>, vector<16x32xf32> -> vector<16x32xf32>
      %c0_56 = arith.constant 0 : index
      %c0_57 = arith.constant 0 : index
      %91 = vector.load %arg8[%c0_56, %c0_57] : memref<1x32xf32, #tpu.memory_space<vmem>>, vector<1x32xf32>
      %92 = vector.shape_cast %91 : vector<1x32xf32> to vector<32xf32>
      %93 = vector.shape_cast %92 : vector<32xf32> to vector<1x32xf32>
      %94 = vector.broadcast %93 : vector<1x32xf32> to vector<16x32xf32>
      %95 = arith.addf %90, %94 : vector<16x32xf32>
      %c0_58 = arith.constant 0 : index
      %c0_59 = arith.constant 0 : index
      %c0_60 = arith.constant 0 : index
      %96 = vector.load %arg4[%c0_58, %c0_59, %c0_60] : memref<1x16x32xbf16, #tpu.memory_space<vmem>>, vector<1x16x32xbf16>
      %97 = vector.shape_cast %96 : vector<1x16x32xbf16> to vector<16x32xbf16>
      %c0_61 = arith.constant 0 : index
      %c0_62 = arith.constant 0 : index
      %98 = vector.load %arg9[%c0_61, %c0_62] : memref<32x32xbf16, #tpu.memory_space<vmem>>, vector<32x32xbf16>
      %cst_63 = arith.constant dense<0.000000e+00> : vector<16x32xf32>
      %99 = tpu.matmul %97, %98, %cst_63 {dimension_numbers = #tpu.dot_dimension_numbers<[1], [0], [0], [1], [0, 0, 1, 1], [], []>} : vector<16x32xbf16>, vector<32x32xbf16>, vector<16x32xf32> -> vector<16x32xf32>
      %c0_64 = arith.constant 0 : index
      %c0_65 = arith.constant 0 : index
      %100 = vector.load %arg10[%c0_64, %c0_65] : memref<1x32xf32, #tpu.memory_space<vmem>>, vector<1x32xf32>
      %101 = vector.shape_cast %100 : vector<1x32xf32> to vector<32xf32>
      %102 = vector.shape_cast %101 : vector<32xf32> to vector<1x32xf32>
      %103 = vector.broadcast %102 : vector<1x32xf32> to vector<16x32xf32>
      %104 = arith.addf %99, %103 : vector<16x32xf32>
      %105 = arith.truncf %95 : vector<16x32xf32> to vector<16x32xbf16>
      %c0_66 = arith.constant 0 : index
      %c0_67 = arith.constant 0 : index
      %106 = vector.load %arg12[%c0_66, %c0_67] : memref<16x32xbf16, #tpu.memory_space<vmem>>, vector<16x32xbf16>
      tpu.vector_store %arg12[%c0_66, %c0_67], %105 {strides = array<i32>} : memref<16x32xbf16, #tpu.memory_space<vmem>>, vector<16x32xbf16>,
      %107 = arith.truncf %104 : vector<16x32xf32> to vector<16x32xbf16>
      %c0_68 = arith.constant 0 : index
      %c0_69 = arith.constant 0 : index
      %108 = vector.load %arg13[%c0_68, %c0_69] : memref<16x32xbf16, #tpu.memory_space<vmem>>, vector<16x32xbf16>
      tpu.vector_store %arg13[%c0_68, %c0_69], %107 {strides = array<i32>} : memref<16x32xbf16, #tpu.memory_space<vmem>>, vector<16x32xbf16>,
    } else {
    }
    %c0 = arith.constant 0 : index
    %c0_1 = arith.constant 0 : index
    %c0_2 = arith.constant 0 : index
    %3 = vector.load %arg2[%c0, %c0_1, %c0_2] : memref<1x8x32xbf16, #tpu.memory_space<vmem>>, vector<1x8x32xbf16>
    %4 = vector.shape_cast %3 : vector<1x8x32xbf16> to vector<8x32xbf16>
    %c0_3 = arith.constant 0 : index
    %c0_4 = arith.constant 0 : index
    %5 = vector.load %arg5[%c0_3, %c0_4] : memref<32x32xbf16, #tpu.memory_space<vmem>>, vector<32x32xbf16>
    %cst = arith.constant dense<0.000000e+00> : vector<8x32xf32>
    %6 = tpu.matmul %4, %5, %cst {dimension_numbers = #tpu.dot_dimension_numbers<[1], [0], [0], [1], [0, 0, 1, 1], [], []>} : vector<8x32xbf16>, vector<32x32xbf16>, vector<8x32xf32> -> vector<8x32xf32>
    %c0_5 = arith.constant 0 : index
    %c0_6 = arith.constant 0 : index
    %7 = vector.load %arg6[%c0_5, %c0_6] : memref<1x32xf32, #tpu.memory_space<vmem>>, vector<1x32xf32>
    %8 = vector.shape_cast %7 : vector<1x32xf32> to vector<32xf32>
    %9 = vector.shape_cast %8 : vector<32xf32> to vector<1x32xf32>
    %10 = vector.broadcast %9 : vector<1x32xf32> to vector<8x32xf32>
    %11 = arith.addf %6, %10 : vector<8x32xf32>
    %cst_7 = arith.constant 0.353553385 : f32
    %12 = vector.broadcast %cst_7 : f32 to vector<8x32xf32>
    %13 = arith.mulf %11, %12 : vector<8x32xf32>
    %14 = arith.truncf %13 : vector<8x32xf32> to vector<8x32xbf16>
    %15 = vector.extract_strided_slice %14 {offsets = [0, 0], sizes = [8, 8], strides = [1, 1]} : vector<8x32xbf16> to vector<8x8xbf16>
    %c0_8 = arith.constant 0 : index
    %c0_9 = arith.constant 0 : index
    %16 = vector.load %arg12[%c0_8, %c0_9] : memref<16x32xbf16, #tpu.memory_space<vmem>>, vector<16x8xbf16>
    %c0_10 = arith.constant 0 : index
    %c0_11 = arith.constant 0 : index
    %17 = vector.load %arg13[%c0_10, %c0_11] : memref<16x32xbf16, #tpu.memory_space<vmem>>, vector<16x8xbf16>
    %cst_12 = arith.constant dense<0.000000e+00> : vector<8x16xf32>
    %18 = tpu.matmul %15, %16, %cst_12 {dimension_numbers = #tpu.dot_dimension_numbers<[1], [1], [0], [0], [0, 0, 1, 0], [], []>} : vector<8x8xbf16>, vector<16x8xbf16>, vector<8x16xf32> -> vector<8x16xf32>
    %cst_13 = arith.constant dense<0xFF800000> : vector<8xf32>
    %19 = vector.multi_reduction <maximumf>, %18, %cst_13 [1] : vector<8x16xf32> to vector<8xf32>
    %20 = vector.shape_cast %19 : vector<8xf32> to vector<8x1xf32>
    %21 = vector.broadcast %20 : vector<8x1xf32> to vector<8x16xf32>
    %22 = arith.subf %18, %21 : vector<8x16xf32>
    %23 = math.exp %22 : vector<8x16xf32>
    %cst_14 = arith.constant dense<0.000000e+00> : vector<8xf32>
    %24 = vector.multi_reduction <add>, %23, %cst_14 [1] : vector<8x16xf32> to vector<8xf32>
    %25 = vector.shape_cast %24 : vector<8xf32> to vector<8x1xf32>
    %26 = arith.truncf %23 : vector<8x16xf32> to vector<8x16xbf16>
    %cst_15 = arith.constant dense<0.000000e+00> : vector<8x8xf32>
    %27 = tpu.matmul %26, %17, %cst_15 {dimension_numbers = #tpu.dot_dimension_numbers<[1], [0], [0], [1], [0, 0, 1, 1], [], []>} : vector<8x16xbf16>, vector<16x8xbf16>, vector<8x8xf32> -> vector<8x8xf32>
    %28 = tpu.reciprocal %25 {approx = true} : vector<8x1xf32> -> vector<8x1xf32>
    %29 = vector.broadcast %28 : vector<8x1xf32> to vector<8x8xf32>
    %30 = arith.mulf %27, %29 : vector<8x8xf32>
    %c0_16 = arith.constant 0 : index
    %c0_17 = arith.constant 0 : index
    %31 = vector.load %arg14[%c0_16, %c0_17] : memref<8x32xf32, #tpu.memory_space<vmem>>, vector<8x8xf32>
    tpu.vector_store %arg14[%c0_16, %c0_17], %30 {strides = array<i32>} : memref<8x32xf32, #tpu.memory_space<vmem>>, vector<8x8xf32>,
    %32 = vector.extract_strided_slice %14 {offsets = [0, 8], sizes = [8, 8], strides = [1, 1]} : vector<8x32xbf16> to vector<8x8xbf16>
    %c0_18 = arith.constant 0 : index
    %c8 = arith.constant 8 : index
    %33 = vector.load %arg12[%c0_18, %c8] : memref<16x32xbf16, #tpu.memory_space<vmem>>, vector<16x8xbf16>
    %c0_19 = arith.constant 0 : index
    %c8_20 = arith.constant 8 : index
    %34 = vector.load %arg13[%c0_19, %c8_20] : memref<16x32xbf16, #tpu.memory_space<vmem>>, vector<16x8xbf16>
    %cst_21 = arith.constant dense<0.000000e+00> : vector<8x16xf32>
    %35 = tpu.matmul %32, %33, %cst_21 {dimension_numbers = #tpu.dot_dimension_numbers<[1], [1], [0], [0], [0, 0, 1, 0], [], []>} : vector<8x8xbf16>, vector<16x8xbf16>, vector<8x16xf32> -> vector<8x16xf32>
    %cst_22 = arith.constant dense<0xFF800000> : vector<8xf32>
    %36 = vector.multi_reduction <maximumf>, %35, %cst_22 [1] : vector<8x16xf32> to vector<8xf32>
    %37 = vector.shape_cast %36 : vector<8xf32> to vector<8x1xf32>
    %38 = vector.broadcast %37 : vector<8x1xf32> to vector<8x16xf32>
    %39 = arith.subf %35, %38 : vector<8x16xf32>
    %40 = math.exp %39 : vector<8x16xf32>
    %cst_23 = arith.constant dense<0.000000e+00> : vector<8xf32>
    %41 = vector.multi_reduction <add>, %40, %cst_23 [1] : vector<8x16xf32> to vector<8xf32>
    %42 = vector.shape_cast %41 : vector<8xf32> to vector<8x1xf32>
    %43 = arith.truncf %40 : vector<8x16xf32> to vector<8x16xbf16>
    %cst_24 = arith.constant dense<0.000000e+00> : vector<8x8xf32>
    %44 = tpu.matmul %43, %34, %cst_24 {dimension_numbers = #tpu.dot_dimension_numbers<[1], [0], [0], [1], [0, 0, 1, 1], [], []>} : vector<8x16xbf16>, vector<16x8xbf16>, vector<8x8xf32> -> vector<8x8xf32>
    %45 = tpu.reciprocal %42 {approx = true} : vector<8x1xf32> -> vector<8x1xf32>
    %46 = vector.broadcast %45 : vector<8x1xf32> to vector<8x8xf32>
    %47 = arith.mulf %44, %46 : vector<8x8xf32>
    %c0_25 = arith.constant 0 : index
    %c8_26 = arith.constant 8 : index
    %48 = vector.load %arg14[%c0_25, %c8_26] : memref<8x32xf32, #tpu.memory_space<vmem>>, vector<8x8xf32>
    tpu.vector_store %arg14[%c0_25, %c8_26], %47 {strides = array<i32>} : memref<8x32xf32, #tpu.memory_space<vmem>>, vector<8x8xf32>,
    %49 = vector.extract_strided_slice %14 {offsets = [0, 16], sizes = [8, 8], strides = [1, 1]} : vector<8x32xbf16> to vector<8x8xbf16>
    %c0_27 = arith.constant 0 : index
    %c16 = arith.constant 16 : index
    %50 = vector.load %arg12[%c0_27, %c16] : memref<16x32xbf16, #tpu.memory_space<vmem>>, vector<16x8xbf16>
    %c0_28 = arith.constant 0 : index
    %c16_29 = arith.constant 16 : index
    %51 = vector.load %arg13[%c0_28, %c16_29] : memref<16x32xbf16, #tpu.memory_space<vmem>>, vector<16x8xbf16>
    %cst_30 = arith.constant dense<0.000000e+00> : vector<8x16xf32>
    %52 = tpu.matmul %49, %50, %cst_30 {dimension_numbers = #tpu.dot_dimension_numbers<[1], [1], [0], [0], [0, 0, 1, 0], [], []>} : vector<8x8xbf16>, vector<16x8xbf16>, vector<8x16xf32> -> vector<8x16xf32>
    %cst_31 = arith.constant dense<0xFF800000> : vector<8xf32>
    %53 = vector.multi_reduction <maximumf>, %52, %cst_31 [1] : vector<8x16xf32> to vector<8xf32>
    %54 = vector.shape_cast %53 : vector<8xf32> to vector<8x1xf32>
    %55 = vector.broadcast %54 : vector<8x1xf32> to vector<8x16xf32>
    %56 = arith.subf %52, %55 : vector<8x16xf32>
    %57 = math.exp %56 : vector<8x16xf32>
    %cst_32 = arith.constant dense<0.000000e+00> : vector<8xf32>
    %58 = vector.multi_reduction <add>, %57, %cst_32 [1] : vector<8x16xf32> to vector<8xf32>
    %59 = vector.shape_cast %58 : vector<8xf32> to vector<8x1xf32>
    %60 = arith.truncf %57 : vector<8x16xf32> to vector<8x16xbf16>
    %cst_33 = arith.constant dense<0.000000e+00> : vector<8x8xf32>
    %61 = tpu.matmul %60, %51, %cst_33 {dimension_numbers = #tpu.dot_dimension_numbers<[1], [0], [0], [1], [0, 0, 1, 1], [], []>} : vector<8x16xbf16>, vector<16x8xbf16>, vector<8x8xf32> -> vector<8x8xf32>
    %62 = tpu.reciprocal %59 {approx = true} : vector<8x1xf32> -> vector<8x1xf32>
    %63 = vector.broadcast %62 : vector<8x1xf32> to vector<8x8xf32>
    %64 = arith.mulf %61, %63 : vector<8x8xf32>
    %c0_34 = arith.constant 0 : index
    %c16_35 = arith.constant 16 : index
    %65 = vector.load %arg14[%c0_34, %c16_35] : memref<8x32xf32, #tpu.memory_space<vmem>>, vector<8x8xf32>
    tpu.vector_store %arg14[%c0_34, %c16_35], %64 {strides = array<i32>} : memref<8x32xf32, #tpu.memory_space<vmem>>, vector<8x8xf32>,
    %66 = vector.extract_strided_slice %14 {offsets = [0, 24], sizes = [8, 8], strides = [1, 1]} : vector<8x32xbf16> to vector<8x8xbf16>
    %c0_36 = arith.constant 0 : index
    %c24 = arith.constant 24 : index
    %67 = vector.load %arg12[%c0_36, %c24] : memref<16x32xbf16, #tpu.memory_space<vmem>>, vector<16x8xbf16>
    %c0_37 = arith.constant 0 : index
    %c24_38 = arith.constant 24 : index
    %68 = vector.load %arg13[%c0_37, %c24_38] : memref<16x32xbf16, #tpu.memory_space<vmem>>, vector<16x8xbf16>
    %cst_39 = arith.constant dense<0.000000e+00> : vector<8x16xf32>
    %69 = tpu.matmul %66, %67, %cst_39 {dimension_numbers = #tpu.dot_dimension_numbers<[1], [1], [0], [0], [0, 0, 1, 0], [], []>} : vector<8x8xbf16>, vector<16x8xbf16>, vector<8x16xf32> -> vector<8x16xf32>
    %cst_40 = arith.constant dense<0xFF800000> : vector<8xf32>
    %70 = vector.multi_reduction <maximumf>, %69, %cst_40 [1] : vector<8x16xf32> to vector<8xf32>
    %71 = vector.shape_cast %70 : vector<8xf32> to vector<8x1xf32>
    %72 = vector.broadcast %71 : vector<8x1xf32> to vector<8x16xf32>
    %73 = arith.subf %69, %72 : vector<8x16xf32>
    %74 = math.exp %73 : vector<8x16xf32>
    %cst_41 = arith.constant dense<0.000000e+00> : vector<8xf32>
    %75 = vector.multi_reduction <add>, %74, %cst_41 [1] : vector<8x16xf32> to vector<8xf32>
    %76 = vector.shape_cast %75 : vector<8xf32> to vector<8x1xf32>
    %77 = arith.truncf %74 : vector<8x16xf32> to vector<8x16xbf16>
    %cst_42 = arith.constant dense<0.000000e+00> : vector<8x8xf32>
    %78 = tpu.matmul %77, %68, %cst_42 {dimension_numbers = #tpu.dot_dimension_numbers<[1], [0], [0], [1], [0, 0, 1, 1], [], []>} : vector<8x16xbf16>, vector<16x8xbf16>, vector<8x8xf32> -> vector<8x8xf32>
    %79 = tpu.reciprocal %76 {approx = true} : vector<8x1xf32> -> vector<8x1xf32>
    %80 = vector.broadcast %79 : vector<8x1xf32> to vector<8x8xf32>
    %81 = arith.mulf %78, %80 : vector<8x8xf32>
    %c0_43 = arith.constant 0 : index
    %c24_44 = arith.constant 24 : index
    %82 = vector.load %arg14[%c0_43, %c24_44] : memref<8x32xf32, #tpu.memory_space<vmem>>, vector<8x8xf32>
    tpu.vector_store %arg14[%c0_43, %c24_44], %81 {strides = array<i32>} : memref<8x32xf32, #tpu.memory_space<vmem>>, vector<8x8xf32>,
    %c0_45 = arith.constant 0 : index
    %c0_46 = arith.constant 0 : index
    %83 = vector.load %arg14[%c0_45, %c0_46] : memref<8x32xf32, #tpu.memory_space<vmem>>, vector<8x32xf32>
    %c0_47 = arith.constant 0 : index
    %c0_48 = arith.constant 0 : index
    %c0_49 = arith.constant 0 : index
    %84 = vector.load %arg11[%c0_47, %c0_48, %c0_49] : memref<1x8x32xf32, #tpu.memory_space<vmem>>, vector<1x8x32xf32>
    %85 = vector.shape_cast %84 : vector<1x8x32xf32> to vector<8x32xf32>
    %86 = vector.shape_cast %83 : vector<8x32xf32> to vector<1x8x32xf32>
    tpu.vector_store %arg11[%c0_47, %c0_48, %c0_49], %86 {strides = array<i32>} : memref<1x8x32xf32, #tpu.memory_space<vmem>>, vector<1x8x32xf32>,
    return
  }
  func.func @transform_0(%arg0: i32, %arg1: i32) -> (i32, i32, i32) {
    %c0_i32 = arith.constant 0 : i32
    %c0_i32_0 = arith.constant 0 : i32
    return %arg0, %arg1, %c0_i32 : i32, i32, i32
  }
  func.func @transform_1(%arg0: i32, %arg1: i32) -> (i32, i32, i32) {
    %c0_i32 = arith.constant 0 : i32
    %c0_i32_0 = arith.constant 0 : i32
    %c0_i32_1 = arith.constant 0 : i32
    return %arg0, %c0_i32, %c0_i32_0 : i32, i32, i32
  }
  func.func @transform_2(%arg0: i32, %arg1: i32) -> (i32, i32, i32) {
    %c0_i32 = arith.constant 0 : i32
    %c0_i32_0 = arith.constant 0 : i32
    %c0_i32_1 = arith.constant 0 : i32
    return %arg0, %c0_i32, %c0_i32_0 : i32, i32, i32
  }
  func.func @transform_3(%arg0: i32, %arg1: i32) -> (i32, i32) {
    %c0_i32 = arith.constant 0 : i32
    %c0_i32_0 = arith.constant 0 : i32
    %c0_i32_1 = arith.constant 0 : i32
    return %c0_i32, %c0_i32_0 : i32, i32
  }
  func.func @transform_4(%arg0: i32, %arg1: i32) -> (i32, i32) {
    %c0_i32 = arith.constant 0 : i32
    %c0_i32_0 = arith.constant 0 : i32
    %c0_i32_1 = arith.constant 0 : i32
    return %c0_i32, %c0_i32_0 : i32, i32
  }
  func.func @transform_5(%arg0: i32, %arg1: i32) -> (i32, i32) {
    %c0_i32 = arith.constant 0 : i32
    %c0_i32_0 = arith.constant 0 : i32
    %c0_i32_1 = arith.constant 0 : i32
    return %c0_i32, %c0_i32_0 : i32, i32
  }
  func.func @transform_6(%arg0: i32, %arg1: i32) -> (i32, i32) {
    %c0_i32 = arith.constant 0 : i32
    %c0_i32_0 = arith.constant 0 : i32
    %c0_i32_1 = arith.constant 0 : i32
    return %c0_i32, %c0_i32_0 : i32, i32
  }
  func.func @transform_7(%arg0: i32, %arg1: i32) -> (i32, i32) {
    %c0_i32 = arith.constant 0 : i32
    %c0_i32_0 = arith.constant 0 : i32
    %c0_i32_1 = arith.constant 0 : i32
    return %c0_i32, %c0_i32_0 : i32, i32
  }
  func.func @transform_8(%arg0: i32, %arg1: i32) -> (i32, i32) {
    %c0_i32 = arith.constant 0 : i32
    %c0_i32_0 = arith.constant 0 : i32
    %c0_i32_1 = arith.constant 0 : i32
    return %c0_i32, %c0_i32_0 : i32, i32
  }
  func.func @transform_9(%arg0: i32, %arg1: i32) -> (i32, i32, i32) {
    %c0_i32 = arith.constant 0 : i32
    %c0_i32_0 = arith.constant 0 : i32
    return %arg0, %arg1, %c0_i32 : i32, i32, i32
  }
}

</mosaic_0001>

<llo_original>
// kernel: tpu_custom_call.1
$region0: #{tpu_custom_call.1}
  #allocation0 [shape = 'u32[]', space=smem, size = 0x4, offset = 0x4, fixed_abs, tag = 'smem constant byte address 0x4 - core index']
  #allocation1 [shape = 'u32[144,128]{1,0:T(1,128)}', space=vmem, size = 0x12000, scoped, tag = 'internal scratch']
  #allocation2 [shape = 'bf16[16,32]{1,0:T(16,128)(2,1)}', space=vmem, size = 0x1000, scoped, tag = 'scratch operand']
  #allocation3 [shape = 'bf16[16,32]{1,0:T(16,128)(2,1)}', space=vmem, size = 0x1000, scoped, tag = 'scratch operand']
  #allocation4 [shape = 'f32[8,32]{1,0:T(8,128)}', space=vmem, size = 0x1000, scoped, tag = 'scratch operand']
  %s0 = inlined_call_operand.hbm [shape: bf16[2,8,32], index: 0, kind: input, shape index: {}]
  %s1 = inlined_call_operand.hbm [shape: bf16[2,16,32], index: 1, kind: input, shape index: {}]
  %s2 = inlined_call_operand.hbm [shape: bf16[2,16,32], index: 2, kind: input, shape index: {}]
  %s3 = inlined_call_operand.hbm [shape: bf16[32,32], index: 3, kind: input, shape index: {}]
  %s4 = inlined_call_operand.vmem [shape: f32[1,32], index: 4, kind: input, shape index: {}]
  %s5 = inlined_call_operand.vmem [shape: bf16[32,32], index: 5, kind: input, shape index: {}]
  %s6 = inlined_call_operand.vmem [shape: f32[1,32], index: 6, kind: input, shape index: {}]
  %s7 = inlined_call_operand.hbm [shape: bf16[32,32], index: 7, kind: input, shape index: {}]
  %s8 = inlined_call_operand.vmem [shape: f32[1,32], index: 8, kind: input, shape index: {}]
  %s9 = inlined_call_operand.hbm [shape: f32[2,8,32], index: 9, kind: output, shape index: {}]
  %s10 = sld [smem:[#allocation0]]
  $region93: #{tpu_custom_call.1} parent=0
    _
  %s12 = ssub.s32 1, %s10
  %s13 = scalar_select 0, %s12, %s10
  $region1: #{tpu_custom_call.1} parent=0
    #allocation5 [shape = 'u8[4096]{0}', space=vmem, size = 0x1000, scoped, tag = 'input window, operand 0']
    #allocation6 [shape = 's32[2]{0}', space=sflag, size = 0x8, scoped, tag = 'scoped memory for tpu_custom_call.1']
    #allocation7 [shape = 's32[2]{0}', space=sflag, size = 0x8, scoped, tag = 'scoped memory for tpu_custom_call.1']
    #allocation8 [shape = 'u8[8192]{0}', space=vmem, size = 0x2000, scoped, tag = 'input window, operand 1']
    #allocation9 [shape = 's32[2]{0}', space=sflag, size = 0x8, scoped, tag = 'scoped memory for tpu_custom_call.1']
    #allocation10 [shape = 'u8[8192]{0}', space=vmem, size = 0x2000, scoped, tag = 'input window, operand 2']
    #allocation11 [shape = 'u8[8192]{0}', space=vmem, size = 0x2000, scoped, tag = 'input window, operand 3, single buffered']
    #allocation12 [shape = 's32[1]{0}', space=sflag, size = 0x4, scoped, tag = 'scoped memory for tpu_custom_call.1']
    #allocation13 [shape = 'u8[8192]{0}', space=vmem, size = 0x2000, scoped, tag = 'input window, operand 7, single buffered']
    #allocation14 [shape = 'u8[8192]{0}', space=vmem, size = 0x2000, scoped, tag = 'output window, operand 0']
    %14 = vsyncpa [#allocation6], 0
    %s15 = scalar_lea.sflag [#allocation6], 1
    %16 = vsyncpa %s15, 0
    %17 = vsyncpa [#allocation9], 0
    %s18 = scalar_lea.sflag [#allocation9], 1
    %19 = vsyncpa %s18, 0
    %20 = vsyncpa [#allocation12], 0
    %21 = vsyncpa [#allocation7], 0
    %s22 = scalar_lea.sflag [#allocation7], 1
    %23 = vsyncpa %s22, 0
    loop: start=0, step=1, limit=4
    $region2: #{tpu_custom_call.1} parent=1 // loop_pre_header
      _
    $region3: #{tpu_custom_call.1} parent=1 // loop_header
      %s25 = sphi 0, %s29
      %p26 = scmp.ge.s32.totalorder %s25, 4
      %s32 = sphi 0, %s44
      %s33 = sphi 0, %s40
      %s34 = sphi 0, %s32
      %s35 = sphi 0, %s33
      %s36 = sphi 0, %s34
      %s37 = sphi 0, %s35
      %s49 = sphi 0, %s51
      %s52 = sphi 0, %s49
      %s53 = sphi 0, %s52
      %s69 = sphi 0, %s53
      %s75 = sphi 0, %s77
      %s78 = sphi 0, %s75
      %s79 = sphi 0, %s78
      %s95 = sphi 0, %s79
      %s101 = sphi 0, %s103
      %s104 = sphi 0, %s101
      %s105 = sphi 0, %s104
      %s121 = sphi 0, %s105
      %s125 = sphi 0, %s125
      %s127 = sphi 0, %s125
      %s128 = sphi 0, %s127
      %s142 = sphi 0, %s128
      %s146 = sphi 0, %s146
      %s148 = sphi 0, %s146
      %s149 = sphi 0, %s148
      %s163 = sphi 0, %s149
      %s167 = sphi 0, %s167
      %s169 = sphi 0, %s167
      %s170 = sphi 0, %s169
      %s184 = sphi 0, %s170
      %s188 = sphi 0, %s188
      %s190 = sphi 0, %s188
      %s191 = sphi 0, %s190
      %s205 = sphi 0, %s191
      %s209 = sphi 0, %s209
      %s211 = sphi 0, %s209
      %s212 = sphi 0, %s211
      %s226 = sphi 0, %s212
      %s230 = sphi 0, %s230
      %s232 = sphi 0, %s230
      %s233 = sphi 0, %s232
      %s247 = sphi 0, %s233
      %s255 = sphi 0, %s257
      %s258 = sphi 0, %s255
      %s259 = sphi 0, %s258
      %s275 = sphi 0, %s259
    $region4: #{tpu_custom_call.1} parent=1 // loop_header_branch
      %28 = sbr.rel (%p26) target = $region8
    $region5: #{tpu_custom_call.1} parent=1 // loop_body
      %s30 = ssub.s32 %s25, 1
      %s31 = ssub.s32 %s25, 2
      %s38 = sadd.s32 1, %s33
      %p39 = scmp.ge.s32.totalorder %s38, 1
      %s40 = scalar_select %p39, 0, %s38
      %s41 = sadd.s32 1, %s32
      %s42 = scalar_select %p39, %s41, %s32
      %p43 = scmp.ge.s32.totalorder %s42, 2
      %s44 = scalar_select %p43, 0, %s42
      %s45 = ssub.s32 %s32, %s44
      %s46 = ssub.s32 %s33, %s40
      %s47 = sor.u32 %s45, %s46
      %p48 = scmp.eq.s32.totalorder %s47, 0
      %s50 = sadd.s32 %s49, 1
      %s51 = scalar_select %p48, %s49, %s50
      %p54 = pneg %p48
      %p55 = scmp.eq.s32.totalorder %s25, 1
      %p56 = por %p54, %p55
      %p57 = scmp.ne.s32.totalorder %s49, %s52
      %p58 = scmp.eq.s32.totalorder %s25, 0
      %p59 = por %p57, %p58
      %p60 = scmp.ne.s32.totalorder %s49, %s52
      %p61 = scmp.eq.s32.totalorder %s30, 1
      %p62 = por %p60, %p61
      %p63 = scmp.ne.s32.totalorder %s52, %s53
      %p64 = scmp.eq.s32.totalorder %s30, 0
      %p65 = por %p63, %p64
      %p66 = scmp.ne.s32.totalorder %s52, %s53
      %p67 = scmp.eq.s32.totalorder %s31, 1
      %p68 = por %p66, %p67
      %p70 = scmp.ne.s32.totalorder %s53, %s69
      %p71 = scmp.eq.s32.totalorder %s31, 0
      %p72 = por %p70, %p71
      %s73 = ssub.s32 %s32, %s44
      %p74 = scmp.eq.s32.totalorder %s73, 0
      %s76 = sadd.s32 %s75, 1
      %s77 = scalar_select %p74, %s75, %s76
      %p80 = pneg %p74
      %p81 = scmp.eq.s32.totalorder %s25, 1
      %p82 = por %p80, %p81
      %p83 = scmp.ne.s32.totalorder %s75, %s78
      %p84 = scmp.eq.s32.totalorder %s25, 0
      %p85 = por %p83, %p84
      %p86 = scmp.ne.s32.totalorder %s75, %s78
      %p87 = scmp.eq.s32.totalorder %s30, 1
      %p88 = por %p86, %p87
      %p89 = scmp.ne.s32.totalorder %s78, %s79
      %p90 = scmp.eq.s32.totalorder %s30, 0
      %p91 = por %p89, %p90
      %p92 = scmp.ne.s32.totalorder %s78, %s79
      %p93 = scmp.eq.s32.totalorder %s31, 1
      %p94 = por %p92, %p93
      %p96 = scmp.ne.s32.totalorder %s79, %s95
      %p97 = scmp.eq.s32.totalorder %s31, 0
      %p98 = por %p96, %p97
      %s99 = ssub.s32 %s32, %s44
      %p100 = scmp.eq.s32.totalorder %s99, 0
      %s102 = sadd.s32 %s101, 1
      %s103 = scalar_select %p100, %s101, %s102
      %p106 = pneg %p100
      %p107 = scmp.eq.s32.totalorder %s25, 1
      %p108 = por %p106, %p107
      %p109 = scmp.ne.s32.totalorder %s101, %s104
      %p110 = scmp.eq.s32.totalorder %s25, 0
      %p111 = por %p109, %p110
      %p112 = scmp.ne.s32.totalorder %s101, %s104
      %p113 = scmp.eq.s32.totalorder %s30, 1
      %p114 = por %p112, %p113
      %p115 = scmp.ne.s32.totalorder %s104, %s105
      %p116 = scmp.eq.s32.totalorder %s30, 0
      %p117 = por %p115, %p116
      %p118 = scmp.ne.s32.totalorder %s104, %s105
      %p119 = scmp.eq.s32.totalorder %s31, 1
      %p120 = por %p118, %p119
      %p122 = scmp.ne.s32.totalorder %s105, %s121
      %p123 = scmp.eq.s32.totalorder %s31, 0
      %p124 = por %p122, %p123
      %s126 = sadd.s32 %s125, 1
      %p129 = scmp.eq.s32.totalorder %s25, 1
      %p130 = scmp.ne.s32.totalorder %s125, %s127
      %p131 = scmp.eq.s32.totalorder %s25, 0
      %p132 = por %p130, %p131
      %p133 = scmp.ne.s32.totalorder %s125, %s127
      %p134 = scmp.eq.s32.totalorder %s30, 1
      %p135 = por %p133, %p134
      %p136 = scmp.ne.s32.totalorder %s127, %s128
      %p137 = scmp.eq.s32.totalorder %s30, 0
      %p138 = por %p136, %p137
      %p139 = scmp.ne.s32.totalorder %s127, %s128
      %p140 = scmp.eq.s32.totalorder %s31, 1
      %p141 = por %p139, %p140
      %p143 = scmp.ne.s32.totalorder %s128, %s142
      %p144 = scmp.eq.s32.totalorder %s31, 0
      %p145 = por %p143, %p144
      %s147 = sadd.s32 %s146, 1
      %p150 = scmp.eq.s32.totalorder %s25, 1
      %p151 = scmp.ne.s32.totalorder %s146, %s148
      %p152 = scmp.eq.s32.totalorder %s25, 0
      %p153 = por %p151, %p152
      %p154 = scmp.ne.s32.totalorder %s146, %s148
      %p155 = scmp.eq.s32.totalorder %s30, 1
      %p156 = por %p154, %p155
      %p157 = scmp.ne.s32.totalorder %s148, %s149
      %p158 = scmp.eq.s32.totalorder %s30, 0
      %p159 = por %p157, %p158
      %p160 = scmp.ne.s32.totalorder %s148, %s149
      %p161 = scmp.eq.s32.totalorder %s31, 1
      %p162 = por %p160, %p161
      %p164 = scmp.ne.s32.totalorder %s149, %s163
      %p165 = scmp.eq.s32.totalorder %s31, 0
      %p166 = por %p164, %p165
      %s168 = sadd.s32 %s167, 1
      %p171 = scmp.eq.s32.totalorder %s25, 1
      %p172 = scmp.ne.s32.totalorder %s167, %s169
      %p173 = scmp.eq.s32.totalorder %s25, 0
      %p174 = por %p172, %p173
      %p175 = scmp.ne.s32.totalorder %s167, %s169
      %p176 = scmp.eq.s32.totalorder %s30, 1
      %p177 = por %p175, %p176
      %p178 = scmp.ne.s32.totalorder %s169, %s170
      %p179 = scmp.eq.s32.totalorder %s30, 0
      %p180 = por %p178, %p179
      %p181 = scmp.ne.s32.totalorder %s169, %s170
      %p182 = scmp.eq.s32.totalorder %s31, 1
      %p183 = por %p181, %p182
      %p185 = scmp.ne.s32.totalorder %s170, %s184
      %p186 = scmp.eq.s32.totalorder %s31, 0
      %p187 = por %p185, %p186
      %s189 = sadd.s32 %s188, 1
      %p192 = scmp.eq.s32.totalorder %s25, 1
      %p193 = scmp.ne.s32.totalorder %s188, %s190
      %p194 = scmp.eq.s32.totalorder %s25, 0
      %p195 = por %p193, %p194
      %p196 = scmp.ne.s32.totalorder %s188, %s190
      %p197 = scmp.eq.s32.totalorder %s30, 1
      %p198 = por %p196, %p197
      %p199 = scmp.ne.s32.totalorder %s190, %s191
      %p200 = scmp.eq.s32.totalorder %s30, 0
      %p201 = por %p199, %p200
      %p202 = scmp.ne.s32.totalorder %s190, %s191
      %p203 = scmp.eq.s32.totalorder %s31, 1
      %p204 = por %p202, %p203
      %p206 = scmp.ne.s32.totalorder %s191, %s205
      %p207 = scmp.eq.s32.totalorder %s31, 0
      %p208 = por %p206, %p207
      %s210 = sadd.s32 %s209, 1
      %p213 = scmp.eq.s32.totalorder %s25, 1
      %p214 = scmp.ne.s32.totalorder %s209, %s211
      %p215 = scmp.eq.s32.totalorder %s25, 0
      %p216 = por %p214, %p215
      %p217 = scmp.ne.s32.totalorder %s209, %s211
      %p218 = scmp.eq.s32.totalorder %s30, 1
      %p219 = por %p217, %p218
      %p220 = scmp.ne.s32.totalorder %s211, %s212
      %p221 = scmp.eq.s32.totalorder %s30, 0
      %p222 = por %p220, %p221
      %p223 = scmp.ne.s32.totalorder %s211, %s212
      %p224 = scmp.eq.s32.totalorder %s31, 1
      %p225 = por %p223, %p224
      %p227 = scmp.ne.s32.totalorder %s212, %s226
      %p228 = scmp.eq.s32.totalorder %s31, 0
      %p229 = por %p227, %p228
      %s231 = sadd.s32 %s230, 1
      %p234 = scmp.eq.s32.totalorder %s25, 1
      %p235 = scmp.ne.s32.totalorder %s230, %s232
      %p236 = scmp.eq.s32.totalorder %s25, 0
      %p237 = por %p235, %p236
      %p238 = scmp.ne.s32.totalorder %s230, %s232
      %p239 = scmp.eq.s32.totalorder %s30, 1
      %p240 = por %p238, %p239
      %p241 = scmp.ne.s32.totalorder %s232, %s233
      %p242 = scmp.eq.s32.totalorder %s30, 0
      %p243 = por %p241, %p242
      %p244 = scmp.ne.s32.totalorder %s232, %s233
      %p245 = scmp.eq.s32.totalorder %s31, 1
      %p246 = por %p244, %p245
      %p248 = scmp.ne.s32.totalorder %s233, %s247
      %p249 = scmp.eq.s32.totalorder %s31, 0
      %p250 = por %p248, %p249
      %s251 = ssub.s32 %s32, %s44
      %s252 = ssub.s32 %s33, %s40
      %s253 = sor.u32 %s251, %s252
      %p254 = scmp.eq.s32.totalorder %s253, 0
      %s256 = sadd.s32 %s255, 1
      %s257 = scalar_select %p254, %s255, %s256
      %p260 = pneg %p254
      %p261 = scmp.eq.s32.totalorder %s25, 1
      %p262 = por %p260, %p261
      %p263 = scmp.ne.s32.totalorder %s255, %s258
      %p264 = scmp.eq.s32.totalorder %s25, 0
      %p265 = por %p263, %p264
      %p266 = scmp.ne.s32.totalorder %s255, %s258
      %p267 = scmp.eq.s32.totalorder %s30, 1
      %p268 = por %p266, %p267
      %p269 = scmp.ne.s32.totalorder %s258, %s259
      %p270 = scmp.eq.s32.totalorder %s30, 0
      %p271 = por %p269, %p270
      %p272 = scmp.ne.s32.totalorder %s258, %s259
      %p273 = scmp.eq.s32.totalorder %s31, 1
      %p274 = por %p272, %p273
      %p276 = scmp.ne.s32.totalorder %s259, %s275
      %p277 = scmp.eq.s32.totalorder %s31, 0
      %p278 = por %p276, %p277
      %p279 = scmp.le.s32.totalorder 1, %s25
      %p280 = scmp.lt.s32.totalorder %s25, 3
      %p281 = pnand %p279, %p280
      %p282 = pneg %p281
      // Predicated region
      $region9: #{tpu_custom_call.1} parent=5 // pred_check
        _
      $region10: #{tpu_custom_call.1} parent=5 // pred_check_branch
        %284 = sbr.rel (%p281) target = $region12
      $region11: #{tpu_custom_call.1} parent=5 // pred_region
        %s285 = ssub.s32 %s25, 1
        // Predicated region
        $region13: #{tpu_custom_call.1} parent=11 // pred_check
          %p286 = pneg %p138
        $region14: #{tpu_custom_call.1} parent=11 // pred_check_branch
          %288 = sbr.rel (%p286) target = $region16
        $region15: #{tpu_custom_call.1} parent=11 // pred_region
          %s290 = ssub.s32 256, 256
          %291 = vsyncadd [#allocation12], %s290
          %s292 = sshll.u32 [#allocation11], 4
          %s293 = int_to_ptr.vmem [resolvable:$true] %s292
          %298 = dma.hbm_to_vmem [thread:$0]  %s3, 256, %s293, [#allocation12], 64, 64, 4
        $region16: #{tpu_custom_call.1} parent=11 // pred_fallthru
          _
        // Predicated region
        $region17: #{tpu_custom_call.1} parent=11 // pred_check
          %p299 = pneg %p159
        $region18: #{tpu_custom_call.1} parent=11 // pred_check_branch
          %301 = sbr.rel (%p299) target = $region20
        $region19: #{tpu_custom_call.1} parent=11 // pred_region
          _
        $region20: #{tpu_custom_call.1} parent=11 // pred_fallthru
          _
        // Predicated region
        $region21: #{tpu_custom_call.1} parent=11 // pred_check
          %p302 = pneg %p180
        $region22: #{tpu_custom_call.1} parent=11 // pred_check_branch
          %304 = sbr.rel (%p302) target = $region24
        $region23: #{tpu_custom_call.1} parent=11 // pred_region
          _
        $region24: #{tpu_custom_call.1} parent=11 // pred_fallthru
          _
        // Predicated region
        $region25: #{tpu_custom_call.1} parent=11 // pred_check
          %p305 = pneg %p201
        $region26: #{tpu_custom_call.1} parent=11 // pred_check_branch
          %307 = sbr.rel (%p305) target = $region28
        $region27: #{tpu_custom_call.1} parent=11 // pred_region
          _
        $region28: #{tpu_custom_call.1} parent=11 // pred_fallthru
          _
        // Predicated region
        $region29: #{tpu_custom_call.1} parent=11 // pred_check
          %p308 = pneg %p222
        $region30: #{tpu_custom_call.1} parent=11 // pred_check_branch
          %310 = sbr.rel (%p308) target = $region32
        $region31: #{tpu_custom_call.1} parent=11 // pred_region
          %s312 = ssub.s32 256, 256
          %313 = vsyncadd [#allocation12], %s312
          %s314 = sshll.u32 [#allocation13], 4
          %s315 = int_to_ptr.vmem [resolvable:$true] %s314
          %320 = dma.hbm_to_vmem [thread:$0]  %s7, 256, %s315, [#allocation12], 64, 64, 4
        $region32: #{tpu_custom_call.1} parent=11 // pred_fallthru
          _
        // Predicated region
        $region33: #{tpu_custom_call.1} parent=11 // pred_check
          %p321 = pneg %p243
        $region34: #{tpu_custom_call.1} parent=11 // pred_check_branch
          %323 = sbr.rel (%p321) target = $region36
        $region35: #{tpu_custom_call.1} parent=11 // pred_region
          _
        $region36: #{tpu_custom_call.1} parent=11 // pred_fallthru
          _
      $region12: #{tpu_custom_call.1} parent=5 // pred_fallthru
        _
      %p324 = scmp.lt.s32.totalorder %s25, 2
      // Predicated region
      $region37: #{tpu_custom_call.1} parent=5 // pred_check
        %p325 = pneg %p324
      $region38: #{tpu_custom_call.1} parent=5 // pred_check_branch
        %327 = sbr.rel (%p325) target = $region40
      $region39: #{tpu_custom_call.1} parent=5 // pred_region
        // Predicated region
        $region41: #{tpu_custom_call.1} parent=39 // pred_check
          %p328 = pneg %p59
        $region42: #{tpu_custom_call.1} parent=39 // pred_check_branch
          %330 = sbr.rel (%p328) target = $region44
        $region43: #{tpu_custom_call.1} parent=39 // pred_region
          %s331 = sand.u32 %s49, 1
          %s332 = scalar_lea.sflag [#allocation6], %s331
          %s333 = sand.u32 %s49, 1
          %s334 = smul.addr %s333, 4
          %s335 = scalar_lea.vmem [#allocation5], %s334
          %s337 = ssub.s32 64, 64
          %338 = vsyncadd %s332, %s337
          %s339 = sadd.s32 %s33, %s32
          %s340 = smul.addr %s339, 64
          %s341 = scalar_lea.hbm %s0, %s340
          %s343 = sshll.u32 %s335, 4
          %s344 = int_to_ptr.vmem [resolvable:$true] %s343
          %346 = dma.hbm_to_vmem [thread:$0]  %s341, 64, %s344, %s332
        $region44: #{tpu_custom_call.1} parent=39 // pred_fallthru
          _
        // Predicated region
        $region45: #{tpu_custom_call.1} parent=39 // pred_check
          %p347 = pneg %p85
        $region46: #{tpu_custom_call.1} parent=39 // pred_check_branch
          %349 = sbr.rel (%p347) target = $region48
        $region47: #{tpu_custom_call.1} parent=39 // pred_region
          %s350 = sand.u32 %s25, 1
          %s351 = scalar_lea.sflag [#allocation9], %s350
          %s352 = sand.u32 %s75, 1
          %s353 = smul.addr %s352, 8
          %s354 = scalar_lea.vmem [#allocation8], %s353
          %s356 = ssub.s32 128, 128
          %357 = vsyncadd %s351, %s356
          %s358 = smul.addr %s32, 2
          %s359 = smul.addr %s358, 64
          %s360 = scalar_lea.hbm %s1, %s359
          %s361 = sshll.u32 %s354, 4
          %s362 = int_to_ptr.vmem [resolvable:$true] %s361
          %367 = dma.hbm_to_vmem [thread:$0]  %s360, 128, %s362, %s351, 64, 64, 4
        $region48: #{tpu_custom_call.1} parent=39 // pred_fallthru
          _
        // Predicated region
        $region49: #{tpu_custom_call.1} parent=39 // pred_check
          %p368 = pneg %p111
        $region50: #{tpu_custom_call.1} parent=39 // pred_check_branch
          %370 = sbr.rel (%p368) target = $region52
        $region51: #{tpu_custom_call.1} parent=39 // pred_region
          %s371 = sand.u32 %s25, 1
          %s372 = scalar_lea.sflag [#allocation9], %s371
          %s373 = sand.u32 %s101, 1
          %s374 = smul.addr %s373, 8
          %s375 = scalar_lea.vmem [#allocation10], %s374
          %s377 = ssub.s32 128, 128
          %378 = vsyncadd %s372, %s377
          %s379 = smul.addr %s32, 2
          %s380 = smul.addr %s379, 64
          %s381 = scalar_lea.hbm %s2, %s380
          %s382 = sshll.u32 %s375, 4
          %s383 = int_to_ptr.vmem [resolvable:$true] %s382
          %388 = dma.hbm_to_vmem [thread:$0]  %s381, 128, %s383, %s372, 64, 64, 4
        $region52: #{tpu_custom_call.1} parent=39 // pred_fallthru
          _
      $region40: #{tpu_custom_call.1} parent=5 // pred_fallthru
        _
      %p389 = scmp.le.s32.totalorder 1, %s25
      %p390 = scmp.lt.s32.totalorder %s25, 3
      %p391 = pnand %p389, %p390
      %p392 = pneg %p391
      // Predicated region
      $region53: #{tpu_custom_call.1} parent=5 // pred_check
        _
      $region54: #{tpu_custom_call.1} parent=5 // pred_check_branch
        %394 = sbr.rel (%p391) target = $region56
      $region55: #{tpu_custom_call.1} parent=5 // pred_region
        %s395 = ssub.s32 %s25, 1
        %s396 = sand.u32 %s52, 1
        %s397 = scalar_lea.sflag [#allocation6], %s396
        %s398 = sand.u32 %s52, 1
        %s399 = smul.addr %s398, 4
        %s400 = scalar_lea.vmem [#allocation5], %s399
        // Predicated region
        $region57: #{tpu_custom_call.1} parent=55 // pred_check
          %p401 = pneg %p65
        $region58: #{tpu_custom_call.1} parent=55 // pred_check_branch
          %403 = sbr.rel (%p401) target = $region60
        $region59: #{tpu_custom_call.1} parent=55 // pred_region
          %404 = dma.done %s397, 64
        $region60: #{tpu_custom_call.1} parent=55 // pred_fallthru
          _
        %s405 = sand.u32 %s30, 1
        %s406 = scalar_lea.sflag [#allocation9], %s405
        %s407 = sand.u32 %s78, 1
        %s408 = smul.addr %s407, 8
        %s409 = scalar_lea.vmem [#allocation8], %s408
        // Predicated region
        $region61: #{tpu_custom_call.1} parent=55 // pred_check
          %p410 = pneg %p91
        $region62: #{tpu_custom_call.1} parent=55 // pred_check_branch
          %412 = sbr.rel (%p410) target = $region64
        $region63: #{tpu_custom_call.1} parent=55 // pred_region
          %413 = dma.done %s406, 128
        $region64: #{tpu_custom_call.1} parent=55 // pred_fallthru
          _
        %s414 = sand.u32 %s30, 1
        %s415 = scalar_lea.sflag [#allocation9], %s414
        %s416 = sand.u32 %s104, 1
        %s417 = smul.addr %s416, 8
        %s418 = scalar_lea.vmem [#allocation10], %s417
        // Predicated region
        $region65: #{tpu_custom_call.1} parent=55 // pred_check
          %p419 = pneg %p117
        $region66: #{tpu_custom_call.1} parent=55 // pred_check_branch
          %421 = sbr.rel (%p419) target = $region68
        $region67: #{tpu_custom_call.1} parent=55 // pred_region
          %422 = dma.done %s415, 128
        $region68: #{tpu_custom_call.1} parent=55 // pred_fallthru
          _
        // Predicated region
        $region69: #{tpu_custom_call.1} parent=55 // pred_check
          %p423 = pneg %p138
        $region70: #{tpu_custom_call.1} parent=55 // pred_check_branch
          %425 = sbr.rel (%p423) target = $region72
        $region71: #{tpu_custom_call.1} parent=55 // pred_region
          %426 = dma.done [#allocation12], 256
        $region72: #{tpu_custom_call.1} parent=55 // pred_fallthru
          _
        // Predicated region
        $region73: #{tpu_custom_call.1} parent=55 // pred_check
          %p427 = pneg %p222
        $region74: #{tpu_custom_call.1} parent=55 // pred_check_branch
          %429 = sbr.rel (%p427) target = $region76
        $region75: #{tpu_custom_call.1} parent=55 // pred_region
          %430 = dma.done [#allocation12], 256
        $region76: #{tpu_custom_call.1} parent=55 // pred_fallthru
          _
        %s431 = sand.u32 %s52, 1
        %s432 = scalar_lea.sflag [#allocation6], %s431
        %s433 = sand.u32 %s52, 1
        %s434 = smul.addr %s433, 4
        %s435 = scalar_lea.vmem [#allocation5], %s434
        %p436 = pneg %p65
        %p437 = pneg %p62
        %s438 = sand.u32 %s30, 1
        %s439 = scalar_lea.sflag [#allocation9], %s438
        %s440 = sand.u32 %s78, 1
        %s441 = smul.addr %s440, 8
        %s442 = scalar_lea.vmem [#allocation8], %s441
        %p443 = pneg %p91
        %p444 = pneg %p88
        %s445 = sand.u32 %s30, 1
        %s446 = scalar_lea.sflag [#allocation9], %s445
        %s447 = sand.u32 %s104, 1
        %s448 = smul.addr %s447, 8
        %s449 = scalar_lea.vmem [#allocation10], %s448
        %p450 = pneg %p117
        %p451 = pneg %p114
        %p452 = pneg %p138
        %p453 = pneg %p135
        %p454 = pneg %p159
        %p455 = pneg %p156
        %p456 = pneg %p180
        %p457 = pneg %p177
        %p458 = pneg %p201
        %p459 = pneg %p198
        %p460 = pneg %p222
        %p461 = pneg %p219
        %p462 = pneg %p243
        %p463 = pneg %p240
        %p464 = pneg %p271
        %p465 = pneg %p268
        %s466 = sand.u32 %s258, 1
        %s467 = scalar_lea.sflag [#allocation7], %s466
        %s468 = sand.u32 %s258, 1
        %s469 = smul.addr %s468, 8
        %s470 = scalar_lea.vmem [#allocation14], %s469
        %p472 = scmp.eq.s32.totalorder %s35, 0
        // Predicated region
        $region77: #{tpu_custom_call.1} parent=55 // pred_check
          %p473 = pneg %p472
        $region78: #{tpu_custom_call.1} parent=55 // pred_check_branch
          %475 = sbr.rel (%p473) target = $region80
        $region79: #{tpu_custom_call.1} parent=55 // pred_region
          %v476 = vld [vmem:[%s409] sm:$0xf]
          %v477 = vld [vmem:[%s409 + $0x4] sm:$0xf]
          %v478 = vld [vmem:[%s5] sm:$0xf]
          %v479 = vld [vmem:[%s5 + $0x4] sm:$0xf]
          %v480 = vld [vmem:[%s5 + $0x8] sm:$0xf]
          %v481 = vld [vmem:[%s5 + $0xc] sm:$0xf]
          %v482 = vld [vmem:[%s6] sm:$0x1]
          %v484 = vlaneseq
          %v485 = vshrl.u32 %v484, 7
          %v486 = vsub.s32 0, %v485
          %v487 = vrot.slane %v482, %v486
          %v491 = vunpack.c.l.b16 %v476
          %v492 = vunpack.c.l.b16 %v477
          %v493 = vpack.c.b16 %v492, %v491
          %v498 = vunpack.c.l.b16 %v478
          %v499 = vunpack.c.l.b16 %v479
          %v500 = vunpack.c.l.b16 %v480
          %v501 = vunpack.c.l.b16 %v481
          %v502 = vpack.c.b16 %v499, %v498
          %v503 = vpack.c.b16 %v501, %v500
          %vm506 = vcmask 261120
          %v508 = vsel %vm506, %v493, 0
          %510 = vmatprep.subr.bf16.mxu0 0
          %511 = vmatpush1.bf16.msra.mxu0 %v502
          %512 = vmatprep.subr.bf16.mxu0 0
          %513 = vmatpush1.bf16.msra.mxu0 %v503
          %514 = vmatprep.subr.bf16.mxu0 0
          %515 = vmatpush1.bf16.msra.mxu0 0
          %516 = vmatprep.subr.bf16.mxu0 0
          %517 = vmatpush1.bf16.msra.mxu0 0
          %518 = vmatprep.subr.bf16.mxu0 0
          %519 = vmatpush1.bf16.msra.mxu0 0
          %520 = vmatprep.subr.bf16.mxu0 0
          %521 = vmatpush1.bf16.msra.mxu0 0
          %522 = vmatprep.subr.bf16.mxu0 0
          %523 = vmatpush1.bf16.msra.mxu0 0
          %524 = vmatprep.subr.bf16.mxu0 0
          %525 = vmatpush1.bf16.msra.mxu0 0
          %526 = vmatprep.subr.bf16.mxu0 0
          %527 = vmatpush1.bf16.msra.mxu0 0
          %528 = vmatprep.subr.bf16.mxu0 0
          %529 = vmatpush1.bf16.msra.mxu0 0
          %530 = vmatprep.subr.bf16.mxu0 0
          %531 = vmatpush1.bf16.msra.mxu0 0
          %532 = vmatprep.subr.bf16.mxu0 0
          %533 = vmatpush1.bf16.msra.mxu0 0
          %534 = vmatprep.subr.bf16.mxu0 0
          %535 = vmatpush1.bf16.msra.mxu0 0
          %536 = vmatprep.subr.bf16.mxu0 0
          %537 = vmatpush1.bf16.msra.mxu0 0
          %538 = vmatprep.subr.bf16.mxu0 0
          %539 = vmatpush1.bf16.msra.mxu0 0
          %540 = vmatprep.subr.bf16.mxu0 0
          %541 = vmatpush1.bf16.msra.mxu0 0
          %542 = vmatprep.mubr.bf16.mxu0 0
          %543 = vmatmul.mubr.bf16.gmra.mrb[0].mxu0 %v508
          %v544 = vpop.f32.mrb[0].mxu0
          %v545 = vadd.f32 %v487, %v544
          %v546 = vpop.f32.mrb[0].mxu0
          %v547 = vpop.f32.mrb[0].mxu0
          %v548 = vadd.f32 %v487, %v547
          %v549 = vpop.f32.mrb[0].mxu0
          %550 = vdwg.mxu0
          %v551 = vld [vmem:[%s418] sm:$0xf]
          %v552 = vld [vmem:[%s418 + $0x4] sm:$0xf]
          %v553 = vld [vmem:[#allocation13] sm:$0xf]
          %v554 = vld [vmem:[#allocation13 + $0x4] sm:$0xf]
          %v555 = vld [vmem:[#allocation13 + $0x8] sm:$0xf]
          %v556 = vld [vmem:[#allocation13 + $0xc] sm:$0xf]
          %v557 = vld [vmem:[%s8] sm:$0x1]
          %v559 = vlaneseq
          %v560 = vshrl.u32 %v559, 7
          %v561 = vsub.s32 0, %v560
          %v562 = vrot.slane %v557, %v561
          %v566 = vunpack.c.l.b16 %v551
          %v567 = vunpack.c.l.b16 %v552
          %v568 = vpack.c.b16 %v567, %v566
          %v573 = vunpack.c.l.b16 %v553
          %v574 = vunpack.c.l.b16 %v554
          %v575 = vunpack.c.l.b16 %v555
          %v576 = vunpack.c.l.b16 %v556
          %v577 = vpack.c.b16 %v574, %v573
          %v578 = vpack.c.b16 %v576, %v575
          %v582 = vsel %vm506, %v568, 0
          %584 = vmatprep.subr.bf16.mxu0 0
          %585 = vmatpush1.bf16.msra.mxu0 %v577
          %586 = vmatprep.subr.bf16.mxu0 0
          %587 = vmatpush1.bf16.msra.mxu0 %v578
          %588 = vmatprep.subr.bf16.mxu0 0
          %589 = vmatpush1.bf16.msra.mxu0 0
          %590 = vmatprep.subr.bf16.mxu0 0
          %591 = vmatpush1.bf16.msra.mxu0 0
          %592 = vmatprep.subr.bf16.mxu0 0
          %593 = vmatpush1.bf16.msra.mxu0 0
          %594 = vmatprep.subr.bf16.mxu0 0
          %595 = vmatpush1.bf16.msra.mxu0 0
          %596 = vmatprep.subr.bf16.mxu0 0
          %597 = vmatpush1.bf16.msra.mxu0 0
          %598 = vmatprep.subr.bf16.mxu0 0
          %599 = vmatpush1.bf16.msra.mxu0 0
          %600 = vmatprep.subr.bf16.mxu0 0
          %601 = vmatpush1.bf16.msra.mxu0 0
          %602 = vmatprep.subr.bf16.mxu0 0
          %603 = vmatpush1.bf16.msra.mxu0 0
          %604 = vmatprep.subr.bf16.mxu0 0
          %605 = vmatpush1.bf16.msra.mxu0 0
          %606 = vmatprep.subr.bf16.mxu0 0
          %607 = vmatpush1.bf16.msra.mxu0 0
          %608 = vmatprep.subr.bf16.mxu0 0
          %609 = vmatpush1.bf16.msra.mxu0 0
          %610 = vmatprep.subr.bf16.mxu0 0
          %611 = vmatpush1.bf16.msra.mxu0 0
          %612 = vmatprep.subr.bf16.mxu0 0
          %613 = vmatpush1.bf16.msra.mxu0 0
          %614 = vmatprep.subr.bf16.mxu0 0
          %615 = vmatpush1.bf16.msra.mxu0 0
          %616 = vmatprep.mubr.bf16.mxu0 0
          %617 = vmatmul.mubr.bf16.gmra.mrb[0].mxu0 %v582
          %v618 = vpop.f32.mrb[0].mxu0
          %v619 = vadd.f32 %v562, %v618
          %v620 = vpop.f32.mrb[0].mxu0
          %v621 = vpop.f32.mrb[0].mxu0
          %v622 = vadd.f32 %v562, %v621
          %v623 = vpop.f32.mrb[0].mxu0
          %624 = vdwg.mxu0
          %v625 = vpack.c.bf16 %v548, %v545
          %626 = vst.msk [vmem:[#allocation2] sm:$0xff] %vm506, %v625
          %v627 = vpack.c.bf16 %v622, %v619
          %628 = vst.msk [vmem:[#allocation3] sm:$0xff] %vm506, %v627
        $region80: #{tpu_custom_call.1} parent=55 // pred_fallthru
          _
        %v629 = vld [vmem:[%s400] sm:$0xf]
        %v630 = vld [vmem:[#allocation11] sm:$0xf]
        %v631 = vld [vmem:[#allocation11 + $0x4] sm:$0xf]
        %v632 = vld [vmem:[#allocation11 + $0x8] sm:$0xf]
        %v633 = vld [vmem:[#allocation11 + $0xc] sm:$0xf]
        %v634 = vld [vmem:[%s4] sm:$0x1]
        %v636 = vlaneseq
        %v637 = vshrl.u32 %v636, 7
        %v638 = vsub.s32 0, %v637
        %v639 = vrot.slane %v634, %v638
        %v645 = vunpack.c.l.b16 %v630
        %v646 = vunpack.c.l.b16 %v631
        %v647 = vunpack.c.l.b16 %v632
        %v648 = vunpack.c.l.b16 %v633
        %v649 = vpack.c.b16 %v646, %v645
        %v650 = vpack.c.b16 %v648, %v647
        %vm653 = vcmask 261120
        %v655 = vsel %vm653, %v629, 0
        %657 = vmatprep.subr.bf16.mxu0 0
        %658 = vmatpush1.bf16.msra.mxu0 %v649
        %659 = vmatprep.subr.bf16.mxu0 0
        %660 = vmatpush1.bf16.msra.mxu0 %v650
        %661 = vmatprep.subr.bf16.mxu0 0
        %662 = vmatpush1.bf16.msra.mxu0 0
        %663 = vmatprep.subr.bf16.mxu0 0
        %664 = vmatpush1.bf16.msra.mxu0 0
        %665 = vmatprep.subr.bf16.mxu0 0
        %666 = vmatpush1.bf16.msra.mxu0 0
        %667 = vmatprep.subr.bf16.mxu0 0
        %668 = vmatpush1.bf16.msra.mxu0 0
        %669 = vmatprep.subr.bf16.mxu0 0
        %670 = vmatpush1.bf16.msra.mxu0 0
        %671 = vmatprep.subr.bf16.mxu0 0
        %672 = vmatpush1.bf16.msra.mxu0 0
        %673 = vmatprep.subr.bf16.mxu0 0
        %674 = vmatpush1.bf16.msra.mxu0 0
        %675 = vmatprep.subr.bf16.mxu0 0
        %676 = vmatpush1.bf16.msra.mxu0 0
        %677 = vmatprep.subr.bf16.mxu0 0
        %678 = vmatpush1.bf16.msra.mxu0 0
        %679 = vmatprep.subr.bf16.mxu0 0
        %680 = vmatpush1.bf16.msra.mxu0 0
        %681 = vmatprep.subr.bf16.mxu0 0
        %682 = vmatpush1.bf16.msra.mxu0 0
        %683 = vmatprep.subr.bf16.mxu0 0
        %684 = vmatpush1.bf16.msra.mxu0 0
        %685 = vmatprep.subr.bf16.mxu0 0
        %686 = vmatpush1.bf16.msra.mxu0 0
        %687 = vmatprep.subr.bf16.mxu0 0
        %688 = vmatpush1.bf16.msra.mxu0 0
        %689 = vmatprep.mubr.bf16.mxu0 0
        %690 = vmatmul.mubr.bf16.gmra.mrb[0].mxu0 %v655
        %v691 = vpop.f32.mrb[0].mxu0
        %v692 = vadd.f32 %v639, %v691
        %v693 = vpop.f32.mrb[0].mxu0
        %v694 = vpop.f32.mrb[0].mxu0
        %v695 = vpop.f32.mrb[0].mxu0
        %696 = vdwg.mxu0
        %v697 = vmul.f32 %v692, 0.35355338
        %v698 = vpack.c.bf16 %v697, %v697
        %v699 = vld [vmem:[#allocation2] sm:$0xff]
        %v700 = vld [vmem:[#allocation3] sm:$0xff]
        %vm701 = vcmask 64512
        %v703 = vsel %vm701, %v698, 0
        %v706 = vsel %vm701, %v699, 0
        %708 = vmatprep.subr.bf16.mxu0 0
        %709 = vmatpush1.bf16.xpose.msra.mxu0 %v706
        %710 = vmatprep.subr.bf16.mxu0 0
        %711 = vmatpush1.bf16.xpose.msra.mxu0 0
        %712 = vmatprep.subr.bf16.mxu0 0
        %713 = vmatpush1.bf16.xpose.msra.mxu0 0
        %714 = vmatprep.subr.bf16.mxu0 0
        %715 = vmatpush1.bf16.xpose.msra.mxu0 0
        %716 = vmatprep.subr.bf16.mxu0 0
        %717 = vmatpush1.bf16.xpose.msra.mxu0 0
        %718 = vmatprep.subr.bf16.mxu0 0
        %719 = vmatpush1.bf16.xpose.msra.mxu0 0
        %720 = vmatprep.subr.bf16.mxu0 0
        %721 = vmatpush1.bf16.xpose.msra.mxu0 0
        %722 = vmatprep.subr.bf16.mxu0 0
        %723 = vmatpush1.bf16.xpose.msra.mxu0 0
        %724 = vmatprep.subr.bf16.mxu0 0
        %725 = vmatpush1.bf16.xpose.msra.mxu0 0
        %726 = vmatprep.subr.bf16.mxu0 0
        %727 = vmatpush1.bf16.xpose.msra.mxu0 0
        %728 = vmatprep.subr.bf16.mxu0 0
        %729 = vmatpush1.bf16.xpose.msra.mxu0 0
        %730 = vmatprep.subr.bf16.mxu0 0
        %731 = vmatpush1.bf16.xpose.msra.mxu0 0
        %732 = vmatprep.subr.bf16.mxu0 0
        %733 = vmatpush1.bf16.xpose.msra.mxu0 0
        %734 = vmatprep.subr.bf16.mxu0 0
        %735 = vmatpush1.bf16.xpose.msra.mxu0 0
        %736 = vmatprep.subr.bf16.mxu0 0
        %737 = vmatpush1.bf16.xpose.msra.mxu0 0
        %738 = vmatprep.subr.bf16.mxu0 0
        %739 = vmatpush1.bf16.xpose.msra.mxu0 0
        %740 = vmatprep.mubr.bf16.mxu0 0
        %741 = vmatmul.mubr.bf16.gmra.mrb[0].mxu0 %v703
        %v742 = vpop.f32.mrb[0].mxu0
        %v743 = vadd.f32 0.0, %v742
        %v744 = vpop.f32.mrb[0].mxu0
        %v745 = vpop.f32.mrb[0].mxu0
        %v746 = vpop.f32.mrb[0].mxu0
        %747 = vdwg.mxu0
        %vm748 = vcmask 130048
        %v749 = vsel %vm748, %v743, -inf
        %750 = vmax.xlane.f32.xlu0 %v749
        %v751 = vpop.xlane.xlu0 %750
        %v752 = vsub.f32 %v743, %v751
        %v753 = vmul.f32 %v752, 1.442695
        %v754 = vpow.pop %v753
        %v755 = vsel %vm748, %v754, 0.0
        %756 = vadd.xlane.f32.xlu0 %v755
        %v757 = vpop.xlane.xlu0 %756
        %v758 = vpack.c.bf16 %v754, %v754
        %v760 = vsel %vm748, %v758, 0
        %762 = vmatprep.subr.bf16.mxu0 0
        %763 = vmatpush1.bf16.msra.mxu0 %v700
        %764 = vmatprep.subr.bf16.mxu0 0
        %765 = vmatpush1.bf16.msra.mxu0 0
        %766 = vmatprep.subr.bf16.mxu0 0
        %767 = vmatpush1.bf16.msra.mxu0 0
        %768 = vmatprep.subr.bf16.mxu0 0
        %769 = vmatpush1.bf16.msra.mxu0 0
        %770 = vmatprep.subr.bf16.mxu0 0
        %771 = vmatpush1.bf16.msra.mxu0 0
        %772 = vmatprep.subr.bf16.mxu0 0
        %773 = vmatpush1.bf16.msra.mxu0 0
        %774 = vmatprep.subr.bf16.mxu0 0
        %775 = vmatpush1.bf16.msra.mxu0 0
        %776 = vmatprep.subr.bf16.mxu0 0
        %777 = vmatpush1.bf16.msra.mxu0 0
        %778 = vmatprep.subr.bf16.mxu0 0
        %779 = vmatpush1.bf16.msra.mxu0 0
        %780 = vmatprep.subr.bf16.mxu0 0
        %781 = vmatpush1.bf16.msra.mxu0 0
        %782 = vmatprep.subr.bf16.mxu0 0
        %783 = vmatpush1.bf16.msra.mxu0 0
        %784 = vmatprep.subr.bf16.mxu0 0
        %785 = vmatpush1.bf16.msra.mxu0 0
        %786 = vmatprep.subr.bf16.mxu0 0
        %787 = vmatpush1.bf16.msra.mxu0 0
        %788 = vmatprep.subr.bf16.mxu0 0
        %789 = vmatpush1.bf16.msra.mxu0 0
        %790 = vmatprep.subr.bf16.mxu0 0
        %791 = vmatpush1.bf16.msra.mxu0 0
        %792 = vmatprep.subr.bf16.mxu0 0
        %793 = vmatpush1.bf16.msra.mxu0 0
        %794 = vmatprep.mubr.bf16.mxu0 0
        %795 = vmatmul.mubr.bf16.gmra.mrb[0].mxu0 %v760
        %v796 = vpop.f32.mrb[0].mxu0
        %v797 = vadd.f32 0.0, %v796
        %v798 = vpop.f32.mrb[0].mxu0
        %v799 = vpop.f32.mrb[0].mxu0
        %v800 = vpop.f32.mrb[0].mxu0
        %801 = vdwg.mxu0
        %v802 = vrcp.pop %v757
        %v803 = vmul.f32 %v797, %v802
        %804 = vst.msk [vmem:[#allocation4] sm:$0xff] %vm701, %v803
        %v805 = vld [vmem:[#allocation2] sm:$0xff]
        %v806 = vld [vmem:[#allocation3] sm:$0xff]
        %808 = vrot.lane.b32.xlu0 %v698, 120
        %v809 = vpop.permute.xlu0 %808
        %811 = vrot.lane.b32.xlu0 %v805, 120
        %v812 = vpop.permute.xlu0 %811
        %v814 = vsel %vm701, %v809, 0
        %v817 = vsel %vm701, %v812, 0
        %819 = vmatprep.subr.bf16.mxu0 0
        %820 = vmatpush1.bf16.xpose.msra.mxu0 %v817
        %821 = vmatprep.subr.bf16.mxu0 0
        %822 = vmatpush1.bf16.xpose.msra.mxu0 0
        %823 = vmatprep.subr.bf16.mxu0 0
        %824 = vmatpush1.bf16.xpose.msra.mxu0 0
        %825 = vmatprep.subr.bf16.mxu0 0
        %826 = vmatpush1.bf16.xpose.msra.mxu0 0
        %827 = vmatprep.subr.bf16.mxu0 0
        %828 = vmatpush1.bf16.xpose.msra.mxu0 0
        %829 = vmatprep.subr.bf16.mxu0 0
        %830 = vmatpush1.bf16.xpose.msra.mxu0 0
        %831 = vmatprep.subr.bf16.mxu0 0
        %832 = vmatpush1.bf16.xpose.msra.mxu0 0
        %833 = vmatprep.subr.bf16.mxu0 0
        %834 = vmatpush1.bf16.xpose.msra.mxu0 0
        %835 = vmatprep.subr.bf16.mxu0 0
        %836 = vmatpush1.bf16.xpose.msra.mxu0 0
        %837 = vmatprep.subr.bf16.mxu0 0
        %838 = vmatpush1.bf16.xpose.msra.mxu0 0
        %839 = vmatprep.subr.bf16.mxu0 0
        %840 = vmatpush1.bf16.xpose.msra.mxu0 0
        %841 = vmatprep.subr.bf16.mxu0 0
        %842 = vmatpush1.bf16.xpose.msra.mxu0 0
        %843 = vmatprep.subr.bf16.mxu0 0
        %844 = vmatpush1.bf16.xpose.msra.mxu0 0
        %845 = vmatprep.subr.bf16.mxu0 0
        %846 = vmatpush1.bf16.xpose.msra.mxu0 0
        %847 = vmatprep.subr.bf16.mxu0 0
        %848 = vmatpush1.bf16.xpose.msra.mxu0 0
        %849 = vmatprep.subr.bf16.mxu0 0
        %850 = vmatpush1.bf16.xpose.msra.mxu0 0
        %851 = vmatprep.mubr.bf16.mxu0 0
        %852 = vmatmul.mubr.bf16.gmra.mrb[0].mxu0 %v814
        %v853 = vpop.f32.mrb[0].mxu0
        %v854 = vadd.f32 0.0, %v853
        %v855 = vpop.f32.mrb[0].mxu0
        %v856 = vpop.f32.mrb[0].mxu0
        %v857 = vpop.f32.mrb[0].mxu0
        %858 = vdwg.mxu0
        %v859 = vsel %vm748, %v854, -inf
        %860 = vmax.xlane.f32.xlu0 %v859
        %v861 = vpop.xlane.xlu0 %860
        %v862 = vsub.f32 %v854, %v861
        %v863 = vmul.f32 %v862, 1.442695
        %v864 = vpow.pop %v863
        %v865 = vsel %vm748, %v864, 0.0
        %866 = vadd.xlane.f32.xlu0 %v865
        %v867 = vpop.xlane.xlu0 %866
        %v868 = vpack.c.bf16 %v864, %v864
        %870 = vrot.lane.b32.xlu0 %v806, 120
        %v871 = vpop.permute.xlu0 %870
        %v874 = vsel %vm748, %v868, 0
        %876 = vmatprep.subr.bf16.mxu0 0
        %877 = vmatpush1.bf16.msra.mxu0 %v871
        %878 = vmatprep.subr.bf16.mxu0 0
        %879 = vmatpush1.bf16.msra.mxu0 0
        %880 = vmatprep.subr.bf16.mxu0 0
        %881 = vmatpush1.bf16.msra.mxu0 0
        %882 = vmatprep.subr.bf16.mxu0 0
        %883 = vmatpush1.bf16.msra.mxu0 0
        %884 = vmatprep.subr.bf16.mxu0 0
        %885 = vmatpush1.bf16.msra.mxu0 0
        %886 = vmatprep.subr.bf16.mxu0 0
        %887 = vmatpush1.bf16.msra.mxu0 0
        %888 = vmatprep.subr.bf16.mxu0 0
        %889 = vmatpush1.bf16.msra.mxu0 0
        %890 = vmatprep.subr.bf16.mxu0 0
        %891 = vmatpush1.bf16.msra.mxu0 0
        %892 = vmatprep.subr.bf16.mxu0 0
        %893 = vmatpush1.bf16.msra.mxu0 0
        %894 = vmatprep.subr.bf16.mxu0 0
        %895 = vmatpush1.bf16.msra.mxu0 0
        %896 = vmatprep.subr.bf16.mxu0 0
        %897 = vmatpush1.bf16.msra.mxu0 0
        %898 = vmatprep.subr.bf16.mxu0 0
        %899 = vmatpush1.bf16.msra.mxu0 0
        %900 = vmatprep.subr.bf16.mxu0 0
        %901 = vmatpush1.bf16.msra.mxu0 0
        %902 = vmatprep.subr.bf16.mxu0 0
        %903 = vmatpush1.bf16.msra.mxu0 0
        %904 = vmatprep.subr.bf16.mxu0 0
        %905 = vmatpush1.bf16.msra.mxu0 0
        %906 = vmatprep.subr.bf16.mxu0 0
        %907 = vmatpush1.bf16.msra.mxu0 0
        %908 = vmatprep.mubr.bf16.mxu0 0
        %909 = vmatmul.mubr.bf16.gmra.mrb[0].mxu0 %v874
        %v910 = vpop.f32.mrb[0].mxu0
        %v911 = vadd.f32 0.0, %v910
        %v912 = vpop.f32.mrb[0].mxu0
        %v913 = vpop.f32.mrb[0].mxu0
        %v914 = vpop.f32.mrb[0].mxu0
        %915 = vdwg.mxu0
        %v916 = vrcp.pop %v867
        %v917 = vmul.f32 %v911, %v916
        %919 = vrot.lane.b32.xlu0 %v917, 8
        %v920 = vpop.permute.xlu0 %919
        %vm922 = vcmask 130112
        %923 = vst.msk [vmem:[#allocation4] sm:$0xff] %vm922, %v920
        %v924 = vld [vmem:[#allocation2] sm:$0xff]
        %v925 = vld [vmem:[#allocation3] sm:$0xff]
        %926 = vrot.lane.b32.xlu0 %v698, 112
        %v927 = vpop.permute.xlu0 %926
        %929 = vrot.lane.b32.xlu0 %v924, 112
        %v930 = vpop.permute.xlu0 %929
        %v932 = vsel %vm701, %v927, 0
        %v935 = vsel %vm701, %v930, 0
        %937 = vmatprep.subr.bf16.mxu0 0
        %938 = vmatpush1.bf16.xpose.msra.mxu0 %v935
        %939 = vmatprep.subr.bf16.mxu0 0
        %940 = vmatpush1.bf16.xpose.msra.mxu0 0
        %941 = vmatprep.subr.bf16.mxu0 0
        %942 = vmatpush1.bf16.xpose.msra.mxu0 0
        %943 = vmatprep.subr.bf16.mxu0 0
        %944 = vmatpush1.bf16.xpose.msra.mxu0 0
        %945 = vmatprep.subr.bf16.mxu0 0
        %946 = vmatpush1.bf16.xpose.msra.mxu0 0
        %947 = vmatprep.subr.bf16.mxu0 0
        %948 = vmatpush1.bf16.xpose.msra.mxu0 0
        %949 = vmatprep.subr.bf16.mxu0 0
        %950 = vmatpush1.bf16.xpose.msra.mxu0 0
        %951 = vmatprep.subr.bf16.mxu0 0
        %952 = vmatpush1.bf16.xpose.msra.mxu0 0
        %953 = vmatprep.subr.bf16.mxu0 0
        %954 = vmatpush1.bf16.xpose.msra.mxu0 0
        %955 = vmatprep.subr.bf16.mxu0 0
        %956 = vmatpush1.bf16.xpose.msra.mxu0 0
        %957 = vmatprep.subr.bf16.mxu0 0
        %958 = vmatpush1.bf16.xpose.msra.mxu0 0
        %959 = vmatprep.subr.bf16.mxu0 0
        %960 = vmatpush1.bf16.xpose.msra.mxu0 0
        %961 = vmatprep.subr.bf16.mxu0 0
        %962 = vmatpush1.bf16.xpose.msra.mxu0 0
        %963 = vmatprep.subr.bf16.mxu0 0
        %964 = vmatpush1.bf16.xpose.msra.mxu0 0
        %965 = vmatprep.subr.bf16.mxu0 0
        %966 = vmatpush1.bf16.xpose.msra.mxu0 0
        %967 = vmatprep.subr.bf16.mxu0 0
        %968 = vmatpush1.bf16.xpose.msra.mxu0 0
        %969 = vmatprep.mubr.bf16.mxu0 0
        %970 = vmatmul.mubr.bf16.gmra.mrb[0].mxu0 %v932
        %v971 = vpop.f32.mrb[0].mxu0
        %v972 = vadd.f32 0.0, %v971
        %v973 = vpop.f32.mrb[0].mxu0
        %v974 = vpop.f32.mrb[0].mxu0
        %v975 = vpop.f32.mrb[0].mxu0
        %976 = vdwg.mxu0
        %v977 = vsel %vm748, %v972, -inf
        %978 = vmax.xlane.f32.xlu0 %v977
        %v979 = vpop.xlane.xlu0 %978
        %v980 = vsub.f32 %v972, %v979
        %v981 = vmul.f32 %v980, 1.442695
        %v982 = vpow.pop %v981
        %v983 = vsel %vm748, %v982, 0.0
        %984 = vadd.xlane.f32.xlu0 %v983
        %v985 = vpop.xlane.xlu0 %984
        %v986 = vpack.c.bf16 %v982, %v982
        %988 = vrot.lane.b32.xlu0 %v925, 112
        %v989 = vpop.permute.xlu0 %988
        %v992 = vsel %vm748, %v986, 0
        %994 = vmatprep.subr.bf16.mxu0 0
        %995 = vmatpush1.bf16.msra.mxu0 %v989
        %996 = vmatprep.subr.bf16.mxu0 0
        %997 = vmatpush1.bf16.msra.mxu0 0
        %998 = vmatprep.subr.bf16.mxu0 0
        %999 = vmatpush1.bf16.msra.mxu0 0
        %1000 = vmatprep.subr.bf16.mxu0 0
        %1001 = vmatpush1.bf16.msra.mxu0 0
        %1002 = vmatprep.subr.bf16.mxu0 0
        %1003 = vmatpush1.bf16.msra.mxu0 0
        %1004 = vmatprep.subr.bf16.mxu0 0
        %1005 = vmatpush1.bf16.msra.mxu0 0
        %1006 = vmatprep.subr.bf16.mxu0 0
        %1007 = vmatpush1.bf16.msra.mxu0 0
        %1008 = vmatprep.subr.bf16.mxu0 0
        %1009 = vmatpush1.bf16.msra.mxu0 0
        %1010 = vmatprep.subr.bf16.mxu0 0
        %1011 = vmatpush1.bf16.msra.mxu0 0
        %1012 = vmatprep.subr.bf16.mxu0 0
        %1013 = vmatpush1.bf16.msra.mxu0 0
        %1014 = vmatprep.subr.bf16.mxu0 0
        %1015 = vmatpush1.bf16.msra.mxu0 0
        %1016 = vmatprep.subr.bf16.mxu0 0
        %1017 = vmatpush1.bf16.msra.mxu0 0
        %1018 = vmatprep.subr.bf16.mxu0 0
        %1019 = vmatpush1.bf16.msra.mxu0 0
        %1020 = vmatprep.subr.bf16.mxu0 0
        %1021 = vmatpush1.bf16.msra.mxu0 0
        %1022 = vmatprep.subr.bf16.mxu0 0
        %1023 = vmatpush1.bf16.msra.mxu0 0
        %1024 = vmatprep.subr.bf16.mxu0 0
        %1025 = vmatpush1.bf16.msra.mxu0 0
        %1026 = vmatprep.mubr.bf16.mxu0 0
        %1027 = vmatmul.mubr.bf16.gmra.mrb[0].mxu0 %v992
        %v1028 = vpop.f32.mrb[0].mxu0
        %v1029 = vadd.f32 0.0, %v1028
        %v1030 = vpop.f32.mrb[0].mxu0
        %v1031 = vpop.f32.mrb[0].mxu0
        %v1032 = vpop.f32.mrb[0].mxu0
        %1033 = vdwg.mxu0
        %v1034 = vrcp.pop %v985
        %v1035 = vmul.f32 %v1029, %v1034
        %1037 = vrot.lane.b32.xlu0 %v1035, 16
        %v1038 = vpop.permute.xlu0 %1037
        %vm1040 = vcmask 195712
        %1041 = vst.msk [vmem:[#allocation4] sm:$0xff] %vm1040, %v1038
        %v1042 = vld [vmem:[#allocation2] sm:$0xff]
        %v1043 = vld [vmem:[#allocation3] sm:$0xff]
        %1044 = vrot.lane.b32.xlu0 %v698, 104
        %v1045 = vpop.permute.xlu0 %1044
        %1047 = vrot.lane.b32.xlu0 %v1042, 104
        %v1048 = vpop.permute.xlu0 %1047
        %v1050 = vsel %vm701, %v1045, 0
        %v1053 = vsel %vm701, %v1048, 0
        %1055 = vmatprep.subr.bf16.mxu0 0
        %1056 = vmatpush1.bf16.xpose.msra.mxu0 %v1053
        %1057 = vmatprep.subr.bf16.mxu0 0
        %1058 = vmatpush1.bf16.xpose.msra.mxu0 0
        %1059 = vmatprep.subr.bf16.mxu0 0
        %1060 = vmatpush1.bf16.xpose.msra.mxu0 0
        %1061 = vmatprep.subr.bf16.mxu0 0
        %1062 = vmatpush1.bf16.xpose.msra.mxu0 0
        %1063 = vmatprep.subr.bf16.mxu0 0
        %1064 = vmatpush1.bf16.xpose.msra.mxu0 0
        %1065 = vmatprep.subr.bf16.mxu0 0
        %1066 = vmatpush1.bf16.xpose.msra.mxu0 0
        %1067 = vmatprep.subr.bf16.mxu0 0
        %1068 = vmatpush1.bf16.xpose.msra.mxu0 0
        %1069 = vmatprep.subr.bf16.mxu0 0
        %1070 = vmatpush1.bf16.xpose.msra.mxu0 0
        %1071 = vmatprep.subr.bf16.mxu0 0
        %1072 = vmatpush1.bf16.xpose.msra.mxu0 0
        %1073 = vmatprep.subr.bf16.mxu0 0
        %1074 = vmatpush1.bf16.xpose.msra.mxu0 0
        %1075 = vmatprep.subr.bf16.mxu0 0
        %1076 = vmatpush1.bf16.xpose.msra.mxu0 0
        %1077 = vmatprep.subr.bf16.mxu0 0
        %1078 = vmatpush1.bf16.xpose.msra.mxu0 0
        %1079 = vmatprep.subr.bf16.mxu0 0
        %1080 = vmatpush1.bf16.xpose.msra.mxu0 0
        %1081 = vmatprep.subr.bf16.mxu0 0
        %1082 = vmatpush1.bf16.xpose.msra.mxu0 0
        %1083 = vmatprep.subr.bf16.mxu0 0
        %1084 = vmatpush1.bf16.xpose.msra.mxu0 0
        %1085 = vmatprep.subr.bf16.mxu0 0
        %1086 = vmatpush1.bf16.xpose.msra.mxu0 0
        %1087 = vmatprep.mubr.bf16.mxu0 0
        %1088 = vmatmul.mubr.bf16.gmra.mrb[0].mxu0 %v1050
        %v1089 = vpop.f32.mrb[0].mxu0
        %v1090 = vadd.f32 0.0, %v1089
        %v1091 = vpop.f32.mrb[0].mxu0
        %v1092 = vpop.f32.mrb[0].mxu0
        %v1093 = vpop.f32.mrb[0].mxu0
        %1094 = vdwg.mxu0
        %v1095 = vsel %vm748, %v1090, -inf
        %1096 = vmax.xlane.f32.xlu0 %v1095
        %v1097 = vpop.xlane.xlu0 %1096
        %v1098 = vsub.f32 %v1090, %v1097
        %v1099 = vmul.f32 %v1098, 1.442695
        %v1100 = vpow.pop %v1099
        %v1101 = vsel %vm748, %v1100, 0.0
        %1102 = vadd.xlane.f32.xlu0 %v1101
        %v1103 = vpop.xlane.xlu0 %1102
        %v1104 = vpack.c.bf16 %v1100, %v1100
        %1106 = vrot.lane.b32.xlu0 %v1043, 104
        %v1107 = vpop.permute.xlu0 %1106
        %v1110 = vsel %vm748, %v1104, 0
        %1112 = vmatprep.subr.bf16.mxu0 0
        %1113 = vmatpush1.bf16.msra.mxu0 %v1107
        %1114 = vmatprep.subr.bf16.mxu0 0
        %1115 = vmatpush1.bf16.msra.mxu0 0
        %1116 = vmatprep.subr.bf16.mxu0 0
        %1117 = vmatpush1.bf16.msra.mxu0 0
        %1118 = vmatprep.subr.bf16.mxu0 0
        %1119 = vmatpush1.bf16.msra.mxu0 0
        %1120 = vmatprep.subr.bf16.mxu0 0
        %1121 = vmatpush1.bf16.msra.mxu0 0
        %1122 = vmatprep.subr.bf16.mxu0 0
        %1123 = vmatpush1.bf16.msra.mxu0 0
        %1124 = vmatprep.subr.bf16.mxu0 0
        %1125 = vmatpush1.bf16.msra.mxu0 0
        %1126 = vmatprep.subr.bf16.mxu0 0
        %1127 = vmatpush1.bf16.msra.mxu0 0
        %1128 = vmatprep.subr.bf16.mxu0 0
        %1129 = vmatpush1.bf16.msra.mxu0 0
        %1130 = vmatprep.subr.bf16.mxu0 0
        %1131 = vmatpush1.bf16.msra.mxu0 0
        %1132 = vmatprep.subr.bf16.mxu0 0
        %1133 = vmatpush1.bf16.msra.mxu0 0
        %1134 = vmatprep.subr.bf16.mxu0 0
        %1135 = vmatpush1.bf16.msra.mxu0 0
        %1136 = vmatprep.subr.bf16.mxu0 0
        %1137 = vmatpush1.bf16.msra.mxu0 0
        %1138 = vmatprep.subr.bf16.mxu0 0
        %1139 = vmatpush1.bf16.msra.mxu0 0
        %1140 = vmatprep.subr.bf16.mxu0 0
        %1141 = vmatpush1.bf16.msra.mxu0 0
        %1142 = vmatprep.subr.bf16.mxu0 0
        %1143 = vmatpush1.bf16.msra.mxu0 0
        %1144 = vmatprep.mubr.bf16.mxu0 0
        %1145 = vmatmul.mubr.bf16.gmra.mrb[0].mxu0 %v1110
        %v1146 = vpop.f32.mrb[0].mxu0
        %v1147 = vadd.f32 0.0, %v1146
        %v1148 = vpop.f32.mrb[0].mxu0
        %v1149 = vpop.f32.mrb[0].mxu0
        %v1150 = vpop.f32.mrb[0].mxu0
        %1151 = vdwg.mxu0
        %v1152 = vrcp.pop %v1103
        %v1153 = vmul.f32 %v1147, %v1152
        %1155 = vrot.lane.b32.xlu0 %v1153, 24
        %v1156 = vpop.permute.xlu0 %1155
        %vm1158 = vcmask 261312
        %1159 = vst.msk [vmem:[#allocation4] sm:$0xff] %vm1158, %v1156
        %v1160 = vld [vmem:[#allocation4] sm:$0xff]
        %1161 = vst.msk [vmem:[%s470] sm:$0xff] %vm653, %v1160
        %s1162 = sand.u32 %s258, 1
        %s1163 = scalar_lea.sflag [#allocation7], %s1162
        %s1164 = sand.u32 %s258, 1
        %s1165 = smul.addr %s1164, 8
        %s1166 = scalar_lea.vmem [#allocation14], %s1165
        // Predicated region
        $region81: #{tpu_custom_call.1} parent=55 // pred_check
          %p1167 = pneg %p268
        $region82: #{tpu_custom_call.1} parent=55 // pred_check_branch
          %1169 = sbr.rel (%p1167) target = $region84
        $region83: #{tpu_custom_call.1} parent=55 // pred_region
          %s1171 = ssub.s32 128, 128
          %1172 = vsyncadd %s1163, %s1171
          %s1173 = sadd.s32 %s35, %s34
          %s1174 = smul.addr %s1173, 128
          %s1175 = scalar_lea.hbm %s9, %s1174
          %s1177 = sshll.u32 %s1166, 4
          %s1178 = int_to_ptr.vmem [resolvable:$true] %s1177
          %1180 = dma.vmem_to_hbm [thread:$0]  %s1178, 128, %s1175, %s1163
        $region84: #{tpu_custom_call.1} parent=55 // pred_fallthru
          _
      $region56: #{tpu_custom_call.1} parent=5 // pred_fallthru
        _
      %p1181 = scmp.le.s32.totalorder 2, %s25
      // Predicated region
      $region85: #{tpu_custom_call.1} parent=5 // pred_check
        %p1182 = pneg %p1181
      $region86: #{tpu_custom_call.1} parent=5 // pred_check_branch
        %1184 = sbr.rel (%p1182) target = $region88
      $region87: #{tpu_custom_call.1} parent=5 // pred_region
        %s1185 = ssub.s32 %s25, 2
        // Predicated region
        $region89: #{tpu_custom_call.1} parent=87 // pred_check
          %p1186 = pneg %p274
        $region90: #{tpu_custom_call.1} parent=87 // pred_check_branch
          %1188 = sbr.rel (%p1186) target = $region92
        $region91: #{tpu_custom_call.1} parent=87 // pred_region
          %s1189 = sand.u32 %s259, 1
          %s1190 = scalar_lea.sflag [#allocation7], %s1189
          %s1191 = sand.u32 %s259, 1
          %s1192 = smul.addr %s1191, 8
          %s1193 = scalar_lea.vmem [#allocation14], %s1192
          %1194 = dma.done %s1190, 128
        $region92: #{tpu_custom_call.1} parent=87 // pred_fallthru
          _
      $region88: #{tpu_custom_call.1} parent=5 // pred_fallthru
        _
    $region6: #{tpu_custom_call.1} parent=1 // loop_footer
      %s29 = sadd.s32 1, %s25
    $region7: #{tpu_custom_call.1} parent=1 // loop_footer_branch
      %24 = sbr.rel target = $region3
    $region8: #{tpu_custom_call.1} parent=1 // loop_exit
      _
    %1195 = vsyncpa [#allocation6], 1
    %s1196 = scalar_lea.sflag [#allocation6], 1
    %1197 = vsyncpa %s1196, 1
    %1198 = vsyncpa [#allocation9], 1
    %s1199 = scalar_lea.sflag [#allocation9], 1
    %1200 = vsyncpa %s1199, 1
    %1201 = vsyncpa [#allocation12], 1
    %1202 = vsyncpa [#allocation7], 1
    %s1203 = scalar_lea.sflag [#allocation7], 1
    %1204 = vsyncpa %s1203, 1

// kernel: tpu_custom_call.1
$region0: #{tpu_custom_call.1}
  #allocation0 [shape = 'u32[]', space=smem, size = 0x4, offset = 0x4, fixed_abs, tag = 'smem constant byte address 0x4 - core index']
  #allocation1 [shape = 'u32[144,128]{1,0:T(1,128)}', space=vmem, size = 0x12000, scoped, tag = 'internal scratch']
  #allocation2 [shape = 'bf16[16,32]{1,0:T(16,128)(2,1)}', space=vmem, size = 0x1000, scoped, tag = 'scratch operand']
  #allocation3 [shape = 'bf16[16,32]{1,0:T(16,128)(2,1)}', space=vmem, size = 0x1000, scoped, tag = 'scratch operand']
  #allocation4 [shape = 'f32[8,32]{1,0:T(8,128)}', space=vmem, size = 0x1000, scoped, tag = 'scratch operand']
  %s0 = inlined_call_operand.hbm [shape: bf16[2,8,32], index: 0, kind: input, shape index: {}]
  %s1 = inlined_call_operand.hbm [shape: bf16[2,16,32], index: 1, kind: input, shape index: {}]
  %s2 = inlined_call_operand.hbm [shape: bf16[2,16,32], index: 2, kind: input, shape index: {}]
  %s3 = inlined_call_operand.hbm [shape: bf16[32,32], index: 3, kind: input, shape index: {}]
  %s4 = inlined_call_operand.vmem [shape: f32[1,32], index: 4, kind: input, shape index: {}]
  %s5 = inlined_call_operand.vmem [shape: bf16[32,32], index: 5, kind: input, shape index: {}]
  %s6 = inlined_call_operand.vmem [shape: f32[1,32], index: 6, kind: input, shape index: {}]
  %s7 = inlined_call_operand.hbm [shape: bf16[32,32], index: 7, kind: input, shape index: {}]
  %s8 = inlined_call_operand.vmem [shape: f32[1,32], index: 8, kind: input, shape index: {}]
  %s9 = inlined_call_operand.hbm [shape: f32[2,8,32], index: 9, kind: output, shape index: {}]
  %s10 = sld [smem:[#allocation0]]
  $region93: #{tpu_custom_call.1} parent=0
    _
  %s12 = ssub.s32 1, %s10
  %s13 = scalar_select 0, %s12, %s10
  $region1: #{tpu_custom_call.1} parent=0
    #allocation5 [shape = 'u8[4096]{0}', space=vmem, size = 0x1000, scoped, tag = 'input window, operand 0']
    #allocation6 [shape = 's32[2]{0}', space=sflag, size = 0x8, scoped, tag = 'scoped memory for tpu_custom_call.1']
    #allocation7 [shape = 's32[2]{0}', space=sflag, size = 0x8, scoped, tag = 'scoped memory for tpu_custom_call.1']
    #allocation8 [shape = 'u8[8192]{0}', space=vmem, size = 0x2000, scoped, tag = 'input window, operand 1']
    #allocation9 [shape = 's32[2]{0}', space=sflag, size = 0x8, scoped, tag = 'scoped memory for tpu_custom_call.1']
    #allocation10 [shape = 'u8[8192]{0}', space=vmem, size = 0x2000, scoped, tag = 'input window, operand 2']
    #allocation11 [shape = 'u8[8192]{0}', space=vmem, size = 0x2000, scoped, tag = 'input window, operand 3, single buffered']
    #allocation12 [shape = 's32[1]{0}', space=sflag, size = 0x4, scoped, tag = 'scoped memory for tpu_custom_call.1']
    #allocation13 [shape = 'u8[8192]{0}', space=vmem, size = 0x2000, scoped, tag = 'input window, operand 7, single buffered']
    #allocation14 [shape = 'u8[8192]{0}', space=vmem, size = 0x2000, scoped, tag = 'output window, operand 0']
    %14 = vsyncpa [#allocation6], 0
    %s15 = scalar_lea.sflag [#allocation6], 1
    %16 = vsyncpa %s15, 0
    %17 = vsyncpa [#allocation9], 0
    %s18 = scalar_lea.sflag [#allocation9], 1
    %19 = vsyncpa %s18, 0
    %20 = vsyncpa [#allocation12], 0
    %21 = vsyncpa [#allocation7], 0
    %s22 = scalar_lea.sflag [#allocation7], 1
    %23 = vsyncpa %s22, 0
    loop: start=0, step=1, limit=4
    $region2: #{tpu_custom_call.1} parent=1 // loop_pre_header
      _
    $region3: #{tpu_custom_call.1} parent=1 // loop_header
      %s25 = sphi 0, %s29
      %p26 = scmp.ge.s32.totalorder %s25, 4
      %s32 = sphi 0, %s44
      %s33 = sphi 0, %s40
      %s34 = sphi 0, %s32
      %s35 = sphi 0, %s33
      %s36 = sphi 0, %s34
      %s37 = sphi 0, %s35
      %s49 = sphi 0, %s51
      %s52 = sphi 0, %s49
      %s53 = sphi 0, %s52
      %s69 = sphi 0, %s53
      %s75 = sphi 0, %s77
      %s78 = sphi 0, %s75
      %s79 = sphi 0, %s78
      %s95 = sphi 0, %s79
      %s101 = sphi 0, %s103
      %s104 = sphi 0, %s101
      %s105 = sphi 0, %s104
      %s121 = sphi 0, %s105
      %s125 = sphi 0, %s125
      %s127 = sphi 0, %s125
      %s128 = sphi 0, %s127
      %s142 = sphi 0, %s128
      %s146 = sphi 0, %s146
      %s148 = sphi 0, %s146
      %s149 = sphi 0, %s148
      %s163 = sphi 0, %s149
      %s167 = sphi 0, %s167
      %s169 = sphi 0, %s167
      %s170 = sphi 0, %s169
      %s184 = sphi 0, %s170
      %s188 = sphi 0, %s188
      %s190 = sphi 0, %s188
      %s191 = sphi 0, %s190
      %s205 = sphi 0, %s191
      %s209 = sphi 0, %s209
      %s211 = sphi 0, %s209
      %s212 = sphi 0, %s211
      %s226 = sphi 0, %s212
      %s230 = sphi 0, %s230
      %s232 = sphi 0, %s230
      %s233 = sphi 0, %s232
      %s247 = sphi 0, %s233
      %s255 = sphi 0, %s257
      %s258 = sphi 0, %s255
      %s259 = sphi 0, %s258
      %s275 = sphi 0, %s259
    $region4: #{tpu_custom_call.1} parent=1 // loop_header_branch
      %28 = sbr.rel (%p26) target = $region8
    $region5: #{tpu_custom_call.1} parent=1 // loop_body
      %s30 = ssub.s32 %s25, 1
      %s31 = ssub.s32 %s25, 2
      %s38 = sadd.s32 1, %s33
      %p39 = scmp.ge.s32.totalorder %s38, 1
      %s40 = scalar_select %p39, 0, %s38
      %s41 = sadd.s32 1, %s32
      %s42 = scalar_select %p39, %s41, %s32
      %p43 = scmp.ge.s32.totalorder %s42, 2
      %s44 = scalar_select %p43, 0, %s42
      %s45 = ssub.s32 %s32, %s44
      %s46 = ssub.s32 %s33, %s40
      %s47 = sor.u32 %s45, %s46
      %p48 = scmp.eq.s32.totalorder %s47, 0
      %s50 = sadd.s32 %s49, 1
      %s51 = scalar_select %p48, %s49, %s50
      %p54 = pneg %p48
      %p55 = scmp.eq.s32.totalorder %s25, 1
      %p56 = por %p54, %p55
      %p57 = scmp.ne.s32.totalorder %s49, %s52
      %p58 = scmp.eq.s32.totalorder %s25, 0
      %p59 = por %p57, %p58
      %p60 = scmp.ne.s32.totalorder %s49, %s52
      %p61 = scmp.eq.s32.totalorder %s30, 1
      %p62 = por %p60, %p61
      %p63 = scmp.ne.s32.totalorder %s52, %s53
      %p64 = scmp.eq.s32.totalorder %s30, 0
      %p65 = por %p63, %p64
      %p66 = scmp.ne.s32.totalorder %s52, %s53
      %p67 = scmp.eq.s32.totalorder %s31, 1
      %p68 = por %p66, %p67
      %p70 = scmp.ne.s32.totalorder %s53, %s69
      %p71 = scmp.eq.s32.totalorder %s31, 0
      %p72 = por %p70, %p71
      %s73 = ssub.s32 %s32, %s44
      %p74 = scmp.eq.s32.totalorder %s73, 0
      %s76 = sadd.s32 %s75, 1
      %s77 = scalar_select %p74, %s75, %s76
      %p80 = pneg %p74
      %p81 = scmp.eq.s32.totalorder %s25, 1
      %p82 = por %p80, %p81
      %p83 = scmp.ne.s32.totalorder %s75, %s78
      %p84 = scmp.eq.s32.totalorder %s25, 0
      %p85 = por %p83, %p84
      %p86 = scmp.ne.s32.totalorder %s75, %s78
      %p87 = scmp.eq.s32.totalorder %s30, 1
      %p88 = por %p86, %p87
      %p89 = scmp.ne.s32.totalorder %s78, %s79
      %p90 = scmp.eq.s32.totalorder %s30, 0
      %p91 = por %p89, %p90
      %p92 = scmp.ne.s32.totalorder %s78, %s79
      %p93 = scmp.eq.s32.totalorder %s31, 1
      %p94 = por %p92, %p93
      %p96 = scmp.ne.s32.totalorder %s79, %s95
      %p97 = scmp.eq.s32.totalorder %s31, 0
      %p98 = por %p96, %p97
      %s99 = ssub.s32 %s32, %s44
      %p100 = scmp.eq.s32.totalorder %s99, 0
      %s102 = sadd.s32 %s101, 1
      %s103 = scalar_select %p100, %s101, %s102
      %p106 = pneg %p100
      %p107 = scmp.eq.s32.totalorder %s25, 1
      %p108 = por %p106, %p107
      %p109 = scmp.ne.s32.totalorder %s101, %s104
      %p110 = scmp.eq.s32.totalorder %s25, 0
      %p111 = por %p109, %p110
      %p112 = scmp.ne.s32.totalorder %s101, %s104
      %p113 = scmp.eq.s32.totalorder %s30, 1
      %p114 = por %p112, %p113
      %p115 = scmp.ne.s32.totalorder %s104, %s105
      %p116 = scmp.eq.s32.totalorder %s30, 0
      %p117 = por %p115, %p116
      %p118 = scmp.ne.s32.totalorder %s104, %s105
      %p119 = scmp.eq.s32.totalorder %s31, 1
      %p120 = por %p118, %p119
      %p122 = scmp.ne.s32.totalorder %s105, %s121
      %p123 = scmp.eq.s32.totalorder %s31, 0
      %p124 = por %p122, %p123
      %s126 = sadd.s32 %s125, 1
      %p129 = scmp.eq.s32.totalorder %s25, 1
      %p130 = scmp.ne.s32.totalorder %s125, %s127
      %p131 = scmp.eq.s32.totalorder %s25, 0
      %p132 = por %p130, %p131
      %p133 = scmp.ne.s32.totalorder %s125, %s127
      %p134 = scmp.eq.s32.totalorder %s30, 1
      %p135 = por %p133, %p134
      %p136 = scmp.ne.s32.totalorder %s127, %s128
      %p137 = scmp.eq.s32.totalorder %s30, 0
      %p138 = por %p136, %p137
      %p139 = scmp.ne.s32.totalorder %s127, %s128
      %p140 = scmp.eq.s32.totalorder %s31, 1
      %p141 = por %p139, %p140
      %p143 = scmp.ne.s32.totalorder %s128, %s142
      %p144 = scmp.eq.s32.totalorder %s31, 0
      %p145 = por %p143, %p144
      %s147 = sadd.s32 %s146, 1
      %p150 = scmp.eq.s32.totalorder %s25, 1
      %p151 = scmp.ne.s32.totalorder %s146, %s148
      %p152 = scmp.eq.s32.totalorder %s25, 0
      %p153 = por %p151, %p152
      %p154 = scmp.ne.s32.totalorder %s146, %s148
      %p155 = scmp.eq.s32.totalorder %s30, 1
      %p156 = por %p154, %p155
      %p157 = scmp.ne.s32.totalorder %s148, %s149
      %p158 = scmp.eq.s32.totalorder %s30, 0
      %p159 = por %p157, %p158
      %p160 = scmp.ne.s32.totalorder %s148, %s149
      %p161 = scmp.eq.s32.totalorder %s31, 1
      %p162 = por %p160, %p161
      %p164 = scmp.ne.s32.totalorder %s149, %s163
      %p165 = scmp.eq.s32.totalorder %s31, 0
      %p166 = por %p164, %p165
      %s168 = sadd.s32 %s167, 1
      %p171 = scmp.eq.s32.totalorder %s25, 1
      %p172 = scmp.ne.s32.totalorder %s167, %s169
      %p173 = scmp.eq.s32.totalorder %s25, 0
      %p174 = por %p172, %p173
      %p175 = scmp.ne.s32.totalorder %s167, %s169
      %p176 = scmp.eq.s32.totalorder %s30, 1
      %p177 = por %p175, %p176
      %p178 = scmp.ne.s32.totalorder %s169, %s170
      %p179 = scmp.eq.s32.totalorder %s30, 0
      %p180 = por %p178, %p179
      %p181 = scmp.ne.s32.totalorder %s169, %s170
      %p182 = scmp.eq.s32.totalorder %s31, 1
      %p183 = por %p181, %p182
      %p185 = scmp.ne.s32.totalorder %s170, %s184
      %p186 = scmp.eq.s32.totalorder %s31, 0
      %p187 = por %p185, %p186
      %s189 = sadd.s32 %s188, 1
      %p192 = scmp.eq.s32.totalorder %s25, 1
      %p193 = scmp.ne.s32.totalorder %s188, %s190
      %p194 = scmp.eq.s32.totalorder %s25, 0
      %p195 = por %p193, %p194
      %p196 = scmp.ne.s32.totalorder %s188, %s190
      %p197 = scmp.eq.s32.totalorder %s30, 1
      %p198 = por %p196, %p197
      %p199 = scmp.ne.s32.totalorder %s190, %s191
      %p200 = scmp.eq.s32.totalorder %s30, 0
      %p201 = por %p199, %p200
      %p202 = scmp.ne.s32.totalorder %s190, %s191
      %p203 = scmp.eq.s32.totalorder %s31, 1
      %p204 = por %p202, %p203
      %p206 = scmp.ne.s32.totalorder %s191, %s205
      %p207 = scmp.eq.s32.totalorder %s31, 0
      %p208 = por %p206, %p207
      %s210 = sadd.s32 %s209, 1
      %p213 = scmp.eq.s32.totalorder %s25, 1
      %p214 = scmp.ne.s32.totalorder %s209, %s211
      %p215 = scmp.eq.s32.totalorder %s25, 0
      %p216 = por %p214, %p215
      %p217 = scmp.ne.s32.totalorder %s209, %s211
      %p218 = scmp.eq.s32.totalorder %s30, 1
      %p219 = por %p217, %p218
      %p220 = scmp.ne.s32.totalorder %s211, %s212
      %p221 = scmp.eq.s32.totalorder %s30, 0
      %p222 = por %p220, %p221
      %p223 = scmp.ne.s32.totalorder %s211, %s212
      %p224 = scmp.eq.s32.totalorder %s31, 1
      %p225 = por %p223, %p224
      %p227 = scmp.ne.s32.totalorder %s212, %s226
      %p228 = scmp.eq.s32.totalorder %s31, 0
      %p229 = por %p227, %p228
      %s231 = sadd.s32 %s230, 1
      %p234 = scmp.eq.s32.totalorder %s25, 1
      %p235 = scmp.ne.s32.totalorder %s230, %s232
      %p236 = scmp.eq.s32.totalorder %s25, 0
      %p237 = por %p235, %p236
      %p238 = scmp.ne.s32.totalorder %s230, %s232
      %p239 = scmp.eq.s32.totalorder %s30, 1
      %p240 = por %p238, %p239
      %p241 = scmp.ne.s32.totalorder %s232, %s233
      %p242 = scmp.eq.s32.totalorder %s30, 0
      %p243 = por %p241, %p242
      %p244 = scmp.ne.s32.totalorder %s232, %s233
      %p245 = scmp.eq.s32.totalorder %s31, 1
      %p246 = por %p244, %p245
      %p248 = scmp.ne.s32.totalorder %s233, %s247
      %p249 = scmp.eq.s32.totalorder %s31, 0
      %p250 = por %p248, %p249
      %s251 = ssub.s32 %s32, %s44
      %s252 = ssub.s32 %s33, %s40
      %s253 = sor.u32 %s251, %s252
      %p254 = scmp.eq.s32.totalorder %s253, 0
      %s256 = sadd.s32 %s255, 1
      %s257 = scalar_select %p254, %s255, %s256
      %p260 = pneg %p254
      %p261 = scmp.eq.s32.totalorder %s25, 1
      %p262 = por %p260, %p261
      %p263 = scmp.ne.s32.totalorder %s255, %s258
      %p264 = scmp.eq.s32.totalorder %s25, 0
      %p265 = por %p263, %p264
      %p266 = scmp.ne.s32.totalorder %s255, %s258
      %p267 = scmp.eq.s32.totalorder %s30, 1
      %p268 = por %p266, %p267
      %p269 = scmp.ne.s32.totalorder %s258, %s259
      %p270 = scmp.eq.s32.totalorder %s30, 0
      %p271 = por %p269, %p270
      %p272 = scmp.ne.s32.totalorder %s258, %s259
      %p273 = scmp.eq.s32.totalorder %s31, 1
      %p274 = por %p272, %p273
      %p276 = scmp.ne.s32.totalorder %s259, %s275
      %p277 = scmp.eq.s32.totalorder %s31, 0
      %p278 = por %p276, %p277
      %p279 = scmp.le.s32.totalorder 1, %s25
      %p280 = scmp.lt.s32.totalorder %s25, 3
      %p281 = pnand %p279, %p280
      %p282 = pneg %p281
      // Predicated region
      $region9: #{tpu_custom_call.1} parent=5 // pred_check
        _
      $region10: #{tpu_custom_call.1} parent=5 // pred_check_branch
        %284 = sbr.rel (%p281) target = $region12
      $region11: #{tpu_custom_call.1} parent=5 // pred_region
        %s285 = ssub.s32 %s25, 1
        // Predicated region
        $region13: #{tpu_custom_call.1} parent=11 // pred_check
          %p286 = pneg %p138
        $region14: #{tpu_custom_call.1} parent=11 // pred_check_branch
          %288 = sbr.rel (%p286) target = $region16
        $region15: #{tpu_custom_call.1} parent=11 // pred_region
          %s290 = ssub.s32 256, 256
          %291 = vsyncadd [#allocation12], %s290
          %s292 = sshll.u32 [#allocation11], 4
          %s293 = int_to_ptr.vmem [resolvable:$true] %s292
          %298 = dma.hbm_to_vmem [thread:$0]  %s3, 256, %s293, [#allocation12], 64, 64, 4
        $region16: #{tpu_custom_call.1} parent=11 // pred_fallthru
          _
        // Predicated region
        $region17: #{tpu_custom_call.1} parent=11 // pred_check
          %p299 = pneg %p159
        $region18: #{tpu_custom_call.1} parent=11 // pred_check_branch
          %301 = sbr.rel (%p299) target = $region20
        $region19: #{tpu_custom_call.1} parent=11 // pred_region
          _
        $region20: #{tpu_custom_call.1} parent=11 // pred_fallthru
          _
        // Predicated region
        $region21: #{tpu_custom_call.1} parent=11 // pred_check
          %p302 = pneg %p180
        $region22: #{tpu_custom_call.1} parent=11 // pred_check_branch
          %304 = sbr.rel (%p302) target = $region24
        $region23: #{tpu_custom_call.1} parent=11 // pred_region
          _
        $region24: #{tpu_custom_call.1} parent=11 // pred_fallthru
          _
        // Predicated region
        $region25: #{tpu_custom_call.1} parent=11 // pred_check
          %p305 = pneg %p201
        $region26: #{tpu_custom_call.1} parent=11 // pred_check_branch
          %307 = sbr.rel (%p305) target = $region28
        $region27: #{tpu_custom_call.1} parent=11 // pred_region
          _
        $region28: #{tpu_custom_call.1} parent=11 // pred_fallthru
          _
        // Predicated region
        $region29: #{tpu_custom_call.1} parent=11 // pred_check
          %p308 = pneg %p222
        $region30: #{tpu_custom_call.1} parent=11 // pred_check_branch
          %310 = sbr.rel (%p308) target = $region32
        $region31: #{tpu_custom_call.1} parent=11 // pred_region
          %s312 = ssub.s32 256, 256
          %313 = vsyncadd [#allocation12], %s312
          %s314 = sshll.u32 [#allocation13], 4
          %s315 = int_to_ptr.vmem [resolvable:$true] %s314
          %320 = dma.hbm_to_vmem [thread:$0]  %s7, 256, %s315, [#allocation12], 64, 64, 4
        $region32: #{tpu_custom_call.1} parent=11 // pred_fallthru
          _
        // Predicated region
        $region33: #{tpu_custom_call.1} parent=11 // pred_check
          %p321 = pneg %p243
        $region34: #{tpu_custom_call.1} parent=11 // pred_check_branch
          %323 = sbr.rel (%p321) target = $region36
        $region35: #{tpu_custom_call.1} parent=11 // pred_region
          _
        $region36: #{tpu_custom_call.1} parent=11 // pred_fallthru
          _
      $region12: #{tpu_custom_call.1} parent=5 // pred_fallthru
        _
      %p324 = scmp.lt.s32.totalorder %s25, 2
      // Predicated region
      $region37: #{tpu_custom_call.1} parent=5 // pred_check
        %p325 = pneg %p324
      $region38: #{tpu_custom_call.1} parent=5 // pred_check_branch
        %327 = sbr.rel (%p325) target = $region40
      $region39: #{tpu_custom_call.1} parent=5 // pred_region
        // Predicated region
        $region41: #{tpu_custom_call.1} parent=39 // pred_check
          %p328 = pneg %p59
        $region42: #{tpu_custom_call.1} parent=39 // pred_check_branch
          %330 = sbr.rel (%p328) target = $region44
        $region43: #{tpu_custom_call.1} parent=39 // pred_region
          %s331 = sand.u32 %s49, 1
          %s332 = scalar_lea.sflag [#allocation6], %s331
          %s333 = sand.u32 %s49, 1
          %s334 = smul.addr %s333, 4
          %s335 = scalar_lea.vmem [#allocation5], %s334
          %s337 = ssub.s32 64, 64
          %338 = vsyncadd %s332, %s337
          %s339 = sadd.s32 %s33, %s32
          %s340 = smul.addr %s339, 64
          %s341 = scalar_lea.hbm %s0, %s340
          %s343 = sshll.u32 %s335, 4
          %s344 = int_to_ptr.vmem [resolvable:$true] %s343
          %346 = dma.hbm_to_vmem [thread:$0]  %s341, 64, %s344, %s332
        $region44: #{tpu_custom_call.1} parent=39 // pred_fallthru
          _
        // Predicated region
        $region45: #{tpu_custom_call.1} parent=39 // pred_check
          %p347 = pneg %p85
        $region46: #{tpu_custom_call.1} parent=39 // pred_check_branch
          %349 = sbr.rel (%p347) target = $region48
        $region47: #{tpu_custom_call.1} parent=39 // pred_region
          %s350 = sand.u32 %s25, 1
          %s351 = scalar_lea.sflag [#allocation9], %s350
          %s352 = sand.u32 %s75, 1
          %s353 = smul.addr %s352, 8
          %s354 = scalar_lea.vmem [#allocation8], %s353
          %s356 = ssub.s32 128, 128
          %357 = vsyncadd %s351, %s356
          %s358 = smul.addr %s32, 2
          %s359 = smul.addr %s358, 64
          %s360 = scalar_lea.hbm %s1, %s359
          %s361 = sshll.u32 %s354, 4
          %s362 = int_to_ptr.vmem [resolvable:$true] %s361
          %367 = dma.hbm_to_vmem [thread:$0]  %s360, 128, %s362, %s351, 64, 64, 4
        $region48: #{tpu_custom_call.1} parent=39 // pred_fallthru
          _
        // Predicated region
        $region49: #{tpu_custom_call.1} parent=39 // pred_check
          %p368 = pneg %p111
        $region50: #{tpu_custom_call.1} parent=39 // pred_check_branch
          %370 = sbr.rel (%p368) target = $region52
        $region51: #{tpu_custom_call.1} parent=39 // pred_region
          %s371 = sand.u32 %s25, 1
          %s372 = scalar_lea.sflag [#allocation9], %s371
          %s373 = sand.u32 %s101, 1
          %s374 = smul.addr %s373, 8
          %s375 = scalar_lea.vmem [#allocation10], %s374
          %s377 = ssub.s32 128, 128
          %378 = vsyncadd %s372, %s377
          %s379 = smul.addr %s32, 2
          %s380 = smul.addr %s379, 64
          %s381 = scalar_lea.hbm %s2, %s380
          %s382 = sshll.u32 %s375, 4
          %s383 = int_to_ptr.vmem [resolvable:$true] %s382
          %388 = dma.hbm_to_vmem [thread:$0]  %s381, 128, %s383, %s372, 64, 64, 4
        $region52: #{tpu_custom_call.1} parent=39 // pred_fallthru
          _
      $region40: #{tpu_custom_call.1} parent=5 // pred_fallthru
        _
      %p389 = scmp.le.s32.totalorder 1, %s25
      %p390 = scmp.lt.s32.totalorder %s25, 3
      %p391 = pnand %p389, %p390
      %p392 = pneg %p391
      // Predicated region
      $region53: #{tpu_custom_call.1} parent=5 // pred_check
        _
      $region54: #{tpu_custom_call.1} parent=5 // pred_check_branch
        %394 = sbr.rel (%p391) target = $region56
      $region55: #{tpu_custom_call.1} parent=5 // pred_region
        %s395 = ssub.s32 %s25, 1
        %s396 = sand.u32 %s52, 1
        %s397 = scalar_lea.sflag [#allocation6], %s396
        %s398 = sand.u32 %s52, 1
        %s399 = smul.addr %s398, 4
        %s400 = scalar_lea.vmem [#allocation5], %s399
        // Predicated region
        $region57: #{tpu_custom_call.1} parent=55 // pred_check
          %p401 = pneg %p65
        $region58: #{tpu_custom_call.1} parent=55 // pred_check_branch
          %403 = sbr.rel (%p401) target = $region60
        $region59: #{tpu_custom_call.1} parent=55 // pred_region
          %404 = dma.done %s397, 64
        $region60: #{tpu_custom_call.1} parent=55 // pred_fallthru
          _
        %s405 = sand.u32 %s30, 1
        %s406 = scalar_lea.sflag [#allocation9], %s405
        %s407 = sand.u32 %s78, 1
        %s408 = smul.addr %s407, 8
        %s409 = scalar_lea.vmem [#allocation8], %s408
        // Predicated region
        $region61: #{tpu_custom_call.1} parent=55 // pred_check
          %p410 = pneg %p91
        $region62: #{tpu_custom_call.1} parent=55 // pred_check_branch
          %412 = sbr.rel (%p410) target = $region64
        $region63: #{tpu_custom_call.1} parent=55 // pred_region
          %413 = dma.done %s406, 128
        $region64: #{tpu_custom_call.1} parent=55 // pred_fallthru
          _
        %s414 = sand.u32 %s30, 1
        %s415 = scalar_lea.sflag [#allocation9], %s414
        %s416 = sand.u32 %s104, 1
        %s417 = smul.addr %s416, 8
        %s418 = scalar_lea.vmem [#allocation10], %s417
        // Predicated region
        $region65: #{tpu_custom_call.1} parent=55 // pred_check
          %p419 = pneg %p117
        $region66: #{tpu_custom_call.1} parent=55 // pred_check_branch
          %421 = sbr.rel (%p419) target = $region68
        $region67: #{tpu_custom_call.1} parent=55 // pred_region
          %422 = dma.done %s415, 128
        $region68: #{tpu_custom_call.1} parent=55 // pred_fallthru
          _
        // Predicated region
        $region69: #{tpu_custom_call.1} parent=55 // pred_check
          %p423 = pneg %p138
        $region70: #{tpu_custom_call.1} parent=55 // pred_check_branch
          %425 = sbr.rel (%p423) target = $region72
        $region71: #{tpu_custom_call.1} parent=55 // pred_region
          %426 = dma.done [#allocation12], 256
        $region72: #{tpu_custom_call.1} parent=55 // pred_fallthru
          _
        // Predicated region
        $region73: #{tpu_custom_call.1} parent=55 // pred_check
          %p427 = pneg %p222
        $region74: #{tpu_custom_call.1} parent=55 // pred_check_branch
          %429 = sbr.rel (%p427) target = $region76
        $region75: #{tpu_custom_call.1} parent=55 // pred_region
          %430 = dma.done [#allocation12], 256
        $region76: #{tpu_custom_call.1} parent=55 // pred_fallthru
          _
        %s431 = sand.u32 %s52, 1
        %s432 = scalar_lea.sflag [#allocation6], %s431
        %s433 = sand.u32 %s52, 1
        %s434 = smul.addr %s433, 4
        %s435 = scalar_lea.vmem [#allocation5], %s434
        %p436 = pneg %p65
        %p437 = pneg %p62
        %s438 = sand.u32 %s30, 1
        %s439 = scalar_lea.sflag [#allocation9], %s438
        %s440 = sand.u32 %s78, 1
        %s441 = smul.addr %s440, 8
        %s442 = scalar_lea.vmem [#allocation8], %s441
        %p443 = pneg %p91
        %p444 = pneg %p88
        %s445 = sand.u32 %s30, 1
        %s446 = scalar_lea.sflag [#allocation9], %s445
        %s447 = sand.u32 %s104, 1
        %s448 = smul.addr %s447, 8
        %s449 = scalar_lea.vmem [#allocation10], %s448
        %p450 = pneg %p117
        %p451 = pneg %p114
        %p452 = pneg %p138
        %p453 = pneg %p135
        %p454 = pneg %p159
        %p455 = pneg %p156
        %p456 = pneg %p180
        %p457 = pneg %p177
        %p458 = pneg %p201
        %p459 = pneg %p198
        %p460 = pneg %p222
        %p461 = pneg %p219
        %p462 = pneg %p243
        %p463 = pneg %p240
        %p464 = pneg %p271
        %p465 = pneg %p268
        %s466 = sand.u32 %s258, 1
        %s467 = scalar_lea.sflag [#allocation7], %s466
        %s468 = sand.u32 %s258, 1
        %s469 = smul.addr %s468, 8
        %s470 = scalar_lea.vmem [#allocation14], %s469
        %p472 = scmp.eq.s32.totalorder %s35, 0
        // Predicated region
        $region77: #{tpu_custom_call.1} parent=55 // pred_check
          %p473 = pneg %p472
        $region78: #{tpu_custom_call.1} parent=55 // pred_check_branch
          %475 = sbr.rel (%p473) target = $region80
        $region79: #{tpu_custom_call.1} parent=55 // pred_region
          %v476 = vld [vmem:[%s409] sm:$0xf]
          %v477 = vld [vmem:[%s409 + $0x4] sm:$0xf]
          %v478 = vld [vmem:[%s5] sm:$0xf]
          %v479 = vld [vmem:[%s5 + $0x4] sm:$0xf]
          %v480 = vld [vmem:[%s5 + $0x8] sm:$0xf]
          %v481 = vld [vmem:[%s5 + $0xc] sm:$0xf]
          %v482 = vld [vmem:[%s6] sm:$0x1]
          %v484 = vlaneseq
          %v485 = vshrl.u32 %v484, 7
          %v486 = vsub.s32 0, %v485
          %v487 = vrot.slane %v482, %v486
          %v491 = vunpack.c.l.b16 %v476
          %v492 = vunpack.c.l.b16 %v477
          %v493 = vpack.c.b16 %v492, %v491
          %v498 = vunpack.c.l.b16 %v478
          %v499 = vunpack.c.l.b16 %v479
          %v500 = vunpack.c.l.b16 %v480
          %v501 = vunpack.c.l.b16 %v481
          %v502 = vpack.c.b16 %v499, %v498
          %v503 = vpack.c.b16 %v501, %v500
          %vm506 = vcmask 261120
          %v508 = vsel %vm506, %v493, 0
          %510 = vmatprep.subr.bf16.mxu0 0
          %511 = vmatpush1.bf16.msra.mxu0 %v502
          %512 = vmatprep.subr.bf16.mxu0 0
          %513 = vmatpush1.bf16.msra.mxu0 %v503
          %514 = vmatprep.subr.bf16.mxu0 0
          %515 = vmatpush1.bf16.msra.mxu0 0
          %516 = vmatprep.subr.bf16.mxu0 0
          %517 = vmatpush1.bf16.msra.mxu0 0
          %518 = vmatprep.subr.bf16.mxu0 0
          %519 = vmatpush1.bf16.msra.mxu0 0
          %520 = vmatprep.subr.bf16.mxu0 0
          %521 = vmatpush1.bf16.msra.mxu0 0
          %522 = vmatprep.subr.bf16.mxu0 0
          %523 = vmatpush1.bf16.msra.mxu0 0
          %524 = vmatprep.subr.bf16.mxu0 0
          %525 = vmatpush1.bf16.msra.mxu0 0
          %526 = vmatprep.subr.bf16.mxu0 0
          %527 = vmatpush1.bf16.msra.mxu0 0
          %528 = vmatprep.subr.bf16.mxu0 0
          %529 = vmatpush1.bf16.msra.mxu0 0
          %530 = vmatprep.subr.bf16.mxu0 0
          %531 = vmatpush1.bf16.msra.mxu0 0
          %532 = vmatprep.subr.bf16.mxu0 0
          %533 = vmatpush1.bf16.msra.mxu0 0
          %534 = vmatprep.subr.bf16.mxu0 0
          %535 = vmatpush1.bf16.msra.mxu0 0
          %536 = vmatprep.subr.bf16.mxu0 0
          %537 = vmatpush1.bf16.msra.mxu0 0
          %538 = vmatprep.subr.bf16.mxu0 0
          %539 = vmatpush1.bf16.msra.mxu0 0
          %540 = vmatprep.subr.bf16.mxu0 0
          %541 = vmatpush1.bf16.msra.mxu0 0
          %542 = vmatprep.mubr.bf16.mxu0 0
          %543 = vmatmul.mubr.bf16.gmra.mrb[0].mxu0 %v508
          %v544 = vpop.f32.mrb[0].mxu0
          %v545 = vadd.f32 %v487, %v544
          %v546 = vpop.f32.mrb[0].mxu0
          %v547 = vpop.f32.mrb[0].mxu0
          %v548 = vadd.f32 %v487, %v547
          %v549 = vpop.f32.mrb[0].mxu0
          %550 = vdwg.mxu0
          %v551 = vld [vmem:[%s418] sm:$0xf]
          %v552 = vld [vmem:[%s418 + $0x4] sm:$0xf]
          %v553 = vld [vmem:[#allocation13] sm:$0xf]
          %v554 = vld [vmem:[#allocation13 + $0x4] sm:$0xf]
          %v555 = vld [vmem:[#allocation13 + $0x8] sm:$0xf]
          %v556 = vld [vmem:[#allocation13 + $0xc] sm:$0xf]
          %v557 = vld [vmem:[%s8] sm:$0x1]
          %v559 = vlaneseq
          %v560 = vshrl.u32 %v559, 7
          %v561 = vsub.s32 0, %v560
          %v562 = vrot.slane %v557, %v561
          %v566 = vunpack.c.l.b16 %v551
          %v567 = vunpack.c.l.b16 %v552
          %v568 = vpack.c.b16 %v567, %v566
          %v573 = vunpack.c.l.b16 %v553
          %v574 = vunpack.c.l.b16 %v554
          %v575 = vunpack.c.l.b16 %v555
          %v576 = vunpack.c.l.b16 %v556
          %v577 = vpack.c.b16 %v574, %v573
          %v578 = vpack.c.b16 %v576, %v575
          %v582 = vsel %vm506, %v568, 0
          %584 = vmatprep.subr.bf16.mxu0 0
          %585 = vmatpush1.bf16.msra.mxu0 %v577
          %586 = vmatprep.subr.bf16.mxu0 0
          %587 = vmatpush1.bf16.msra.mxu0 %v578
          %588 = vmatprep.subr.bf16.mxu0 0
          %589 = vmatpush1.bf16.msra.mxu0 0
          %590 = vmatprep.subr.bf16.mxu0 0
          %591 = vmatpush1.bf16.msra.mxu0 0
          %592 = vmatprep.subr.bf16.mxu0 0
          %593 = vmatpush1.bf16.msra.mxu0 0
          %594 = vmatprep.subr.bf16.mxu0 0
          %595 = vmatpush1.bf16.msra.mxu0 0
          %596 = vmatprep.subr.bf16.mxu0 0
          %597 = vmatpush1.bf16.msra.mxu0 0
          %598 = vmatprep.subr.bf16.mxu0 0
          %599 = vmatpush1.bf16.msra.mxu0 0
          %600 = vmatprep.subr.bf16.mxu0 0
          %601 = vmatpush1.bf16.msra.mxu0 0
          %602 = vmatprep.subr.bf16.mxu0 0
          %603 = vmatpush1.bf16.msra.mxu0 0
          %604 = vmatprep.subr.bf16.mxu0 0
          %605 = vmatpush1.bf16.msra.mxu0 0
          %606 = vmatprep.subr.bf16.mxu0 0
          %607 = vmatpush1.bf16.msra.mxu0 0
          %608 = vmatprep.subr.bf16.mxu0 0
          %609 = vmatpush1.bf16.msra.mxu0 0
          %610 = vmatprep.subr.bf16.mxu0 0
          %611 = vmatpush1.bf16.msra.mxu0 0
          %612 = vmatprep.subr.bf16.mxu0 0
          %613 = vmatpush1.bf16.msra.mxu0 0
          %614 = vmatprep.subr.bf16.mxu0 0
          %615 = vmatpush1.bf16.msra.mxu0 0
          %616 = vmatprep.mubr.bf16.mxu0 0
          %617 = vmatmul.mubr.bf16.gmra.mrb[0].mxu0 %v582
          %v618 = vpop.f32.mrb[0].mxu0
          %v619 = vadd.f32 %v562, %v618
          %v620 = vpop.f32.mrb[0].mxu0
          %v621 = vpop.f32.mrb[0].mxu0
          %v622 = vadd.f32 %v562, %v621
          %v623 = vpop.f32.mrb[0].mxu0
          %624 = vdwg.mxu0
          %v625 = vpack.c.bf16 %v548, %v545
          %626 = vst.msk [vmem:[#allocation2] sm:$0xff] %vm506, %v625
          %v627 = vpack.c.bf16 %v622, %v619
          %628 = vst.msk [vmem:[#allocation3] sm:$0xff] %vm506, %v627
        $region80: #{tpu_custom_call.1} parent=55 // pred_fallthru
          _
        %v629 = vld [vmem:[%s400] sm:$0xf]
        %v630 = vld [vmem:[#allocation11] sm:$0xf]
        %v631 = vld [vmem:[#allocation11 + $0x4] sm:$0xf]
        %v632 = vld [vmem:[#allocation11 + $0x8] sm:$0xf]
        %v633 = vld [vmem:[#allocation11 + $0xc] sm:$0xf]
        %v634 = vld [vmem:[%s4] sm:$0x1]
        %v636 = vlaneseq
        %v637 = vshrl.u32 %v636, 7
        %v638 = vsub.s32 0, %v637
        %v639 = vrot.slane %v634, %v638
        %v645 = vunpack.c.l.b16 %v630
        %v646 = vunpack.c.l.b16 %v631
        %v647 = vunpack.c.l.b16 %v632
        %v648 = vunpack.c.l.b16 %v633
        %v649 = vpack.c.b16 %v646, %v645
        %v650 = vpack.c.b16 %v648, %v647
        %vm653 = vcmask 261120
        %v655 = vsel %vm653, %v629, 0
        %657 = vmatprep.subr.bf16.mxu0 0
        %658 = vmatpush1.bf16.msra.mxu0 %v649
        %659 = vmatprep.subr.bf16.mxu0 0
        %660 = vmatpush1.bf16.msra.mxu0 %v650
        %661 = vmatprep.subr.bf16.mxu0 0
        %662 = vmatpush1.bf16.msra.mxu0 0
        %663 = vmatprep.subr.bf16.mxu0 0
        %664 = vmatpush1.bf16.msra.mxu0 0
        %665 = vmatprep.subr.bf16.mxu0 0
        %666 = vmatpush1.bf16.msra.mxu0 0
        %667 = vmatprep.subr.bf16.mxu0 0
        %668 = vmatpush1.bf16.msra.mxu0 0
        %669 = vmatprep.subr.bf16.mxu0 0
        %670 = vmatpush1.bf16.msra.mxu0 0
        %671 = vmatprep.subr.bf16.mxu0 0
        %672 = vmatpush1.bf16.msra.mxu0 0
        %673 = vmatprep.subr.bf16.mxu0 0
        %674 = vmatpush1.bf16.msra.mxu0 0
        %675 = vmatprep.subr.bf16.mxu0 0
        %676 = vmatpush1.bf16.msra.mxu0 0
        %677 = vmatprep.subr.bf16.mxu0 0
        %678 = vmatpush1.bf16.msra.mxu0 0
        %679 = vmatprep.subr.bf16.mxu0 0
        %680 = vmatpush1.bf16.msra.mxu0 0
        %681 = vmatprep.subr.bf16.mxu0 0
        %682 = vmatpush1.bf16.msra.mxu0 0
        %683 = vmatprep.subr.bf16.mxu0 0
        %684 = vmatpush1.bf16.msra.mxu0 0
        %685 = vmatprep.subr.bf16.mxu0 0
        %686 = vmatpush1.bf16.msra.mxu0 0
        %687 = vmatprep.subr.bf16.mxu0 0
        %688 = vmatpush1.bf16.msra.mxu0 0
        %689 = vmatprep.mubr.bf16.mxu0 0
        %690 = vmatmul.mubr.bf16.gmra.mrb[0].mxu0 %v655
        %v691 = vpop.f32.mrb[0].mxu0
        %v692 = vadd.f32 %v639, %v691
        %v693 = vpop.f32.mrb[0].mxu0
        %v694 = vpop.f32.mrb[0].mxu0
        %v695 = vpop.f32.mrb[0].mxu0
        %696 = vdwg.mxu0
        %v697 = vmul.f32 %v692, 0.35355338
        %v698 = vpack.c.bf16 %v697, %v697
        %v699 = vld [vmem:[#allocation2] sm:$0xff]
        %v700 = vld [vmem:[#allocation3] sm:$0xff]
        %vm701 = vcmask 64512
        %v703 = vsel %vm701, %v698, 0
        %v706 = vsel %vm701, %v699, 0
        %708 = vmatprep.subr.bf16.mxu0 0
        %709 = vmatpush1.bf16.xpose.msra.mxu0 %v706
        %710 = vmatprep.subr.bf16.mxu0 0
        %711 = vmatpush1.bf16.xpose.msra.mxu0 0
        %712 = vmatprep.subr.bf16.mxu0 0
        %713 = vmatpush1.bf16.xpose.msra.mxu0 0
        %714 = vmatprep.subr.bf16.mxu0 0
        %715 = vmatpush1.bf16.xpose.msra.mxu0 0
        %716 = vmatprep.subr.bf16.mxu0 0
        %717 = vmatpush1.bf16.xpose.msra.mxu0 0
        %718 = vmatprep.subr.bf16.mxu0 0
        %719 = vmatpush1.bf16.xpose.msra.mxu0 0
        %720 = vmatprep.subr.bf16.mxu0 0
        %721 = vmatpush1.bf16.xpose.msra.mxu0 0
        %722 = vmatprep.subr.bf16.mxu0 0
        %723 = vmatpush1.bf16.xpose.msra.mxu0 0
        %724 = vmatprep.subr.bf16.mxu0 0
        %725 = vmatpush1.bf16.xpose.msra.mxu0 0
        %726 = vmatprep.subr.bf16.mxu0 0
        %727 = vmatpush1.bf16.xpose.msra.mxu0 0
        %728 = vmatprep.subr.bf16.mxu0 0
        %729 = vmatpush1.bf16.xpose.msra.mxu0 0
        %730 = vmatprep.subr.bf16.mxu0 0
        %731 = vmatpush1.bf16.xpose.msra.mxu0 0
        %732 = vmatprep.subr.bf16.mxu0 0
        %733 = vmatpush1.bf16.xpose.msra.mxu0 0
        %734 = vmatprep.subr.bf16.mxu0 0
        %735 = vmatpush1.bf16.xpose.msra.mxu0 0
        %736 = vmatprep.subr.bf16.mxu0 0
        %737 = vmatpush1.bf16.xpose.msra.mxu0 0
        %738 = vmatprep.subr.bf16.mxu0 0
        %739 = vmatpush1.bf16.xpose.msra.mxu0 0
        %740 = vmatprep.mubr.bf16.mxu0 0
        %741 = vmatmul.mubr.bf16.gmra.mrb[0].mxu0 %v703
        %v742 = vpop.f32.mrb[0].mxu0
        %v743 = vadd.f32 0.0, %v742
        %v744 = vpop.f32.mrb[0].mxu0
        %v745 = vpop.f32.mrb[0].mxu0
        %v746 = vpop.f32.mrb[0].mxu0
        %747 = vdwg.mxu0
        %vm748 = vcmask 130048
        %v749 = vsel %vm748, %v743, -inf
        %750 = vmax.xlane.f32.xlu0 %v749
        %v751 = vpop.xlane.xlu0 %750
        %v752 = vsub.f32 %v743, %v751
        %v753 = vmul.f32 %v752, 1.442695
        %v754 = vpow.pop %v753
        %v755 = vsel %vm748, %v754, 0.0
        %756 = vadd.xlane.f32.xlu0 %v755
        %v757 = vpop.xlane.xlu0 %756
        %v758 = vpack.c.bf16 %v754, %v754
        %v760 = vsel %vm748, %v758, 0
        %762 = vmatprep.subr.bf16.mxu0 0
        %763 = vmatpush1.bf16.msra.mxu0 %v700
        %764 = vmatprep.subr.bf16.mxu0 0
        %765 = vmatpush1.bf16.msra.mxu0 0
        %766 = vmatprep.subr.bf16.mxu0 0
        %767 = vmatpush1.bf16.msra.mxu0 0
        %768 = vmatprep.subr.bf16.mxu0 0
        %769 = vmatpush1.bf16.msra.mxu0 0
        %770 = vmatprep.subr.bf16.mxu0 0
        %771 = vmatpush1.bf16.msra.mxu0 0
        %772 = vmatprep.subr.bf16.mxu0 0
        %773 = vmatpush1.bf16.msra.mxu0 0
        %774 = vmatprep.subr.bf16.mxu0 0
        %775 = vmatpush1.bf16.msra.mxu0 0
        %776 = vmatprep.subr.bf16.mxu0 0
        %777 = vmatpush1.bf16.msra.mxu0 0
        %778 = vmatprep.subr.bf16.mxu0 0
        %779 = vmatpush1.bf16.msra.mxu0 0
        %780 = vmatprep.subr.bf16.mxu0 0
        %781 = vmatpush1.bf16.msra.mxu0 0
        %782 = vmatprep.subr.bf16.mxu0 0
        %783 = vmatpush1.bf16.msra.mxu0 0
        %784 = vmatprep.subr.bf16.mxu0 0
        %785 = vmatpush1.bf16.msra.mxu0 0
        %786 = vmatprep.subr.bf16.mxu0 0
        %787 = vmatpush1.bf16.msra.mxu0 0
        %788 = vmatprep.subr.bf16.mxu0 0
        %789 = vmatpush1.bf16.msra.mxu0 0
        %790 = vmatprep.subr.bf16.mxu0 0
        %791 = vmatpush1.bf16.msra.mxu0 0
        %792 = vmatprep.subr.bf16.mxu0 0
        %793 = vmatpush1.bf16.msra.mxu0 0
        %794 = vmatprep.mubr.bf16.mxu0 0
        %795 = vmatmul.mubr.bf16.gmra.mrb[0].mxu0 %v760
        %v796 = vpop.f32.mrb[0].mxu0
        %v797 = vadd.f32 0.0, %v796
        %v798 = vpop.f32.mrb[0].mxu0
        %v799 = vpop.f32.mrb[0].mxu0
        %v800 = vpop.f32.mrb[0].mxu0
        %801 = vdwg.mxu0
        %v802 = vrcp.pop %v757
        %v803 = vmul.f32 %v797, %v802
        %804 = vst.msk [vmem:[#allocation4] sm:$0xff] %vm701, %v803
        %v805 = vld [vmem:[#allocation2] sm:$0xff]
        %v806 = vld [vmem:[#allocation3] sm:$0xff]
        %808 = vrot.lane.b32.xlu0 %v698, 120
        %v809 = vpop.permute.xlu0 %808
        %811 = vrot.lane.b32.xlu0 %v805, 120
        %v812 = vpop.permute.xlu0 %811
        %v814 = vsel %vm701, %v809, 0
        %v817 = vsel %vm701, %v812, 0
        %819 = vmatprep.subr.bf16.mxu0 0
        %820 = vmatpush1.bf16.xpose.msra.mxu0 %v817
        %821 = vmatprep.subr.bf16.mxu0 0
        %822 = vmatpush1.bf16.xpose.msra.mxu0 0
        %823 = vmatprep.subr.bf16.mxu0 0
        %824 = vmatpush1.bf16.xpose.msra.mxu0 0
        %825 = vmatprep.subr.bf16.mxu0 0
        %826 = vmatpush1.bf16.xpose.msra.mxu0 0
        %827 = vmatprep.subr.bf16.mxu0 0
        %828 = vmatpush1.bf16.xpose.msra.mxu0 0
        %829 = vmatprep.subr.bf16.mxu0 0
        %830 = vmatpush1.bf16.xpose.msra.mxu0 0
        %831 = vmatprep.subr.bf16.mxu0 0
        %832 = vmatpush1.bf16.xpose.msra.mxu0 0
        %833 = vmatprep.subr.bf16.mxu0 0
        %834 = vmatpush1.bf16.xpose.msra.mxu0 0
        %835 = vmatprep.subr.bf16.mxu0 0
        %836 = vmatpush1.bf16.xpose.msra.mxu0 0
        %837 = vmatprep.subr.bf16.mxu0 0
        %838 = vmatpush1.bf16.xpose.msra.mxu0 0
        %839 = vmatprep.subr.bf16.mxu0 0
        %840 = vmatpush1.bf16.xpose.msra.mxu0 0
        %841 = vmatprep.subr.bf16.mxu0 0
        %842 = vmatpush1.bf16.xpose.msra.mxu0 0
        %843 = vmatprep.subr.bf16.mxu0 0
        %844 = vmatpush1.bf16.xpose.msra.mxu0 0
        %845 = vmatprep.subr.bf16.mxu0 0
        %846 = vmatpush1.bf16.xpose.msra.mxu0 0
        %847 = vmatprep.subr.bf16.mxu0 0
        %848 = vmatpush1.bf16.xpose.msra.mxu0 0
        %849 = vmatprep.subr.bf16.mxu0 0
        %850 = vmatpush1.bf16.xpose.msra.mxu0 0
        %851 = vmatprep.mubr.bf16.mxu0 0
        %852 = vmatmul.mubr.bf16.gmra.mrb[0].mxu0 %v814
        %v853 = vpop.f32.mrb[0].mxu0
        %v854 = vadd.f32 0.0, %v853
        %v855 = vpop.f32.mrb[0].mxu0
        %v856 = vpop.f32.mrb[0].mxu0
        %v857 = vpop.f32.mrb[0].mxu0
        %858 = vdwg.mxu0
        %v859 = vsel %vm748, %v854, -inf
        %860 = vmax.xlane.f32.xlu0 %v859
        %v861 = vpop.xlane.xlu0 %860
        %v862 = vsub.f32 %v854, %v861
        %v863 = vmul.f32 %v862, 1.442695
        %v864 = vpow.pop %v863
        %v865 = vsel %vm748, %v864, 0.0
        %866 = vadd.xlane.f32.xlu0 %v865
        %v867 = vpop.xlane.xlu0 %866
        %v868 = vpack.c.bf16 %v864, %v864
        %870 = vrot.lane.b32.xlu0 %v806, 120
        %v871 = vpop.permute.xlu0 %870
        %v874 = vsel %vm748, %v868, 0
        %876 = vmatprep.subr.bf16.mxu0 0
        %877 = vmatpush1.bf16.msra.mxu0 %v871
        %878 = vmatprep.subr.bf16.mxu0 0
        %879 = vmatpush1.bf16.msra.mxu0 0
        %880 = vmatprep.subr.bf16.mxu0 0
        %881 = vmatpush1.bf16.msra.mxu0 0
        %882 = vmatprep.subr.bf16.mxu0 0
        %883 = vmatpush1.bf16.msra.mxu0 0
        %884 = vmatprep.subr.bf16.mxu0 0
        %885 = vmatpush1.bf16.msra.mxu0 0
        %886 = vmatprep.subr.bf16.mxu0 0
        %887 = vmatpush1.bf16.msra.mxu0 0
        %888 = vmatprep.subr.bf16.mxu0 0
        %889 = vmatpush1.bf16.msra.mxu0 0
        %890 = vmatprep.subr.bf16.mxu0 0
        %891 = vmatpush1.bf16.msra.mxu0 0
        %892 = vmatprep.subr.bf16.mxu0 0
        %893 = vmatpush1.bf16.msra.mxu0 0
        %894 = vmatprep.subr.bf16.mxu0 0
        %895 = vmatpush1.bf16.msra.mxu0 0
        %896 = vmatprep.subr.bf16.mxu0 0
        %897 = vmatpush1.bf16.msra.mxu0 0
        %898 = vmatprep.subr.bf16.mxu0 0
        %899 = vmatpush1.bf16.msra.mxu0 0
        %900 = vmatprep.subr.bf16.mxu0 0
        %901 = vmatpush1.bf16.msra.mxu0 0
        %902 = vmatprep.subr.bf16.mxu0 0
        %903 = vmatpush1.bf16.msra.mxu0 0
        %904 = vmatprep.subr.bf16.mxu0 0
        %905 = vmatpush1.bf16.msra.mxu0 0
        %906 = vmatprep.subr.bf16.mxu0 0
        %907 = vmatpush1.bf16.msra.mxu0 0
        %908 = vmatprep.mubr.bf16.mxu0 0
        %909 = vmatmul.mubr.bf16.gmra.mrb[0].mxu0 %v874
        %v910 = vpop.f32.mrb[0].mxu0
        %v911 = vadd.f32 0.0, %v910
        %v912 = vpop.f32.mrb[0].mxu0
        %v913 = vpop.f32.mrb[0].mxu0
        %v914 = vpop.f32.mrb[0].mxu0
        %915 = vdwg.mxu0
        %v916 = vrcp.pop %v867
        %v917 = vmul.f32 %v911, %v916
        %919 = vrot.lane.b32.xlu0 %v917, 8
        %v920 = vpop.permute.xlu0 %919
        %vm922 = vcmask 130112
        %923 = vst.msk [vmem:[#allocation4] sm:$0xff] %vm922, %v920
        %v924 = vld [vmem:[#allocation2] sm:$0xff]
        %v925 = vld [vmem:[#allocation3] sm:$0xff]
        %926 = vrot.lane.b32.xlu0 %v698, 112
        %v927 = vpop.permute.xlu0 %926
        %929 = vrot.lane.b32.xlu0 %v924, 112
        %v930 = vpop.permute.xlu0 %929
        %v932 = vsel %vm701, %v927, 0
        %v935 = vsel %vm701, %v930, 0
        %937 = vmatprep.subr.bf16.mxu0 0
        %938 = vmatpush1.bf16.xpose.msra.mxu0 %v935
        %939 = vmatprep.subr.bf16.mxu0 0
        %940 = vmatpush1.bf16.xpose.msra.mxu0 0
        %941 = vmatprep.subr.bf16.mxu0 0
        %942 = vmatpush1.bf16.xpose.msra.mxu0 0
        %943 = vmatprep.subr.bf16.mxu0 0
        %944 = vmatpush1.bf16.xpose.msra.mxu0 0
        %945 = vmatprep.subr.bf16.mxu0 0
        %946 = vmatpush1.bf16.xpose.msra.mxu0 0
        %947 = vmatprep.subr.bf16.mxu0 0
        %948 = vmatpush1.bf16.xpose.msra.mxu0 0
        %949 = vmatprep.subr.bf16.mxu0 0
        %950 = vmatpush1.bf16.xpose.msra.mxu0 0
        %951 = vmatprep.subr.bf16.mxu0 0
        %952 = vmatpush1.bf16.xpose.msra.mxu0 0
        %953 = vmatprep.subr.bf16.mxu0 0
        %954 = vmatpush1.bf16.xpose.msra.mxu0 0
        %955 = vmatprep.subr.bf16.mxu0 0
        %956 = vmatpush1.bf16.xpose.msra.mxu0 0
        %957 = vmatprep.subr.bf16.mxu0 0
        %958 = vmatpush1.bf16.xpose.msra.mxu0 0
        %959 = vmatprep.subr.bf16.mxu0 0
        %960 = vmatpush1.bf16.xpose.msra.mxu0 0
        %961 = vmatprep.subr.bf16.mxu0 0
        %962 = vmatpush1.bf16.xpose.msra.mxu0 0
        %963 = vmatprep.subr.bf16.mxu0 0
        %964 = vmatpush1.bf16.xpose.msra.mxu0 0
        %965 = vmatprep.subr.bf16.mxu0 0
        %966 = vmatpush1.bf16.xpose.msra.mxu0 0
        %967 = vmatprep.subr.bf16.mxu0 0
        %968 = vmatpush1.bf16.xpose.msra.mxu0 0
        %969 = vmatprep.mubr.bf16.mxu0 0
        %970 = vmatmul.mubr.bf16.gmra.mrb[0].mxu0 %v932
        %v971 = vpop.f32.mrb[0].mxu0
        %v972 = vadd.f32 0.0, %v971
        %v973 = vpop.f32.mrb[0].mxu0
        %v974 = vpop.f32.mrb[0].mxu0
        %v975 = vpop.f32.mrb[0].mxu0
        %976 = vdwg.mxu0
        %v977 = vsel %vm748, %v972, -inf
        %978 = vmax.xlane.f32.xlu0 %v977
        %v979 = vpop.xlane.xlu0 %978
        %v980 = vsub.f32 %v972, %v979
        %v981 = vmul.f32 %v980, 1.442695
        %v982 = vpow.pop %v981
        %v983 = vsel %vm748, %v982, 0.0
        %984 = vadd.xlane.f32.xlu0 %v983
        %v985 = vpop.xlane.xlu0 %984
        %v986 = vpack.c.bf16 %v982, %v982
        %988 = vrot.lane.b32.xlu0 %v925, 112
        %v989 = vpop.permute.xlu0 %988
        %v992 = vsel %vm748, %v986, 0
        %994 = vmatprep.subr.bf16.mxu0 0
        %995 = vmatpush1.bf16.msra.mxu0 %v989
        %996 = vmatprep.subr.bf16.mxu0 0
        %997 = vmatpush1.bf16.msra.mxu0 0
        %998 = vmatprep.subr.bf16.mxu0 0
        %999 = vmatpush1.bf16.msra.mxu0 0
        %1000 = vmatprep.subr.bf16.mxu0 0
        %1001 = vmatpush1.bf16.msra.mxu0 0
        %1002 = vmatprep.subr.bf16.mxu0 0
        %1003 = vmatpush1.bf16.msra.mxu0 0
        %1004 = vmatprep.subr.bf16.mxu0 0
        %1005 = vmatpush1.bf16.msra.mxu0 0
        %1006 = vmatprep.subr.bf16.mxu0 0
        %1007 = vmatpush1.bf16.msra.mxu0 0
        %1008 = vmatprep.subr.bf16.mxu0 0
        %1009 = vmatpush1.bf16.msra.mxu0 0
        %1010 = vmatprep.subr.bf16.mxu0 0
        %1011 = vmatpush1.bf16.msra.mxu0 0
        %1012 = vmatprep.subr.bf16.mxu0 0
        %1013 = vmatpush1.bf16.msra.mxu0 0
        %1014 = vmatprep.subr.bf16.mxu0 0
        %1015 = vmatpush1.bf16.msra.mxu0 0
        %1016 = vmatprep.subr.bf16.mxu0 0
        %1017 = vmatpush1.bf16.msra.mxu0 0
        %1018 = vmatprep.subr.bf16.mxu0 0
        %1019 = vmatpush1.bf16.msra.mxu0 0
        %1020 = vmatprep.subr.bf16.mxu0 0
        %1021 = vmatpush1.bf16.msra.mxu0 0
        %1022 = vmatprep.subr.bf16.mxu0 0
        %1023 = vmatpush1.bf16.msra.mxu0 0
        %1024 = vmatprep.subr.bf16.mxu0 0
        %1025 = vmatpush1.bf16.msra.mxu0 0
        %1026 = vmatprep.mubr.bf16.mxu0 0
        %1027 = vmatmul.mubr.bf16.gmra.mrb[0].mxu0 %v992
        %v1028 = vpop.f32.mrb[0].mxu0
        %v1029 = vadd.f32 0.0, %v1028
        %v1030 = vpop.f32.mrb[0].mxu0
        %v1031 = vpop.f32.mrb[0].mxu0
        %v1032 = vpop.f32.mrb[0].mxu0
        %1033 = vdwg.mxu0
        %v1034 = vrcp.pop %v985
        %v1035 = vmul.f32 %v1029, %v1034
        %1037 = vrot.lane.b32.xlu0 %v1035, 16
        %v1038 = vpop.permute.xlu0 %1037
        %vm1040 = vcmask 195712
        %1041 = vst.msk [vmem:[#allocation4] sm:$0xff] %vm1040, %v1038
        %v1042 = vld [vmem:[#allocation2] sm:$0xff]
        %v1043 = vld [vmem:[#allocation3] sm:$0xff]
        %1044 = vrot.lane.b32.xlu0 %v698, 104
        %v1045 = vpop.permute.xlu0 %1044
        %1047 = vrot.lane.b32.xlu0 %v1042, 104
        %v1048 = vpop.permute.xlu0 %1047
        %v1050 = vsel %vm701, %v1045, 0
        %v1053 = vsel %vm701, %v1048, 0
        %1055 = vmatprep.subr.bf16.mxu0 0
        %1056 = vmatpush1.bf16.xpose.msra.mxu0 %v1053
        %1057 = vmatprep.subr.bf16.mxu0 0
        %1058 = vmatpush1.bf16.xpose.msra.mxu0 0
        %1059 = vmatprep.subr.bf16.mxu0 0
        %1060 = vmatpush1.bf16.xpose.msra.mxu0 0
        %1061 = vmatprep.subr.bf16.mxu0 0
        %1062 = vmatpush1.bf16.xpose.msra.mxu0 0
        %1063 = vmatprep.subr.bf16.mxu0 0
        %1064 = vmatpush1.bf16.xpose.msra.mxu0 0
        %1065 = vmatprep.subr.bf16.mxu0 0
        %1066 = vmatpush1.bf16.xpose.msra.mxu0 0
        %1067 = vmatprep.subr.bf16.mxu0 0
        %1068 = vmatpush1.bf16.xpose.msra.mxu0 0
        %1069 = vmatprep.subr.bf16.mxu0 0
        %1070 = vmatpush1.bf16.xpose.msra.mxu0 0
        %1071 = vmatprep.subr.bf16.mxu0 0
        %1072 = vmatpush1.bf16.xpose.msra.mxu0 0
        %1073 = vmatprep.subr.bf16.mxu0 0
        %1074 = vmatpush1.bf16.xpose.msra.mxu0 0
        %1075 = vmatprep.subr.bf16.mxu0 0
        %1076 = vmatpush1.bf16.xpose.msra.mxu0 0
        %1077 = vmatprep.subr.bf16.mxu0 0
        %1078 = vmatpush1.bf16.xpose.msra.mxu0 0
        %1079 = vmatprep.subr.bf16.mxu0 0
        %1080 = vmatpush1.bf16.xpose.msra.mxu0 0
        %1081 = vmatprep.subr.bf16.mxu0 0
        %1082 = vmatpush1.bf16.xpose.msra.mxu0 0
        %1083 = vmatprep.subr.bf16.mxu0 0
        %1084 = vmatpush1.bf16.xpose.msra.mxu0 0
        %1085 = vmatprep.subr.bf16.mxu0 0
        %1086 = vmatpush1.bf16.xpose.msra.mxu0 0
        %1087 = vmatprep.mubr.bf16.mxu0 0
        %1088 = vmatmul.mubr.bf16.gmra.mrb[0].mxu0 %v1050
        %v1089 = vpop.f32.mrb[0].mxu0
        %v1090 = vadd.f32 0.0, %v1089
        %v1091 = vpop.f32.mrb[0].mxu0
        %v1092 = vpop.f32.mrb[0].mxu0
        %v1093 = vpop.f32.mrb[0].mxu0
        %1094 = vdwg.mxu0
        %v1095 = vsel %vm748, %v1090, -inf
        %1096 = vmax.xlane.f32.xlu0 %v1095
        %v1097 = vpop.xlane.xlu0 %1096
        %v1098 = vsub.f32 %v1090, %v1097
        %v1099 = vmul.f32 %v1098, 1.442695
        %v1100 = vpow.pop %v1099
        %v1101 = vsel %vm748, %v1100, 0.0
        %1102 = vadd.xlane.f32.xlu0 %v1101
        %v1103 = vpop.xlane.xlu0 %1102
        %v1104 = vpack.c.bf16 %v1100, %v1100
        %1106 = vrot.lane.b32.xlu0 %v1043, 104
        %v1107 = vpop.permute.xlu0 %1106
        %v1110 = vsel %vm748, %v1104, 0
        %1112 = vmatprep.subr.bf16.mxu0 0
        %1113 = vmatpush1.bf16.msra.mxu0 %v1107
        %1114 = vmatprep.subr.bf16.mxu0 0
        %1115 = vmatpush1.bf16.msra.mxu0 0
        %1116 = vmatprep.subr.bf16.mxu0 0
        %1117 = vmatpush1.bf16.msra.mxu0 0
        %1118 = vmatprep.subr.bf16.mxu0 0
        %1119 = vmatpush1.bf16.msra.mxu0 0
        %1120 = vmatprep.subr.bf16.mxu0 0
        %1121 = vmatpush1.bf16.msra.mxu0 0
        %1122 = vmatprep.subr.bf16.mxu0 0
        %1123 = vmatpush1.bf16.msra.mxu0 0
        %1124 = vmatprep.subr.bf16.mxu0 0
        %1125 = vmatpush1.bf16.msra.mxu0 0
        %1126 = vmatprep.subr.bf16.mxu0 0
        %1127 = vmatpush1.bf16.msra.mxu0 0
        %1128 = vmatprep.subr.bf16.mxu0 0
        %1129 = vmatpush1.bf16.msra.mxu0 0
        %1130 = vmatprep.subr.bf16.mxu0 0
        %1131 = vmatpush1.bf16.msra.mxu0 0
        %1132 = vmatprep.subr.bf16.mxu0 0
        %1133 = vmatpush1.bf16.msra.mxu0 0
        %1134 = vmatprep.subr.bf16.mxu0 0
        %1135 = vmatpush1.bf16.msra.mxu0 0
        %1136 = vmatprep.subr.bf16.mxu0 0
        %1137 = vmatpush1.bf16.msra.mxu0 0
        %1138 = vmatprep.subr.bf16.mxu0 0
        %1139 = vmatpush1.bf16.msra.mxu0 0
        %1140 = vmatprep.subr.bf16.mxu0 0
        %1141 = vmatpush1.bf16.msra.mxu0 0
        %1142 = vmatprep.subr.bf16.mxu0 0
        %1143 = vmatpush1.bf16.msra.mxu0 0
        %1144 = vmatprep.mubr.bf16.mxu0 0
        %1145 = vmatmul.mubr.bf16.gmra.mrb[0].mxu0 %v1110
        %v1146 = vpop.f32.mrb[0].mxu0
        %v1147 = vadd.f32 0.0, %v1146
        %v1148 = vpop.f32.mrb[0].mxu0
        %v1149 = vpop.f32.mrb[0].mxu0
        %v1150 = vpop.f32.mrb[0].mxu0
        %1151 = vdwg.mxu0
        %v1152 = vrcp.pop %v1103
        %v1153 = vmul.f32 %v1147, %v1152
        %1155 = vrot.lane.b32.xlu0 %v1153, 24
        %v1156 = vpop.permute.xlu0 %1155
        %vm1158 = vcmask 261312
        %1159 = vst.msk [vmem:[#allocation4] sm:$0xff] %vm1158, %v1156
        %v1160 = vld [vmem:[#allocation4] sm:$0xff]
        %1161 = vst.msk [vmem:[%s470] sm:$0xff] %vm653, %v1160
        %s1162 = sand.u32 %s258, 1
        %s1163 = scalar_lea.sflag [#allocation7], %s1162
        %s1164 = sand.u32 %s258, 1
        %s1165 = smul.addr %s1164, 8
        %s1166 = scalar_lea.vmem [#allocation14], %s1165
        // Predicated region
        $region81: #{tpu_custom_call.1} parent=55 // pred_check
          %p1167 = pneg %p268
        $region82: #{tpu_custom_call.1} parent=55 // pred_check_branch
          %1169 = sbr.rel (%p1167) target = $region84
        $region83: #{tpu_custom_call.1} parent=55 // pred_region
          %s1171 = ssub.s32 128, 128
          %1172 = vsyncadd %s1163, %s1171
          %s1173 = sadd.s32 %s35, %s34
          %s1174 = smul.addr %s1173, 128
          %s1175 = scalar_lea.hbm %s9, %s1174
          %s1177 = sshll.u32 %s1166, 4
          %s1178 = int_to_ptr.vmem [resolvable:$true] %s1177
          %1180 = dma.vmem_to_hbm [thread:$0]  %s1178, 128, %s1175, %s1163
        $region84: #{tpu_custom_call.1} parent=55 // pred_fallthru
          _
      $region56: #{tpu_custom_call.1} parent=5 // pred_fallthru
        _
      %p1181 = scmp.le.s32.totalorder 2, %s25
      // Predicated region
      $region85: #{tpu_custom_call.1} parent=5 // pred_check
        %p1182 = pneg %p1181
      $region86: #{tpu_custom_call.1} parent=5 // pred_check_branch
        %1184 = sbr.rel (%p1182) target = $region88
      $region87: #{tpu_custom_call.1} parent=5 // pred_region
        %s1185 = ssub.s32 %s25, 2
        // Predicated region
        $region89: #{tpu_custom_call.1} parent=87 // pred_check
          %p1186 = pneg %p274
        $region90: #{tpu_custom_call.1} parent=87 // pred_check_branch
          %1188 = sbr.rel (%p1186) target = $region92
        $region91: #{tpu_custom_call.1} parent=87 // pred_region
          %s1189 = sand.u32 %s259, 1
          %s1190 = scalar_lea.sflag [#allocation7], %s1189
          %s1191 = sand.u32 %s259, 1
          %s1192 = smul.addr %s1191, 8
          %s1193 = scalar_lea.vmem [#allocation14], %s1192
          %1194 = dma.done %s1190, 128
        $region92: #{tpu_custom_call.1} parent=87 // pred_fallthru
          _
      $region88: #{tpu_custom_call.1} parent=5 // pred_fallthru
        _
    $region6: #{tpu_custom_call.1} parent=1 // loop_footer
      %s29 = sadd.s32 1, %s25
    $region7: #{tpu_custom_call.1} parent=1 // loop_footer_branch
      %24 = sbr.rel target = $region3
    $region8: #{tpu_custom_call.1} parent=1 // loop_exit
      _
    %1195 = vsyncpa [#allocation6], 1
    %s1196 = scalar_lea.sflag [#allocation6], 1
    %1197 = vsyncpa %s1196, 1
    %1198 = vsyncpa [#allocation9], 1
    %s1199 = scalar_lea.sflag [#allocation9], 1
    %1200 = vsyncpa %s1199, 1
    %1201 = vsyncpa [#allocation12], 1
    %1202 = vsyncpa [#allocation7], 1
    %s1203 = scalar_lea.sflag [#allocation7], 1
    %1204 = vsyncpa %s1203, 1

</llo_original>
